<compile_context>
chip_gen: v7x
topology: tpu7x:2x2x1
jax: 0.10.0
libtpu: 0.0.40
codegen_flags: <defaults>
</compile_context>

<pallas_src>
import functools

import jax
import jax.numpy as jnp
from jax.experimental import pallas as pl
from jax.experimental.pallas import tpu as pltpu

EPS = 1e-5
NEG_SLOPE = 0.2


# ------------------------------ Pallas kernel -------------------------------

def _gblock_kernel(x_ref, w1_ref, g1_ref, bt1_ref, w2_ref, g2_ref, bt2_ref,
                   out_ref, *, h, w):
    """Fused conv1 -> BN1 -> LeakyReLU -> conv2 -> BN2 -> residual add.

    x_ref:  (M, C) flat NHWC activation, M = N*H*W (W fastest, then H, then N)
    w*_ref: (9*C, C) conv weights, row index = (dh*3 + dw)*C + cin
    g*/bt*: (1, C) BatchNorm gamma / beta
    """
    m = x_ref.shape[0]
    x = x_ref[...]

    # Row-index masks for replication-padding boundary handling.
    row = jax.lax.broadcasted_iota(jnp.int32, (m, 1), 0)
    w_idx = row % w
    hw_idx = row % (h * w)
    is_w_first = w_idx == 0
    is_w_last = w_idx == (w - 1)
    is_h_first = hw_idx < w
    is_h_last = hw_idx >= (h * w - w)

    def im2col(a):
        """(M, C) -> (M, 9C): 3x3 taps with edge replication, via sublane rolls.

        A shift of one pixel in W is a roll by 1 flat row; a shift of one pixel
        in H is a roll by W flat rows.  Rows on the clamped boundary (and the
        batch/row wrap-around rows, which coincide with them) are fixed with a
        select back to the unshifted value.  Shifts are given as positive
        rotation amounts (roll by m-k == shift by -k).
        """
        a_wm = jnp.where(is_w_first, a, pltpu.roll(a, shift=1, axis=0))       # w-1
        a_wp = jnp.where(is_w_last, a, pltpu.roll(a, shift=m - 1, axis=0))    # w+1
        wvars = (a_wm, a, a_wp)
        taps = []
        for dh in range(3):
            for dw in range(3):
                v = wvars[dw]
                if dh == 0:      # needs h-1, replicate at h == 0
                    v = jnp.where(is_h_first, v, pltpu.roll(v, shift=w, axis=0))
                elif dh == 2:    # needs h+1, replicate at h == H-1
                    v = jnp.where(is_h_last, v, pltpu.roll(v, shift=m - w, axis=0))
                taps.append(v)
        return jnp.concatenate(taps, axis=1)     # (M, 9C), lane-aligned concat

    def bn_affine(acc, gamma, beta):
        # Single-sweep-ish: centered is computed once and reused; gamma is
        # folded into the rsqrt scale so the big MxC op is one mul-add.
        mean = jnp.mean(acc, axis=0, keepdims=True)
        centered = acc - mean
        var = jnp.mean(centered * centered, axis=0, keepdims=True)
        scale = gamma * jax.lax.rsqrt(var + EPS)
        return centered * scale + beta

    # ---- stage 1: conv1 (one K=9C matmul) + BN1 + LeakyReLU(0.2) ----
    acc1 = jnp.dot(im2col(x), w1_ref[...], preferred_element_type=jnp.float32)
    y = bn_affine(acc1, g1_ref[...], bt1_ref[...])
    y = jnp.where(y >= 0, y, NEG_SLOPE * y)

    # ---- stage 2: conv2 + BN2 + residual, y stays in VMEM/vregs ----
    acc2 = jnp.dot(im2col(y), w2_ref[...], preferred_element_type=jnp.float32)
    z = bn_affine(acc2, g2_ref[...], bt2_ref[...])

    out_ref[...] = (x + z).astype(out_ref.dtype)


# -------------------------------- JAX wrapper --------------------------------

_VMEM = pl.BlockSpec(memory_space=pltpu.MemorySpace.VMEM)


def mygblock_forward(x_nchw, params):
    """Full myGBlock forward. x: (N, C, H, W) float32 -> (N, C, H, W)."""
    n, c, h, w = x_nchw.shape
    m = n * h * w
    # NOTE: conv biases b1/b2 are intentionally not passed — they are exactly
    # cancelled by training-mode BatchNorm mean subtraction.
    x_flat = jnp.transpose(x_nchw, (0, 2, 3, 1)).reshape(m, c)
    kernel = functools.partial(_gblock_kernel, h=h, w=w)
    out = pl.pallas_call(
        kernel,
        out_shape=jax.ShapeDtypeStruct((m, c), jnp.float32),
        in_specs=[_VMEM] * 7,
        out_specs=_VMEM,
    )(x_flat,
      params["w1"].reshape(9 * c, c),
      params["gamma1"].reshape(1, c),
      params["beta1"].reshape(1, c),
      params["w2"].reshape(9 * c, c),
      params["gamma2"].reshape(1, c),
      params["beta2"].reshape(1, c))
    return jnp.transpose(out.reshape(n, h, w, c), (0, 3, 1, 2))


# ------------------------- pure-JAX reference (check) ------------------------

def _im2col_replpad_ref(x_nhwc):
    n, h, wd, c = x_nhwc.shape
    xp = jnp.pad(x_nhwc, ((0, 0), (1, 1), (1, 1), (0, 0)), mode="edge")
    taps = []
    for dh in range(3):
        for dw in range(3):
            taps.append(xp[:, dh:dh + h, dw:dw + wd, :].reshape(n * h * wd, c))
    return jnp.stack(taps, axis=0)


def _ref_conv(x_nhwc, w9, b):
    n, h, wd, c = x_nhwc.shape
    patches = _im2col_replpad_ref(x_nhwc)                  # (9, M, C)
    out = jnp.einsum("kmc,kcd->md", patches, w9) + b[None, :]
    return out.reshape(n, h, wd, c)


def _ref_bn(x_nhwc, gamma, beta):
    mean = jnp.mean(x_nhwc, axis=(0, 1, 2), keepdims=True)
    var = jnp.mean((x_nhwc - mean) ** 2, axis=(0, 1, 2), keepdims=True)
    return (x_nhwc - mean) * jax.lax.rsqrt(var + EPS) * gamma + beta


def mygblock_reference(x_nchw, p):
    x = jnp.transpose(x_nchw, (0, 2, 3, 1))
    y = _ref_bn(_ref_conv(x, p["w1"], p["b1"]), p["gamma1"], p["beta1"])
    y = jnp.where(y >= 0, y, NEG_SLOPE * y)
    z = _ref_bn(_ref_conv(y, p["w2"], p["b2"]), p["gamma2"], p["beta2"])
    return jnp.transpose(x + z, (0, 3, 1, 2))


# ------------------------------------ main -----------------------------------

if __name__ == "__main__":
    key = jax.random.PRNGKey(0)
    N, C, H, W = 2, 128, 8, 8                 # num_filter = in_channels = 128
    ks = jax.random.split(key, 6)

    x = jax.random.normal(ks[0], (N, C, H, W), jnp.float32)

    def make_conv_w(k):
        # torch Conv2d weight (Cout, Cin, 3, 3) -> (3, 3, Cin, Cout) -> (9, Cin, Cout)
        std = 1.0 / jnp.sqrt(9.0 * C)
        wgt = jax.random.normal(k, (3, 3, C, C), jnp.float32) * std
        return wgt.reshape(9, C, C)

    params = {
        "w1": make_conv_w(ks[1]),
        "b1": jax.random.normal(ks[2], (C,), jnp.float32) * 0.01,
        "gamma1": jnp.ones((C,), jnp.float32),
        "beta1": jnp.zeros((C,), jnp.float32),
        "w2": make_conv_w(ks[3]),
        "b2": jax.random.normal(ks[4], (C,), jnp.float32) * 0.01,
        "gamma2": jnp.ones((C,), jnp.float32),
        "beta2": jnp.zeros((C,), jnp.float32),
    }

    fwd = jax.jit(mygblock_forward)
    out = fwd(x, params)
    jax.block_until_ready(out)

    ref = mygblock_reference(x, params)
    assert out.shape == (N, C, H, W)
    max_err = float(jnp.max(jnp.abs(out - ref)))
    assert jnp.allclose(out, ref, atol=1e-3, rtol=1e-3), \
        f"mismatch vs reference, max abs err {max_err}"

    print("KERNEL_OK")
</pallas_src>

<mosaic_0001>
module attributes {stable_mosaic.version = 11 : i64} {
  func.func @_gblock_kernel(%arg0: memref<128x128xf32, #tpu.memory_space<vmem>>, %arg1: memref<1152x128xf32, #tpu.memory_space<vmem>>, %arg2: memref<1x128xf32, #tpu.memory_space<vmem>>, %arg3: memref<1x128xf32, #tpu.memory_space<vmem>>, %arg4: memref<1152x128xf32, #tpu.memory_space<vmem>>, %arg5: memref<1x128xf32, #tpu.memory_space<vmem>>, %arg6: memref<1x128xf32, #tpu.memory_space<vmem>>, %arg7: memref<128x128xf32, #tpu.memory_space<vmem>>) attributes {dimension_semantics = [], scalar_prefetch = 0 : i64, scratch_operands = 0 : i64, tpu.core_type = #tpu.core_type<tc>} {
    %c0 = arith.constant 0 : index
    %c0_0 = arith.constant 0 : index
    %0 = vector.load %arg0[%c0, %c0_0] : memref<128x128xf32, #tpu.memory_space<vmem>>, vector<128x128xf32>
    %1 = tpu.iota {dimensions = array<i32: 0>} : vector<128x1xi32>
    %c8_i32 = arith.constant 8 : i32
    %c0_i32 = arith.constant 0 : i32
    %2 = arith.cmpi eq, %c8_i32, %c0_i32 : i32
    %c1_i32 = arith.constant 1 : i32
    %3 = arith.select %2, %c1_i32, %c8_i32 : i32
    %4 = vector.broadcast %3 : i32 to vector<128x1xi32>
    %5 = arith.remsi %1, %4 : vector<128x1xi32>
    %c0_i32_1 = arith.constant 0 : i32
    %6 = vector.broadcast %c0_i32_1 : i32 to vector<128x1xi32>
    %7 = arith.cmpi ne, %5, %6 : vector<128x1xi32>
    %c0_i32_2 = arith.constant 0 : i32
    %8 = vector.broadcast %c0_i32_2 : i32 to vector<128x1xi32>
    %9 = arith.cmpi slt, %5, %8 : vector<128x1xi32>
    %c0_i32_3 = arith.constant 0 : i32
    %10 = arith.cmpi slt, %3, %c0_i32_3 : i32
    %11 = vector.broadcast %10 : i1 to vector<128x1xi1>
    %12 = vector.broadcast %11 : vector<128x1xi1> to vector<128x1xi1>
    %13 = arith.xori %9, %12 : vector<128x1xi1>
    %14 = arith.andi %13, %7 : vector<128x1xi1>
    %15 = vector.broadcast %3 : i32 to vector<128x1xi32>
    %16 = arith.addi %5, %15 : vector<128x1xi32>
    %17 = arith.select %14, %16, %5 : vector<128x1xi1>, vector<128x1xi32>
    %c64_i32 = arith.constant 64 : i32
    %c0_i32_4 = arith.constant 0 : i32
    %18 = arith.cmpi eq, %c64_i32, %c0_i32_4 : i32
    %c1_i32_5 = arith.constant 1 : i32
    %19 = arith.select %18, %c1_i32_5, %c64_i32 : i32
    %20 = vector.broadcast %19 : i32 to vector<128x1xi32>
    %21 = arith.remsi %1, %20 : vector<128x1xi32>
    %c0_i32_6 = arith.constant 0 : i32
    %22 = vector.broadcast %c0_i32_6 : i32 to vector<128x1xi32>
    %23 = arith.cmpi ne, %21, %22 : vector<128x1xi32>
    %c0_i32_7 = arith.constant 0 : i32
    %24 = vector.broadcast %c0_i32_7 : i32 to vector<128x1xi32>
    %25 = arith.cmpi slt, %21, %24 : vector<128x1xi32>
    %c0_i32_8 = arith.constant 0 : i32
    %26 = arith.cmpi slt, %19, %c0_i32_8 : i32
    %27 = vector.broadcast %26 : i1 to vector<128x1xi1>
    %28 = vector.broadcast %27 : vector<128x1xi1> to vector<128x1xi1>
    %29 = arith.xori %25, %28 : vector<128x1xi1>
    %30 = arith.andi %29, %23 : vector<128x1xi1>
    %31 = vector.broadcast %19 : i32 to vector<128x1xi32>
    %32 = arith.addi %21, %31 : vector<128x1xi32>
    %33 = arith.select %30, %32, %21 : vector<128x1xi1>, vector<128x1xi32>
    %c0_i32_9 = arith.constant 0 : i32
    %34 = vector.broadcast %c0_i32_9 : i32 to vector<128x1xi32>
    %35 = arith.cmpi eq, %17, %34 : vector<128x1xi32>
    %c7_i32 = arith.constant 7 : i32
    %36 = vector.broadcast %c7_i32 : i32 to vector<128x1xi32>
    %37 = arith.cmpi eq, %17, %36 : vector<128x1xi32>
    %c8_i32_10 = arith.constant 8 : i32
    %38 = vector.broadcast %c8_i32_10 : i32 to vector<128x1xi32>
    %39 = arith.cmpi slt, %33, %38 : vector<128x1xi32>
    %c56_i32 = arith.constant 56 : i32
    %40 = vector.broadcast %c56_i32 : i32 to vector<128x1xi32>
    %41 = arith.cmpi sge, %33, %40 : vector<128x1xi32>
    %c1_i32_11 = arith.constant 1 : i32
    %42 = tpu.dynamic_rotate %0 by %c1_i32_11 dim 0 : vector<128x128xf32>, i32 -> vector<128x128xf32>
    %43 = vector.shape_cast %35 : vector<128x1xi1> to vector<128x1xi1>
    %44 = vector.broadcast %43 : vector<128x1xi1> to vector<128x128xi1>
    %45 = arith.select %44, %0, %42 : vector<128x128xi1>, vector<128x128xf32>
    %c127_i32 = arith.constant 127 : i32
    %46 = tpu.dynamic_rotate %0 by %c127_i32 dim 0 : vector<128x128xf32>, i32 -> vector<128x128xf32>
    %47 = vector.shape_cast %37 : vector<128x1xi1> to vector<128x1xi1>
    %48 = vector.broadcast %47 : vector<128x1xi1> to vector<128x128xi1>
    %49 = arith.select %48, %0, %46 : vector<128x128xi1>, vector<128x128xf32>
    %c8_i32_12 = arith.constant 8 : i32
    %50 = tpu.dynamic_rotate %45 by %c8_i32_12 dim 0 : vector<128x128xf32>, i32 -> vector<128x128xf32>
    %51 = vector.shape_cast %39 : vector<128x1xi1> to vector<128x1xi1>
    %52 = vector.broadcast %51 : vector<128x1xi1> to vector<128x128xi1>
    %53 = arith.select %52, %45, %50 : vector<128x128xi1>, vector<128x128xf32>
    %c8_i32_13 = arith.constant 8 : i32
    %54 = tpu.dynamic_rotate %0 by %c8_i32_13 dim 0 : vector<128x128xf32>, i32 -> vector<128x128xf32>
    %55 = vector.shape_cast %39 : vector<128x1xi1> to vector<128x1xi1>
    %56 = vector.broadcast %55 : vector<128x1xi1> to vector<128x128xi1>
    %57 = arith.select %56, %0, %54 : vector<128x128xi1>, vector<128x128xf32>
    %c8_i32_14 = arith.constant 8 : i32
    %58 = tpu.dynamic_rotate %49 by %c8_i32_14 dim 0 : vector<128x128xf32>, i32 -> vector<128x128xf32>
    %59 = vector.shape_cast %39 : vector<128x1xi1> to vector<128x1xi1>
    %60 = vector.broadcast %59 : vector<128x1xi1> to vector<128x128xi1>
    %61 = arith.select %60, %49, %58 : vector<128x128xi1>, vector<128x128xf32>
    %c120_i32 = arith.constant 120 : i32
    %62 = tpu.dynamic_rotate %45 by %c120_i32 dim 0 : vector<128x128xf32>, i32 -> vector<128x128xf32>
    %63 = vector.shape_cast %41 : vector<128x1xi1> to vector<128x1xi1>
    %64 = vector.broadcast %63 : vector<128x1xi1> to vector<128x128xi1>
    %65 = arith.select %64, %45, %62 : vector<128x128xi1>, vector<128x128xf32>
    %c120_i32_15 = arith.constant 120 : i32
    %66 = tpu.dynamic_rotate %0 by %c120_i32_15 dim 0 : vector<128x128xf32>, i32 -> vector<128x128xf32>
    %67 = vector.shape_cast %41 : vector<128x1xi1> to vector<128x1xi1>
    %68 = vector.broadcast %67 : vector<128x1xi1> to vector<128x128xi1>
    %69 = arith.select %68, %0, %66 : vector<128x128xi1>, vector<128x128xf32>
    %c120_i32_16 = arith.constant 120 : i32
    %70 = tpu.dynamic_rotate %49 by %c120_i32_16 dim 0 : vector<128x128xf32>, i32 -> vector<128x128xf32>
    %71 = vector.shape_cast %41 : vector<128x1xi1> to vector<128x1xi1>
    %72 = vector.broadcast %71 : vector<128x1xi1> to vector<128x128xi1>
    %73 = arith.select %72, %49, %70 : vector<128x128xi1>, vector<128x128xf32>
    %74 = tpu.concatenate %53, %57, %61, %45, %0, %49, %65, %69, %73 in 1 : vector<128x128xf32>, vector<128x128xf32>, vector<128x128xf32>, vector<128x128xf32>, vector<128x128xf32>, vector<128x128xf32>, vector<128x128xf32>, vector<128x128xf32>, vector<128x128xf32> -> vector<128x1152xf32>
    %c0_17 = arith.constant 0 : index
    %c0_18 = arith.constant 0 : index
    %75 = vector.load %arg1[%c0_17, %c0_18] : memref<1152x128xf32, #tpu.memory_space<vmem>>, vector<1152x128xf32>
    %cst = arith.constant dense<0.000000e+00> : vector<128x128xf32>
    %76 = tpu.matmul %74, %75, %cst {dimension_numbers = #tpu.dot_dimension_numbers<[1], [0], [0], [1], [0, 0, 1, 1], [], []>} : vector<128x1152xf32>, vector<1152x128xf32>, vector<128x128xf32> -> vector<128x128xf32>
    %c0_19 = arith.constant 0 : index
    %c0_20 = arith.constant 0 : index
    %77 = vector.load %arg2[%c0_19, %c0_20] : memref<1x128xf32, #tpu.memory_space<vmem>>, vector<1x128xf32>
    %c0_21 = arith.constant 0 : index
    %c0_22 = arith.constant 0 : index
    %78 = vector.load %arg3[%c0_21, %c0_22] : memref<1x128xf32, #tpu.memory_space<vmem>>, vector<1x128xf32>
    %cst_23 = arith.constant dense<0.000000e+00> : vector<128xf32>
    %79 = vector.multi_reduction <add>, %76, %cst_23 [0] : vector<128x128xf32> to vector<128xf32>
    %80 = vector.shape_cast %79 : vector<128xf32> to vector<1x128xf32>
    %cst_24 = arith.constant 1.280000e+02 : f32
    %81 = vector.broadcast %cst_24 : f32 to vector<1x128xf32>
    %82 = arith.divf %80, %81 : vector<1x128xf32>
    %83 = vector.broadcast %82 : vector<1x128xf32> to vector<128x128xf32>
    %84 = arith.subf %76, %83 : vector<128x128xf32>
    %85 = arith.mulf %84, %84 : vector<128x128xf32>
    %cst_25 = arith.constant dense<0.000000e+00> : vector<128xf32>
    %86 = vector.multi_reduction <add>, %85, %cst_25 [0] : vector<128x128xf32> to vector<128xf32>
    %87 = vector.shape_cast %86 : vector<128xf32> to vector<1x128xf32>
    %cst_26 = arith.constant 1.280000e+02 : f32
    %88 = vector.broadcast %cst_26 : f32 to vector<1x128xf32>
    %89 = arith.divf %87, %88 : vector<1x128xf32>
    %cst_27 = arith.constant 9.99999974E-6 : f32
    %90 = vector.broadcast %cst_27 : f32 to vector<1x128xf32>
    %91 = arith.addf %89, %90 : vector<1x128xf32>
    %92 = math.rsqrt %91 : vector<1x128xf32>
    %93 = arith.mulf %77, %92 : vector<1x128xf32>
    %94 = vector.broadcast %93 : vector<1x128xf32> to vector<128x128xf32>
    %95 = arith.mulf %84, %94 : vector<128x128xf32>
    %96 = vector.broadcast %78 : vector<1x128xf32> to vector<128x128xf32>
    %97 = arith.addf %95, %96 : vector<128x128xf32>
    %cst_28 = arith.constant 0.000000e+00 : f32
    %98 = vector.broadcast %cst_28 : f32 to vector<128x128xf32>
    %99 = arith.cmpf oge, %97, %98 : vector<128x128xf32>
    %cst_29 = arith.constant 2.000000e-01 : f32
    %100 = vector.broadcast %cst_29 : f32 to vector<128x128xf32>
    %101 = arith.mulf %100, %97 : vector<128x128xf32>
    %102 = arith.select %99, %97, %101 : vector<128x128xi1>, vector<128x128xf32>
    %c1_i32_30 = arith.constant 1 : i32
    %103 = tpu.dynamic_rotate %102 by %c1_i32_30 dim 0 : vector<128x128xf32>, i32 -> vector<128x128xf32>
    %104 = vector.shape_cast %35 : vector<128x1xi1> to vector<128x1xi1>
    %105 = vector.broadcast %104 : vector<128x1xi1> to vector<128x128xi1>
    %106 = arith.select %105, %102, %103 : vector<128x128xi1>, vector<128x128xf32>
    %c127_i32_31 = arith.constant 127 : i32
    %107 = tpu.dynamic_rotate %102 by %c127_i32_31 dim 0 : vector<128x128xf32>, i32 -> vector<128x128xf32>
    %108 = vector.shape_cast %37 : vector<128x1xi1> to vector<128x1xi1>
    %109 = vector.broadcast %108 : vector<128x1xi1> to vector<128x128xi1>
    %110 = arith.select %109, %102, %107 : vector<128x128xi1>, vector<128x128xf32>
    %c8_i32_32 = arith.constant 8 : i32
    %111 = tpu.dynamic_rotate %106 by %c8_i32_32 dim 0 : vector<128x128xf32>, i32 -> vector<128x128xf32>
    %112 = vector.shape_cast %39 : vector<128x1xi1> to vector<128x1xi1>
    %113 = vector.broadcast %112 : vector<128x1xi1> to vector<128x128xi1>
    %114 = arith.select %113, %106, %111 : vector<128x128xi1>, vector<128x128xf32>
    %c8_i32_33 = arith.constant 8 : i32
    %115 = tpu.dynamic_rotate %102 by %c8_i32_33 dim 0 : vector<128x128xf32>, i32 -> vector<128x128xf32>
    %116 = vector.shape_cast %39 : vector<128x1xi1> to vector<128x1xi1>
    %117 = vector.broadcast %116 : vector<128x1xi1> to vector<128x128xi1>
    %118 = arith.select %117, %102, %115 : vector<128x128xi1>, vector<128x128xf32>
    %c8_i32_34 = arith.constant 8 : i32
    %119 = tpu.dynamic_rotate %110 by %c8_i32_34 dim 0 : vector<128x128xf32>, i32 -> vector<128x128xf32>
    %120 = vector.shape_cast %39 : vector<128x1xi1> to vector<128x1xi1>
    %121 = vector.broadcast %120 : vector<128x1xi1> to vector<128x128xi1>
    %122 = arith.select %121, %110, %119 : vector<128x128xi1>, vector<128x128xf32>
    %c120_i32_35 = arith.constant 120 : i32
    %123 = tpu.dynamic_rotate %106 by %c120_i32_35 dim 0 : vector<128x128xf32>, i32 -> vector<128x128xf32>
    %124 = vector.shape_cast %41 : vector<128x1xi1> to vector<128x1xi1>
    %125 = vector.broadcast %124 : vector<128x1xi1> to vector<128x128xi1>
    %126 = arith.select %125, %106, %123 : vector<128x128xi1>, vector<128x128xf32>
    %c120_i32_36 = arith.constant 120 : i32
    %127 = tpu.dynamic_rotate %102 by %c120_i32_36 dim 0 : vector<128x128xf32>, i32 -> vector<128x128xf32>
    %128 = vector.shape_cast %41 : vector<128x1xi1> to vector<128x1xi1>
    %129 = vector.broadcast %128 : vector<128x1xi1> to vector<128x128xi1>
    %130 = arith.select %129, %102, %127 : vector<128x128xi1>, vector<128x128xf32>
    %c120_i32_37 = arith.constant 120 : i32
    %131 = tpu.dynamic_rotate %110 by %c120_i32_37 dim 0 : vector<128x128xf32>, i32 -> vector<128x128xf32>
    %132 = vector.shape_cast %41 : vector<128x1xi1> to vector<128x1xi1>
    %133 = vector.broadcast %132 : vector<128x1xi1> to vector<128x128xi1>
    %134 = arith.select %133, %110, %131 : vector<128x128xi1>, vector<128x128xf32>
    %135 = tpu.concatenate %114, %118, %122, %106, %102, %110, %126, %130, %134 in 1 : vector<128x128xf32>, vector<128x128xf32>, vector<128x128xf32>, vector<128x128xf32>, vector<128x128xf32>, vector<128x128xf32>, vector<128x128xf32>, vector<128x128xf32>, vector<128x128xf32> -> vector<128x1152xf32>
    %c0_38 = arith.constant 0 : index
    %c0_39 = arith.constant 0 : index
    %136 = vector.load %arg4[%c0_38, %c0_39] : memref<1152x128xf32, #tpu.memory_space<vmem>>, vector<1152x128xf32>
    %cst_40 = arith.constant dense<0.000000e+00> : vector<128x128xf32>
    %137 = tpu.matmul %135, %136, %cst_40 {dimension_numbers = #tpu.dot_dimension_numbers<[1], [0], [0], [1], [0, 0, 1, 1], [], []>} : vector<128x1152xf32>, vector<1152x128xf32>, vector<128x128xf32> -> vector<128x128xf32>
    %c0_41 = arith.constant 0 : index
    %c0_42 = arith.constant 0 : index
    %138 = vector.load %arg5[%c0_41, %c0_42] : memref<1x128xf32, #tpu.memory_space<vmem>>, vector<1x128xf32>
    %c0_43 = arith.constant 0 : index
    %c0_44 = arith.constant 0 : index
    %139 = vector.load %arg6[%c0_43, %c0_44] : memref<1x128xf32, #tpu.memory_space<vmem>>, vector<1x128xf32>
    %cst_45 = arith.constant dense<0.000000e+00> : vector<128xf32>
    %140 = vector.multi_reduction <add>, %137, %cst_45 [0] : vector<128x128xf32> to vector<128xf32>
    %141 = vector.shape_cast %140 : vector<128xf32> to vector<1x128xf32>
    %cst_46 = arith.constant 1.280000e+02 : f32
    %142 = vector.broadcast %cst_46 : f32 to vector<1x128xf32>
    %143 = arith.divf %141, %142 : vector<1x128xf32>
    %144 = vector.broadcast %143 : vector<1x128xf32> to vector<128x128xf32>
    %145 = arith.subf %137, %144 : vector<128x128xf32>
    %146 = arith.mulf %145, %145 : vector<128x128xf32>
    %cst_47 = arith.constant dense<0.000000e+00> : vector<128xf32>
    %147 = vector.multi_reduction <add>, %146, %cst_47 [0] : vector<128x128xf32> to vector<128xf32>
    %148 = vector.shape_cast %147 : vector<128xf32> to vector<1x128xf32>
    %cst_48 = arith.constant 1.280000e+02 : f32
    %149 = vector.broadcast %cst_48 : f32 to vector<1x128xf32>
    %150 = arith.divf %148, %149 : vector<1x128xf32>
    %cst_49 = arith.constant 9.99999974E-6 : f32
    %151 = vector.broadcast %cst_49 : f32 to vector<1x128xf32>
    %152 = arith.addf %150, %151 : vector<1x128xf32>
    %153 = math.rsqrt %152 : vector<1x128xf32>
    %154 = arith.mulf %138, %153 : vector<1x128xf32>
    %155 = vector.broadcast %154 : vector<1x128xf32> to vector<128x128xf32>
    %156 = arith.mulf %145, %155 : vector<128x128xf32>
    %157 = vector.broadcast %139 : vector<1x128xf32> to vector<128x128xf32>
    %158 = arith.addf %156, %157 : vector<128x128xf32>
    %159 = arith.addf %0, %158 : vector<128x128xf32>
    %c0_50 = arith.constant 0 : index
    %c0_51 = arith.constant 0 : index
    %160 = vector.load %arg7[%c0_50, %c0_51] : memref<128x128xf32, #tpu.memory_space<vmem>>, vector<128x128xf32>
    tpu.vector_store %arg7[%c0_50, %c0_51], %159 {strides = array<i32>} : memref<128x128xf32, #tpu.memory_space<vmem>>, vector<128x128xf32>,
    return
  }
}

</mosaic_0001>

<llo_original>
// kernel: mygblock_forward.1
$region0: #{mygblock_forward.1}
  #allocation0 [shape = 'u32[]', space=smem, size = 0x4, offset = 0x4, fixed_abs, tag = 'smem constant byte address 0x4 - core index']
  #allocation1 [shape = 'u32[144,128]{1,0:T(1,128)}', space=vmem, size = 0x12000, scoped, tag = 'internal scratch']
  %s0 = inlined_call_operand.hbm [shape: f32[128,128], index: 0, kind: input, shape index: {}]
  %s1 = inlined_call_operand.hbm [shape: f32[1152,128], index: 1, kind: input, shape index: {}]
  %s2 = inlined_call_operand.vmem [shape: f32[1,128], index: 2, kind: input, shape index: {}]
  %s3 = inlined_call_operand.vmem [shape: f32[1,128], index: 3, kind: input, shape index: {}]
  %s4 = inlined_call_operand.hbm [shape: f32[1152,128], index: 4, kind: input, shape index: {}]
  %s5 = inlined_call_operand.vmem [shape: f32[1,128], index: 5, kind: input, shape index: {}]
  %s6 = inlined_call_operand.vmem [shape: f32[1,128], index: 6, kind: input, shape index: {}]
  %s7 = inlined_call_operand.hbm [shape: f32[128,128], index: 7, kind: output, shape index: {}]
  %s8 = sld [smem:[#allocation0]]
  $region50: #{mygblock_forward.1} parent=0
    _
  %s10 = ssub.s32 1, %s8
  %s11 = scalar_select 0, %s10, %s8
  $region1: #{mygblock_forward.1} parent=0
    #allocation2 [shape = 'u8[65536]{0}', space=vmem, size = 0x10000, scoped, tag = 'input window, operand 0, single buffered']
    #allocation3 [shape = 's32[1]{0}', space=sflag, size = 0x4, scoped, tag = 'scoped memory for mygblock_forward.1']
    #allocation4 [shape = 's32[1]{0}', space=sflag, size = 0x4, scoped, tag = 'scoped memory for mygblock_forward.1']
    #allocation5 [shape = 'u8[589824]{0}', space=vmem, size = 0x90000, scoped, tag = 'input window, operand 1, single buffered']
    #allocation6 [shape = 's32[1]{0}', space=sflag, size = 0x4, scoped, tag = 'scoped memory for mygblock_forward.1']
    #allocation7 [shape = 'u8[589824]{0}', space=vmem, size = 0x90000, scoped, tag = 'input window, operand 4, single buffered']
    #allocation8 [shape = 'u8[65536]{0}', space=vmem, size = 0x10000, scoped, tag = 'output window, operand 0, single buffered']
    %12 = vsyncpa [#allocation3], 0
    %13 = vsyncpa [#allocation6], 0
    %14 = vsyncpa [#allocation4], 0
    // Predicated region
    $region2: #{mygblock_forward.1} parent=1 // pred_check
      _
    $region3: #{mygblock_forward.1} parent=1 // pred_check_branch
      %16 = sbr.rel (0) target = $region5
    $region4: #{mygblock_forward.1} parent=1 // pred_region
      %s18 = ssub.s32 2048, 2048
      %19 = vsyncadd [#allocation3], %s18
      %s20 = sshll.u32 [#allocation2], 4
      %s21 = int_to_ptr.vmem [resolvable:$true] %s20
      %26 = dma.hbm_to_vmem [thread:$0]  %s0, 2048, %s21, [#allocation3], 128, 128, 8
    $region5: #{mygblock_forward.1} parent=1 // pred_fallthru
      _
    // Predicated region
    $region6: #{mygblock_forward.1} parent=1 // pred_check
      _
    $region7: #{mygblock_forward.1} parent=1 // pred_check_branch
      %28 = sbr.rel (0) target = $region9
    $region8: #{mygblock_forward.1} parent=1 // pred_region
      %s30 = ssub.s32 18432, 18432
      %31 = vsyncadd [#allocation6], %s30
      %s32 = sshll.u32 [#allocation5], 4
      %s33 = int_to_ptr.vmem [resolvable:$true] %s32
      %38 = dma.hbm_to_vmem [thread:$0]  %s1, 18432, %s33, [#allocation6], 128, 128, 8
    $region9: #{mygblock_forward.1} parent=1 // pred_fallthru
      _
    // Predicated region
    $region10: #{mygblock_forward.1} parent=1 // pred_check
      _
    $region11: #{mygblock_forward.1} parent=1 // pred_check_branch
      %40 = sbr.rel (0) target = $region13
    $region12: #{mygblock_forward.1} parent=1 // pred_region
      _
    $region13: #{mygblock_forward.1} parent=1 // pred_fallthru
      _
    // Predicated region
    $region14: #{mygblock_forward.1} parent=1 // pred_check
      _
    $region15: #{mygblock_forward.1} parent=1 // pred_check_branch
      %42 = sbr.rel (0) target = $region17
    $region16: #{mygblock_forward.1} parent=1 // pred_region
      _
    $region17: #{mygblock_forward.1} parent=1 // pred_fallthru
      _
    // Predicated region
    $region18: #{mygblock_forward.1} parent=1 // pred_check
      _
    $region19: #{mygblock_forward.1} parent=1 // pred_check_branch
      %44 = sbr.rel (0) target = $region21
    $region20: #{mygblock_forward.1} parent=1 // pred_region
      %s46 = ssub.s32 18432, 18432
      %47 = vsyncadd [#allocation6], %s46
      %s48 = sshll.u32 [#allocation7], 4
      %s49 = int_to_ptr.vmem [resolvable:$true] %s48
      %54 = dma.hbm_to_vmem [thread:$0]  %s4, 18432, %s49, [#allocation6], 128, 128, 8
    $region21: #{mygblock_forward.1} parent=1 // pred_fallthru
      _
    // Predicated region
    $region22: #{mygblock_forward.1} parent=1 // pred_check
      _
    $region23: #{mygblock_forward.1} parent=1 // pred_check_branch
      %56 = sbr.rel (0) target = $region25
    $region24: #{mygblock_forward.1} parent=1 // pred_region
      _
    $region25: #{mygblock_forward.1} parent=1 // pred_fallthru
      _
    // Predicated region
    $region26: #{mygblock_forward.1} parent=1 // pred_check
      _
    $region27: #{mygblock_forward.1} parent=1 // pred_check_branch
      %58 = sbr.rel (0) target = $region29
    $region28: #{mygblock_forward.1} parent=1 // pred_region
      _
    $region29: #{mygblock_forward.1} parent=1 // pred_fallthru
      _
    // Predicated region
    $region30: #{mygblock_forward.1} parent=1 // pred_check
      _
    $region31: #{mygblock_forward.1} parent=1 // pred_check_branch
      %60 = sbr.rel (0) target = $region33
    $region32: #{mygblock_forward.1} parent=1 // pred_region
      %61 = dma.done [#allocation3], 2048
    $region33: #{mygblock_forward.1} parent=1 // pred_fallthru
      _
    // Predicated region
    $region34: #{mygblock_forward.1} parent=1 // pred_check
      _
    $region35: #{mygblock_forward.1} parent=1 // pred_check_branch
      %63 = sbr.rel (0) target = $region37
    $region36: #{mygblock_forward.1} parent=1 // pred_region
      %64 = dma.done [#allocation6], 18432
    $region37: #{mygblock_forward.1} parent=1 // pred_fallthru
      _
    // Predicated region
    $region38: #{mygblock_forward.1} parent=1 // pred_check
      _
    $region39: #{mygblock_forward.1} parent=1 // pred_check_branch
      %66 = sbr.rel (0) target = $region41
    $region40: #{mygblock_forward.1} parent=1 // pred_region
      %67 = dma.done [#allocation6], 18432
    $region41: #{mygblock_forward.1} parent=1 // pred_fallthru
      _
    %v68 = vld [vmem:[#allocation2] sm:$0xff]
    %v69 = vld [vmem:[#allocation2 + $0x8] sm:$0xff]
    %v70 = vld [vmem:[#allocation2 + $0x10] sm:$0xff]
    %v71 = vld [vmem:[#allocation2 + $0x18] sm:$0xff]
    %v72 = vld [vmem:[#allocation2 + $0x20] sm:$0xff]
    %v73 = vld [vmem:[#allocation2 + $0x28] sm:$0xff]
    %v74 = vld [vmem:[#allocation2 + $0x30] sm:$0xff]
    %v75 = vld [vmem:[#allocation2 + $0x38] sm:$0xff]
    %v76 = vld [vmem:[#allocation2 + $0x40] sm:$0xff]
    %v77 = vld [vmem:[#allocation2 + $0x48] sm:$0xff]
    %v78 = vld [vmem:[#allocation2 + $0x50] sm:$0xff]
    %v79 = vld [vmem:[#allocation2 + $0x58] sm:$0xff]
    %v80 = vld [vmem:[#allocation2 + $0x60] sm:$0xff]
    %v81 = vld [vmem:[#allocation2 + $0x68] sm:$0xff]
    %v82 = vld [vmem:[#allocation2 + $0x70] sm:$0xff]
    %v83 = vld [vmem:[#allocation2 + $0x78] sm:$0xff]
    %v84 = vlaneseq
    %v85 = vshrl.u32 %v84, 7
    %v86 = vadd.s32 %v85, 8
    %v87 = vadd.s32 %v85, 16
    %v88 = vadd.s32 %v85, 24
    %v89 = vadd.s32 %v85, 32
    %v90 = vadd.s32 %v85, 40
    %v91 = vadd.s32 %v85, 48
    %v92 = vadd.s32 %v85, 56
    %v93 = vadd.s32 %v85, 64
    %v94 = vadd.s32 %v85, 72
    %v95 = vadd.s32 %v85, 80
    %v96 = vadd.s32 %v85, 88
    %v97 = vadd.s32 %v85, 96
    %v98 = vadd.s32 %v85, 104
    %v99 = vadd.s32 %v85, 112
    %v100 = vadd.s32 %v85, 120
    %vm101 = vcmp.lt.s32.totalorder %v85, 0
    %v102 = vsub.s32 0, %v85
    %v103 = vsel %vm101, %v102, %v85
    %v104 = vshrl.u32 %v103, 3
    %v105 = vand.u32 %v103, 7
    %v106 = vsub.s32 0, %v105
    %v107 = vsel %vm101, %v106, %v105
    %vm108 = vcmp.lt.s32.totalorder %v86, 0
    %v109 = vsub.s32 0, %v86
    %v110 = vsel %vm108, %v109, %v86
    %v111 = vshrl.u32 %v110, 3
    %v112 = vand.u32 %v110, 7
    %v113 = vsub.s32 0, %v112
    %v114 = vsel %vm108, %v113, %v112
    %vm115 = vcmp.lt.s32.totalorder %v87, 0
    %v116 = vsub.s32 0, %v87
    %v117 = vsel %vm115, %v116, %v87
    %v118 = vshrl.u32 %v117, 3
    %v119 = vand.u32 %v117, 7
    %v120 = vsub.s32 0, %v119
    %v121 = vsel %vm115, %v120, %v119
    %vm122 = vcmp.lt.s32.totalorder %v88, 0
    %v123 = vsub.s32 0, %v88
    %v124 = vsel %vm122, %v123, %v88
    %v125 = vshrl.u32 %v124, 3
    %v126 = vand.u32 %v124, 7
    %v127 = vsub.s32 0, %v126
    %v128 = vsel %vm122, %v127, %v126
    %vm129 = vcmp.lt.s32.totalorder %v89, 0
    %v130 = vsub.s32 0, %v89
    %v131 = vsel %vm129, %v130, %v89
    %v132 = vshrl.u32 %v131, 3
    %v133 = vand.u32 %v131, 7
    %v134 = vsub.s32 0, %v133
    %v135 = vsel %vm129, %v134, %v133
    %vm136 = vcmp.lt.s32.totalorder %v90, 0
    %v137 = vsub.s32 0, %v90
    %v138 = vsel %vm136, %v137, %v90
    %v139 = vshrl.u32 %v138, 3
    %v140 = vand.u32 %v138, 7
    %v141 = vsub.s32 0, %v140
    %v142 = vsel %vm136, %v141, %v140
    %vm143 = vcmp.lt.s32.totalorder %v91, 0
    %v144 = vsub.s32 0, %v91
    %v145 = vsel %vm143, %v144, %v91
    %v146 = vshrl.u32 %v145, 3
    %v147 = vand.u32 %v145, 7
    %v148 = vsub.s32 0, %v147
    %v149 = vsel %vm143, %v148, %v147
    %vm150 = vcmp.lt.s32.totalorder %v92, 0
    %v151 = vsub.s32 0, %v92
    %v152 = vsel %vm150, %v151, %v92
    %v153 = vshrl.u32 %v152, 3
    %v154 = vand.u32 %v152, 7
    %v155 = vsub.s32 0, %v154
    %v156 = vsel %vm150, %v155, %v154
    %vm157 = vcmp.lt.s32.totalorder %v93, 0
    %v158 = vsub.s32 0, %v93
    %v159 = vsel %vm157, %v158, %v93
    %v160 = vshrl.u32 %v159, 3
    %v161 = vand.u32 %v159, 7
    %v162 = vsub.s32 0, %v161
    %v163 = vsel %vm157, %v162, %v161
    %vm164 = vcmp.lt.s32.totalorder %v94, 0
    %v165 = vsub.s32 0, %v94
    %v166 = vsel %vm164, %v165, %v94
    %v167 = vshrl.u32 %v166, 3
    %v168 = vand.u32 %v166, 7
    %v169 = vsub.s32 0, %v168
    %v170 = vsel %vm164, %v169, %v168
    %vm171 = vcmp.lt.s32.totalorder %v95, 0
    %v172 = vsub.s32 0, %v95
    %v173 = vsel %vm171, %v172, %v95
    %v174 = vshrl.u32 %v173, 3
    %v175 = vand.u32 %v173, 7
    %v176 = vsub.s32 0, %v175
    %v177 = vsel %vm171, %v176, %v175
    %vm178 = vcmp.lt.s32.totalorder %v96, 0
    %v179 = vsub.s32 0, %v96
    %v180 = vsel %vm178, %v179, %v96
    %v181 = vshrl.u32 %v180, 3
    %v182 = vand.u32 %v180, 7
    %v183 = vsub.s32 0, %v182
    %v184 = vsel %vm178, %v183, %v182
    %vm185 = vcmp.lt.s32.totalorder %v97, 0
    %v186 = vsub.s32 0, %v97
    %v187 = vsel %vm185, %v186, %v97
    %v188 = vshrl.u32 %v187, 3
    %v189 = vand.u32 %v187, 7
    %v190 = vsub.s32 0, %v189
    %v191 = vsel %vm185, %v190, %v189
    %vm192 = vcmp.lt.s32.totalorder %v98, 0
    %v193 = vsub.s32 0, %v98
    %v194 = vsel %vm192, %v193, %v98
    %v195 = vshrl.u32 %v194, 3
    %v196 = vand.u32 %v194, 7
    %v197 = vsub.s32 0, %v196
    %v198 = vsel %vm192, %v197, %v196
    %vm199 = vcmp.lt.s32.totalorder %v99, 0
    %v200 = vsub.s32 0, %v99
    %v201 = vsel %vm199, %v200, %v99
    %v202 = vshrl.u32 %v201, 3
    %v203 = vand.u32 %v201, 7
    %v204 = vsub.s32 0, %v203
    %v205 = vsel %vm199, %v204, %v203
    %vm206 = vcmp.lt.s32.totalorder %v100, 0
    %v207 = vsub.s32 0, %v100
    %v208 = vsel %vm206, %v207, %v100
    %v209 = vshrl.u32 %v208, 3
    %v210 = vand.u32 %v208, 7
    %v211 = vsub.s32 0, %v210
    %v212 = vsel %vm206, %v211, %v210
    %vm213 = vcmp.ne.s32.totalorder %v107, 0
    %vm214 = vcmp.ne.s32.totalorder %v114, 0
    %vm215 = vcmp.ne.s32.totalorder %v121, 0
    %vm216 = vcmp.ne.s32.totalorder %v128, 0
    %vm217 = vcmp.ne.s32.totalorder %v135, 0
    %vm218 = vcmp.ne.s32.totalorder %v142, 0
    %vm219 = vcmp.ne.s32.totalorder %v149, 0
    %vm220 = vcmp.ne.s32.totalorder %v156, 0
    %vm221 = vcmp.ne.s32.totalorder %v163, 0
    %vm222 = vcmp.ne.s32.totalorder %v170, 0
    %vm223 = vcmp.ne.s32.totalorder %v177, 0
    %vm224 = vcmp.ne.s32.totalorder %v184, 0
    %vm225 = vcmp.ne.s32.totalorder %v191, 0
    %vm226 = vcmp.ne.s32.totalorder %v198, 0
    %vm227 = vcmp.ne.s32.totalorder %v205, 0
    %vm228 = vcmp.ne.s32.totalorder %v212, 0
    %vm229 = vcmp.lt.s32.totalorder %v107, 0
    %vm230 = vcmp.lt.s32.totalorder %v114, 0
    %vm231 = vcmp.lt.s32.totalorder %v121, 0
    %vm232 = vcmp.lt.s32.totalorder %v128, 0
    %vm233 = vcmp.lt.s32.totalorder %v135, 0
    %vm234 = vcmp.lt.s32.totalorder %v142, 0
    %vm235 = vcmp.lt.s32.totalorder %v149, 0
    %vm236 = vcmp.lt.s32.totalorder %v156, 0
    %vm237 = vcmp.lt.s32.totalorder %v163, 0
    %vm238 = vcmp.lt.s32.totalorder %v170, 0
    %vm239 = vcmp.lt.s32.totalorder %v177, 0
    %vm240 = vcmp.lt.s32.totalorder %v184, 0
    %vm241 = vcmp.lt.s32.totalorder %v191, 0
    %vm242 = vcmp.lt.s32.totalorder %v198, 0
    %vm243 = vcmp.lt.s32.totalorder %v205, 0
    %vm244 = vcmp.lt.s32.totalorder %v212, 0
    %vm245 = vmand %vm229, %vm213
    %vm246 = vmand %vm230, %vm214
    %vm247 = vmand %vm231, %vm215
    %vm248 = vmand %vm232, %vm216
    %vm249 = vmand %vm233, %vm217
    %vm250 = vmand %vm234, %vm218
    %vm251 = vmand %vm235, %vm219
    %vm252 = vmand %vm236, %vm220
    %vm253 = vmand %vm237, %vm221
    %vm254 = vmand %vm238, %vm222
    %vm255 = vmand %vm239, %vm223
    %vm256 = vmand %vm240, %vm224
    %vm257 = vmand %vm241, %vm225
    %vm258 = vmand %vm242, %vm226
    %vm259 = vmand %vm243, %vm227
    %vm260 = vmand %vm244, %vm228
    %v261 = vadd.s32 %v107, 8
    %v262 = vadd.s32 %v114, 8
    %v263 = vadd.s32 %v121, 8
    %v264 = vadd.s32 %v128, 8
    %v265 = vadd.s32 %v135, 8
    %v266 = vadd.s32 %v142, 8
    %v267 = vadd.s32 %v149, 8
    %v268 = vadd.s32 %v156, 8
    %v269 = vadd.s32 %v163, 8
    %v270 = vadd.s32 %v170, 8
    %v271 = vadd.s32 %v177, 8
    %v272 = vadd.s32 %v184, 8
    %v273 = vadd.s32 %v191, 8
    %v274 = vadd.s32 %v198, 8
    %v275 = vadd.s32 %v205, 8
    %v276 = vadd.s32 %v212, 8
    %v277 = vsel %vm245, %v261, %v107
    %v278 = vsel %vm246, %v262, %v114
    %v279 = vsel %vm247, %v263, %v121
    %v280 = vsel %vm248, %v264, %v128
    %v281 = vsel %vm249, %v265, %v135
    %v282 = vsel %vm250, %v266, %v142
    %v283 = vsel %vm251, %v267, %v149
    %v284 = vsel %vm252, %v268, %v156
    %v285 = vsel %vm253, %v269, %v163
    %v286 = vsel %vm254, %v270, %v170
    %v287 = vsel %vm255, %v271, %v177
    %v288 = vsel %vm256, %v272, %v184
    %v289 = vsel %vm257, %v273, %v191
    %v290 = vsel %vm258, %v274, %v198
    %v291 = vsel %vm259, %v275, %v205
    %v292 = vsel %vm260, %v276, %v212
    %vm293 = vcmp.lt.s32.totalorder %v85, 0
    %v294 = vsub.s32 0, %v85
    %v295 = vsel %vm293, %v294, %v85
    %v296 = vshrl.u32 %v295, 6
    %v297 = vand.u32 %v295, 63
    %v298 = vsub.s32 0, %v297
    %v299 = vsel %vm293, %v298, %v297
    %vm300 = vcmp.lt.s32.totalorder %v86, 0
    %v301 = vsub.s32 0, %v86
    %v302 = vsel %vm300, %v301, %v86
    %v303 = vshrl.u32 %v302, 6
    %v304 = vand.u32 %v302, 63
    %v305 = vsub.s32 0, %v304
    %v306 = vsel %vm300, %v305, %v304
    %vm307 = vcmp.lt.s32.totalorder %v87, 0
    %v308 = vsub.s32 0, %v87
    %v309 = vsel %vm307, %v308, %v87
    %v310 = vshrl.u32 %v309, 6
    %v311 = vand.u32 %v309, 63
    %v312 = vsub.s32 0, %v311
    %v313 = vsel %vm307, %v312, %v311
    %vm314 = vcmp.lt.s32.totalorder %v88, 0
    %v315 = vsub.s32 0, %v88
    %v316 = vsel %vm314, %v315, %v88
    %v317 = vshrl.u32 %v316, 6
    %v318 = vand.u32 %v316, 63
    %v319 = vsub.s32 0, %v318
    %v320 = vsel %vm314, %v319, %v318
    %vm321 = vcmp.lt.s32.totalorder %v89, 0
    %v322 = vsub.s32 0, %v89
    %v323 = vsel %vm321, %v322, %v89
    %v324 = vshrl.u32 %v323, 6
    %v325 = vand.u32 %v323, 63
    %v326 = vsub.s32 0, %v325
    %v327 = vsel %vm321, %v326, %v325
    %vm328 = vcmp.lt.s32.totalorder %v90, 0
    %v329 = vsub.s32 0, %v90
    %v330 = vsel %vm328, %v329, %v90
    %v331 = vshrl.u32 %v330, 6
    %v332 = vand.u32 %v330, 63
    %v333 = vsub.s32 0, %v332
    %v334 = vsel %vm328, %v333, %v332
    %vm335 = vcmp.lt.s32.totalorder %v91, 0
    %v336 = vsub.s32 0, %v91
    %v337 = vsel %vm335, %v336, %v91
    %v338 = vshrl.u32 %v337, 6
    %v339 = vand.u32 %v337, 63
    %v340 = vsub.s32 0, %v339
    %v341 = vsel %vm335, %v340, %v339
    %vm342 = vcmp.lt.s32.totalorder %v92, 0
    %v343 = vsub.s32 0, %v92
    %v344 = vsel %vm342, %v343, %v92
    %v345 = vshrl.u32 %v344, 6
    %v346 = vand.u32 %v344, 63
    %v347 = vsub.s32 0, %v346
    %v348 = vsel %vm342, %v347, %v346
    %vm349 = vcmp.lt.s32.totalorder %v93, 0
    %v350 = vsub.s32 0, %v93
    %v351 = vsel %vm349, %v350, %v93
    %v352 = vshrl.u32 %v351, 6
    %v353 = vand.u32 %v351, 63
    %v354 = vsub.s32 0, %v353
    %v355 = vsel %vm349, %v354, %v353
    %vm356 = vcmp.lt.s32.totalorder %v94, 0
    %v357 = vsub.s32 0, %v94
    %v358 = vsel %vm356, %v357, %v94
    %v359 = vshrl.u32 %v358, 6
    %v360 = vand.u32 %v358, 63
    %v361 = vsub.s32 0, %v360
    %v362 = vsel %vm356, %v361, %v360
    %vm363 = vcmp.lt.s32.totalorder %v95, 0
    %v364 = vsub.s32 0, %v95
    %v365 = vsel %vm363, %v364, %v95
    %v366 = vshrl.u32 %v365, 6
    %v367 = vand.u32 %v365, 63
    %v368 = vsub.s32 0, %v367
    %v369 = vsel %vm363, %v368, %v367
    %vm370 = vcmp.lt.s32.totalorder %v96, 0
    %v371 = vsub.s32 0, %v96
    %v372 = vsel %vm370, %v371, %v96
    %v373 = vshrl.u32 %v372, 6
    %v374 = vand.u32 %v372, 63
    %v375 = vsub.s32 0, %v374
    %v376 = vsel %vm370, %v375, %v374
    %vm377 = vcmp.lt.s32.totalorder %v97, 0
    %v378 = vsub.s32 0, %v97
    %v379 = vsel %vm377, %v378, %v97
    %v380 = vshrl.u32 %v379, 6
    %v381 = vand.u32 %v379, 63
    %v382 = vsub.s32 0, %v381
    %v383 = vsel %vm377, %v382, %v381
    %vm384 = vcmp.lt.s32.totalorder %v98, 0
    %v385 = vsub.s32 0, %v98
    %v386 = vsel %vm384, %v385, %v98
    %v387 = vshrl.u32 %v386, 6
    %v388 = vand.u32 %v386, 63
    %v389 = vsub.s32 0, %v388
    %v390 = vsel %vm384, %v389, %v388
    %vm391 = vcmp.lt.s32.totalorder %v99, 0
    %v392 = vsub.s32 0, %v99
    %v393 = vsel %vm391, %v392, %v99
    %v394 = vshrl.u32 %v393, 6
    %v395 = vand.u32 %v393, 63
    %v396 = vsub.s32 0, %v395
    %v397 = vsel %vm391, %v396, %v395
    %vm398 = vcmp.lt.s32.totalorder %v100, 0
    %v399 = vsub.s32 0, %v100
    %v400 = vsel %vm398, %v399, %v100
    %v401 = vshrl.u32 %v400, 6
    %v402 = vand.u32 %v400, 63
    %v403 = vsub.s32 0, %v402
    %v404 = vsel %vm398, %v403, %v402
    %vm405 = vcmp.ne.s32.totalorder %v299, 0
    %vm406 = vcmp.ne.s32.totalorder %v306, 0
    %vm407 = vcmp.ne.s32.totalorder %v313, 0
    %vm408 = vcmp.ne.s32.totalorder %v320, 0
    %vm409 = vcmp.ne.s32.totalorder %v327, 0
    %vm410 = vcmp.ne.s32.totalorder %v334, 0
    %vm411 = vcmp.ne.s32.totalorder %v341, 0
    %vm412 = vcmp.ne.s32.totalorder %v348, 0
    %vm413 = vcmp.ne.s32.totalorder %v355, 0
    %vm414 = vcmp.ne.s32.totalorder %v362, 0
    %vm415 = vcmp.ne.s32.totalorder %v369, 0
    %vm416 = vcmp.ne.s32.totalorder %v376, 0
    %vm417 = vcmp.ne.s32.totalorder %v383, 0
    %vm418 = vcmp.ne.s32.totalorder %v390, 0
    %vm419 = vcmp.ne.s32.totalorder %v397, 0
    %vm420 = vcmp.ne.s32.totalorder %v404, 0
    %vm421 = vcmp.lt.s32.totalorder %v299, 0
    %vm422 = vcmp.lt.s32.totalorder %v306, 0
    %vm423 = vcmp.lt.s32.totalorder %v313, 0
    %vm424 = vcmp.lt.s32.totalorder %v320, 0
    %vm425 = vcmp.lt.s32.totalorder %v327, 0
    %vm426 = vcmp.lt.s32.totalorder %v334, 0
    %vm427 = vcmp.lt.s32.totalorder %v341, 0
    %vm428 = vcmp.lt.s32.totalorder %v348, 0
    %vm429 = vcmp.lt.s32.totalorder %v355, 0
    %vm430 = vcmp.lt.s32.totalorder %v362, 0
    %vm431 = vcmp.lt.s32.totalorder %v369, 0
    %vm432 = vcmp.lt.s32.totalorder %v376, 0
    %vm433 = vcmp.lt.s32.totalorder %v383, 0
    %vm434 = vcmp.lt.s32.totalorder %v390, 0
    %vm435 = vcmp.lt.s32.totalorder %v397, 0
    %vm436 = vcmp.lt.s32.totalorder %v404, 0
    %vm437 = vmand %vm421, %vm405
    %vm438 = vmand %vm422, %vm406
    %vm439 = vmand %vm423, %vm407
    %vm440 = vmand %vm424, %vm408
    %vm441 = vmand %vm425, %vm409
    %vm442 = vmand %vm426, %vm410
    %vm443 = vmand %vm427, %vm411
    %vm444 = vmand %vm428, %vm412
    %vm445 = vmand %vm429, %vm413
    %vm446 = vmand %vm430, %vm414
    %vm447 = vmand %vm431, %vm415
    %vm448 = vmand %vm432, %vm416
    %vm449 = vmand %vm433, %vm417
    %vm450 = vmand %vm434, %vm418
    %vm451 = vmand %vm435, %vm419
    %vm452 = vmand %vm436, %vm420
    %v453 = vadd.s32 %v299, 64
    %v454 = vadd.s32 %v306, 64
    %v455 = vadd.s32 %v313, 64
    %v456 = vadd.s32 %v320, 64
    %v457 = vadd.s32 %v327, 64
    %v458 = vadd.s32 %v334, 64
    %v459 = vadd.s32 %v341, 64
    %v460 = vadd.s32 %v348, 64
    %v461 = vadd.s32 %v355, 64
    %v462 = vadd.s32 %v362, 64
    %v463 = vadd.s32 %v369, 64
    %v464 = vadd.s32 %v376, 64
    %v465 = vadd.s32 %v383, 64
    %v466 = vadd.s32 %v390, 64
    %v467 = vadd.s32 %v397, 64
    %v468 = vadd.s32 %v404, 64
    %v469 = vsel %vm437, %v453, %v299
    %v470 = vsel %vm438, %v454, %v306
    %v471 = vsel %vm439, %v455, %v313
    %v472 = vsel %vm440, %v456, %v320
    %v473 = vsel %vm441, %v457, %v327
    %v474 = vsel %vm442, %v458, %v334
    %v475 = vsel %vm443, %v459, %v341
    %v476 = vsel %vm444, %v460, %v348
    %v477 = vsel %vm445, %v461, %v355
    %v478 = vsel %vm446, %v462, %v362
    %v479 = vsel %vm447, %v463, %v369
    %v480 = vsel %vm448, %v464, %v376
    %v481 = vsel %vm449, %v465, %v383
    %v482 = vsel %vm450, %v466, %v390
    %v483 = vsel %vm451, %v467, %v397
    %v484 = vsel %vm452, %v468, %v404
    %vm485 = vcmp.eq.s32.totalorder %v277, 0
    %vm486 = vcmp.eq.s32.totalorder %v278, 0
    %vm487 = vcmp.eq.s32.totalorder %v279, 0
    %vm488 = vcmp.eq.s32.totalorder %v280, 0
    %vm489 = vcmp.eq.s32.totalorder %v281, 0
    %vm490 = vcmp.eq.s32.totalorder %v282, 0
    %vm491 = vcmp.eq.s32.totalorder %v283, 0
    %vm492 = vcmp.eq.s32.totalorder %v284, 0
    %vm493 = vcmp.eq.s32.totalorder %v285, 0
    %vm494 = vcmp.eq.s32.totalorder %v286, 0
    %vm495 = vcmp.eq.s32.totalorder %v287, 0
    %vm496 = vcmp.eq.s32.totalorder %v288, 0
    %vm497 = vcmp.eq.s32.totalorder %v289, 0
    %vm498 = vcmp.eq.s32.totalorder %v290, 0
    %vm499 = vcmp.eq.s32.totalorder %v291, 0
    %vm500 = vcmp.eq.s32.totalorder %v292, 0
    %vm501 = vcmp.eq.s32.totalorder %v277, 7
    %vm502 = vcmp.eq.s32.totalorder %v278, 7
    %vm503 = vcmp.eq.s32.totalorder %v279, 7
    %vm504 = vcmp.eq.s32.totalorder %v280, 7
    %vm505 = vcmp.eq.s32.totalorder %v281, 7
    %vm506 = vcmp.eq.s32.totalorder %v282, 7
    %vm507 = vcmp.eq.s32.totalorder %v283, 7
    %vm508 = vcmp.eq.s32.totalorder %v284, 7
    %vm509 = vcmp.eq.s32.totalorder %v285, 7
    %vm510 = vcmp.eq.s32.totalorder %v286, 7
    %vm511 = vcmp.eq.s32.totalorder %v287, 7
    %vm512 = vcmp.eq.s32.totalorder %v288, 7
    %vm513 = vcmp.eq.s32.totalorder %v289, 7
    %vm514 = vcmp.eq.s32.totalorder %v290, 7
    %vm515 = vcmp.eq.s32.totalorder %v291, 7
    %vm516 = vcmp.eq.s32.totalorder %v292, 7
    %vm517 = vcmp.lt.s32.totalorder %v469, 8
    %vm518 = vcmp.lt.s32.totalorder %v470, 8
    %vm519 = vcmp.lt.s32.totalorder %v471, 8
    %vm520 = vcmp.lt.s32.totalorder %v472, 8
    %vm521 = vcmp.lt.s32.totalorder %v473, 8
    %vm522 = vcmp.lt.s32.totalorder %v474, 8
    %vm523 = vcmp.lt.s32.totalorder %v475, 8
    %vm524 = vcmp.lt.s32.totalorder %v476, 8
    %vm525 = vcmp.lt.s32.totalorder %v477, 8
    %vm526 = vcmp.lt.s32.totalorder %v478, 8
    %vm527 = vcmp.lt.s32.totalorder %v479, 8
    %vm528 = vcmp.lt.s32.totalorder %v480, 8
    %vm529 = vcmp.lt.s32.totalorder %v481, 8
    %vm530 = vcmp.lt.s32.totalorder %v482, 8
    %vm531 = vcmp.lt.s32.totalorder %v483, 8
    %vm532 = vcmp.lt.s32.totalorder %v484, 8
    %vm533 = vcmp.ge.s32.totalorder %v469, 56
    %vm534 = vcmp.ge.s32.totalorder %v470, 56
    %vm535 = vcmp.ge.s32.totalorder %v471, 56
    %vm536 = vcmp.ge.s32.totalorder %v472, 56
    %vm537 = vcmp.ge.s32.totalorder %v473, 56
    %vm538 = vcmp.ge.s32.totalorder %v474, 56
    %vm539 = vcmp.ge.s32.totalorder %v475, 56
    %vm540 = vcmp.ge.s32.totalorder %v476, 56
    %vm541 = vcmp.ge.s32.totalorder %v477, 56
    %vm542 = vcmp.ge.s32.totalorder %v478, 56
    %vm543 = vcmp.ge.s32.totalorder %v479, 56
    %vm544 = vcmp.ge.s32.totalorder %v480, 56
    %vm545 = vcmp.ge.s32.totalorder %v481, 56
    %vm546 = vcmp.ge.s32.totalorder %v482, 56
    %vm547 = vcmp.ge.s32.totalorder %v483, 56
    %vm548 = vcmp.ge.s32.totalorder %v484, 56
    %v549 = vrot.slane %v68, 7
    %v550 = vrot.slane %v69, 7
    %v551 = vrot.slane %v70, 7
    %v552 = vrot.slane %v71, 7
    %v553 = vrot.slane %v72, 7
    %v554 = vrot.slane %v73, 7
    %v555 = vrot.slane %v74, 7
    %v556 = vrot.slane %v75, 7
    %v557 = vrot.slane %v76, 7
    %v558 = vrot.slane %v77, 7
    %v559 = vrot.slane %v78, 7
    %v560 = vrot.slane %v79, 7
    %v561 = vrot.slane %v80, 7
    %v562 = vrot.slane %v81, 7
    %v563 = vrot.slane %v82, 7
    %v564 = vrot.slane %v83, 7
    %vm565 = vcmp.lt.s32.totalorder %v85, 1
    %v566 = vsel %vm565, %v563, %v564
    %v567 = vsel %vm565, %v562, %v563
    %v568 = vsel %vm565, %v561, %v562
    %v569 = vsel %vm565, %v560, %v561
    %v570 = vsel %vm565, %v559, %v560
    %v571 = vsel %vm565, %v558, %v559
    %v572 = vsel %vm565, %v557, %v558
    %v573 = vsel %vm565, %v556, %v557
    %v574 = vsel %vm565, %v555, %v556
    %v575 = vsel %vm565, %v554, %v555
    %v576 = vsel %vm565, %v553, %v554
    %v577 = vsel %vm565, %v552, %v553
    %v578 = vsel %vm565, %v551, %v552
    %v579 = vsel %vm565, %v550, %v551
    %v580 = vsel %vm565, %v549, %v550
    %v581 = vsel %vm565, %v564, %v549
    %v582 = vsel %vm485, 1, 0
    %v583 = vsel %vm486, 1, 0
    %v584 = vsel %vm487, 1, 0
    %v585 = vsel %vm488, 1, 0
    %v586 = vsel %vm489, 1, 0
    %v587 = vsel %vm490, 1, 0
    %v588 = vsel %vm491, 1, 0
    %v589 = vsel %vm492, 1, 0
    %v590 = vsel %vm493, 1, 0
    %v591 = vsel %vm494, 1, 0
    %v592 = vsel %vm495, 1, 0
    %v593 = vsel %vm496, 1, 0
    %v594 = vsel %vm497, 1, 0
    %v595 = vsel %vm498, 1, 0
    %v596 = vsel %vm499, 1, 0
    %v597 = vsel %vm500, 1, 0
    %vm598 = vcmp.eq.s32.totalorder %v582, 1
    %vm599 = vcmp.eq.s32.totalorder %v583, 1
    %vm600 = vcmp.eq.s32.totalorder %v584, 1
    %vm601 = vcmp.eq.s32.totalorder %v585, 1
    %vm602 = vcmp.eq.s32.totalorder %v586, 1
    %vm603 = vcmp.eq.s32.totalorder %v587, 1
    %vm604 = vcmp.eq.s32.totalorder %v588, 1
    %vm605 = vcmp.eq.s32.totalorder %v589, 1
    %vm606 = vcmp.eq.s32.totalorder %v590, 1
    %vm607 = vcmp.eq.s32.totalorder %v591, 1
    %vm608 = vcmp.eq.s32.totalorder %v592, 1
    %vm609 = vcmp.eq.s32.totalorder %v593, 1
    %vm610 = vcmp.eq.s32.totalorder %v594, 1
    %vm611 = vcmp.eq.s32.totalorder %v595, 1
    %vm612 = vcmp.eq.s32.totalorder %v596, 1
    %vm613 = vcmp.eq.s32.totalorder %v597, 1
    %v614 = vsel %vm598, %v68, %v581
    %v615 = vsel %vm599, %v69, %v580
    %v616 = vsel %vm600, %v70, %v579
    %v617 = vsel %vm601, %v71, %v578
    %v618 = vsel %vm602, %v72, %v577
    %v619 = vsel %vm603, %v73, %v576
    %v620 = vsel %vm604, %v74, %v575
    %v621 = vsel %vm605, %v75, %v574
    %v622 = vsel %vm606, %v76, %v573
    %v623 = vsel %vm607, %v77, %v572
    %v624 = vsel %vm608, %v78, %v571
    %v625 = vsel %vm609, %v79, %v570
    %v626 = vsel %vm610, %v80, %v569
    %v627 = vsel %vm611, %v81, %v568
    %v628 = vsel %vm612, %v82, %v567
    %v629 = vsel %vm613, %v83, %v566
    %v630 = vrot.slane %v68, 1
    %v631 = vrot.slane %v69, 1
    %v632 = vrot.slane %v70, 1
    %v633 = vrot.slane %v71, 1
    %v634 = vrot.slane %v72, 1
    %v635 = vrot.slane %v73, 1
    %v636 = vrot.slane %v74, 1
    %v637 = vrot.slane %v75, 1
    %v638 = vrot.slane %v76, 1
    %v639 = vrot.slane %v77, 1
    %v640 = vrot.slane %v78, 1
    %v641 = vrot.slane %v79, 1
    %v642 = vrot.slane %v80, 1
    %v643 = vrot.slane %v81, 1
    %v644 = vrot.slane %v82, 1
    %v645 = vrot.slane %v83, 1
    %vm646 = vcmp.lt.s32.totalorder %v85, 7
    %v647 = vsel %vm646, %v644, %v645
    %v648 = vsel %vm646, %v643, %v644
    %v649 = vsel %vm646, %v642, %v643
    %v650 = vsel %vm646, %v641, %v642
    %v651 = vsel %vm646, %v640, %v641
    %v652 = vsel %vm646, %v639, %v640
    %v653 = vsel %vm646, %v638, %v639
    %v654 = vsel %vm646, %v637, %v638
    %v655 = vsel %vm646, %v636, %v637
    %v656 = vsel %vm646, %v635, %v636
    %v657 = vsel %vm646, %v634, %v635
    %v658 = vsel %vm646, %v633, %v634
    %v659 = vsel %vm646, %v632, %v633
    %v660 = vsel %vm646, %v631, %v632
    %v661 = vsel %vm646, %v630, %v631
    %v662 = vsel %vm646, %v645, %v630
    %v663 = vsel %vm501, 1, 0
    %v664 = vsel %vm502, 1, 0
    %v665 = vsel %vm503, 1, 0
    %v666 = vsel %vm504, 1, 0
    %v667 = vsel %vm505, 1, 0
    %v668 = vsel %vm506, 1, 0
    %v669 = vsel %vm507, 1, 0
    %v670 = vsel %vm508, 1, 0
    %v671 = vsel %vm509, 1, 0
    %v672 = vsel %vm510, 1, 0
    %v673 = vsel %vm511, 1, 0
    %v674 = vsel %vm512, 1, 0
    %v675 = vsel %vm513, 1, 0
    %v676 = vsel %vm514, 1, 0
    %v677 = vsel %vm515, 1, 0
    %v678 = vsel %vm516, 1, 0
    %vm679 = vcmp.eq.s32.totalorder %v663, 1
    %vm680 = vcmp.eq.s32.totalorder %v664, 1
    %vm681 = vcmp.eq.s32.totalorder %v665, 1
    %vm682 = vcmp.eq.s32.totalorder %v666, 1
    %vm683 = vcmp.eq.s32.totalorder %v667, 1
    %vm684 = vcmp.eq.s32.totalorder %v668, 1
    %vm685 = vcmp.eq.s32.totalorder %v669, 1
    %vm686 = vcmp.eq.s32.totalorder %v670, 1
    %vm687 = vcmp.eq.s32.totalorder %v671, 1
    %vm688 = vcmp.eq.s32.totalorder %v672, 1
    %vm689 = vcmp.eq.s32.totalorder %v673, 1
    %vm690 = vcmp.eq.s32.totalorder %v674, 1
    %vm691 = vcmp.eq.s32.totalorder %v675, 1
    %vm692 = vcmp.eq.s32.totalorder %v676, 1
    %vm693 = vcmp.eq.s32.totalorder %v677, 1
    %vm694 = vcmp.eq.s32.totalorder %v678, 1
    %v695 = vsel %vm679, %v68, %v661
    %v696 = vsel %vm680, %v69, %v660
    %v697 = vsel %vm681, %v70, %v659
    %v698 = vsel %vm682, %v71, %v658
    %v699 = vsel %vm683, %v72, %v657
    %v700 = vsel %vm684, %v73, %v656
    %v701 = vsel %vm685, %v74, %v655
    %v702 = vsel %vm686, %v75, %v654
    %v703 = vsel %vm687, %v76, %v653
    %v704 = vsel %vm688, %v77, %v652
    %v705 = vsel %vm689, %v78, %v651
    %v706 = vsel %vm690, %v79, %v650
    %v707 = vsel %vm691, %v80, %v649
    %v708 = vsel %vm692, %v81, %v648
    %v709 = vsel %vm693, %v82, %v647
    %v710 = vsel %vm694, %v83, %v662
    %v711 = vsel %vm517, 1, 0
    %v712 = vsel %vm518, 1, 0
    %v713 = vsel %vm519, 1, 0
    %v714 = vsel %vm520, 1, 0
    %v715 = vsel %vm521, 1, 0
    %v716 = vsel %vm522, 1, 0
    %v717 = vsel %vm523, 1, 0
    %v718 = vsel %vm524, 1, 0
    %v719 = vsel %vm525, 1, 0
    %v720 = vsel %vm526, 1, 0
    %v721 = vsel %vm527, 1, 0
    %v722 = vsel %vm528, 1, 0
    %v723 = vsel %vm529, 1, 0
    %v724 = vsel %vm530, 1, 0
    %v725 = vsel %vm531, 1, 0
    %v726 = vsel %vm532, 1, 0
    %vm727 = vcmp.eq.s32.totalorder %v711, 1
    %vm728 = vcmp.eq.s32.totalorder %v712, 1
    %vm729 = vcmp.eq.s32.totalorder %v713, 1
    %vm730 = vcmp.eq.s32.totalorder %v714, 1
    %vm731 = vcmp.eq.s32.totalorder %v715, 1
    %vm732 = vcmp.eq.s32.totalorder %v716, 1
    %vm733 = vcmp.eq.s32.totalorder %v717, 1
    %vm734 = vcmp.eq.s32.totalorder %v718, 1
    %vm735 = vcmp.eq.s32.totalorder %v719, 1
    %vm736 = vcmp.eq.s32.totalorder %v720, 1
    %vm737 = vcmp.eq.s32.totalorder %v721, 1
    %vm738 = vcmp.eq.s32.totalorder %v722, 1
    %vm739 = vcmp.eq.s32.totalorder %v723, 1
    %vm740 = vcmp.eq.s32.totalorder %v724, 1
    %vm741 = vcmp.eq.s32.totalorder %v725, 1
    %vm742 = vcmp.eq.s32.totalorder %v726, 1
    %v743 = vsel %vm727, %v614, %v629
    %v744 = vsel %vm728, %v615, %v614
    %v745 = vsel %vm729, %v616, %v615
    %v746 = vsel %vm730, %v617, %v616
    %v747 = vsel %vm731, %v618, %v617
    %v748 = vsel %vm732, %v619, %v618
    %v749 = vsel %vm733, %v620, %v619
    %v750 = vsel %vm734, %v621, %v620
    %v751 = vsel %vm735, %v622, %v621
    %v752 = vsel %vm736, %v623, %v622
    %v753 = vsel %vm737, %v624, %v623
    %v754 = vsel %vm738, %v625, %v624
    %v755 = vsel %vm739, %v626, %v625
    %v756 = vsel %vm740, %v627, %v626
    %v757 = vsel %vm741, %v628, %v627
    %v758 = vsel %vm742, %v629, %v628
    %v759 = vsel %vm727, %v68, %v83
    %v760 = vsel %vm728, %v69, %v68
    %v761 = vsel %vm729, %v70, %v69
    %v762 = vsel %vm730, %v71, %v70
    %v763 = vsel %vm731, %v72, %v71
    %v764 = vsel %vm732, %v73, %v72
    %v765 = vsel %vm733, %v74, %v73
    %v766 = vsel %vm734, %v75, %v74
    %v767 = vsel %vm735, %v76, %v75
    %v768 = vsel %vm736, %v77, %v76
    %v769 = vsel %vm737, %v78, %v77
    %v770 = vsel %vm738, %v79, %v78
    %v771 = vsel %vm739, %v80, %v79
    %v772 = vsel %vm740, %v81, %v80
    %v773 = vsel %vm741, %v82, %v81
    %v774 = vsel %vm742, %v83, %v82
    %v775 = vsel %vm727, %v695, %v710
    %v776 = vsel %vm728, %v696, %v695
    %v777 = vsel %vm729, %v697, %v696
    %v778 = vsel %vm730, %v698, %v697
    %v779 = vsel %vm731, %v699, %v698
    %v780 = vsel %vm732, %v700, %v699
    %v781 = vsel %vm733, %v701, %v700
    %v782 = vsel %vm734, %v702, %v701
    %v783 = vsel %vm735, %v703, %v702
    %v784 = vsel %vm736, %v704, %v703
    %v785 = vsel %vm737, %v705, %v704
    %v786 = vsel %vm738, %v706, %v705
    %v787 = vsel %vm739, %v707, %v706
    %v788 = vsel %vm740, %v708, %v707
    %v789 = vsel %vm741, %v709, %v708
    %v790 = vsel %vm742, %v710, %v709
    %v791 = vsel %vm533, 1, 0
    %v792 = vsel %vm534, 1, 0
    %v793 = vsel %vm535, 1, 0
    %v794 = vsel %vm536, 1, 0
    %v795 = vsel %vm537, 1, 0
    %v796 = vsel %vm538, 1, 0
    %v797 = vsel %vm539, 1, 0
    %v798 = vsel %vm540, 1, 0
    %v799 = vsel %vm541, 1, 0
    %v800 = vsel %vm542, 1, 0
    %v801 = vsel %vm543, 1, 0
    %v802 = vsel %vm544, 1, 0
    %v803 = vsel %vm545, 1, 0
    %v804 = vsel %vm546, 1, 0
    %v805 = vsel %vm547, 1, 0
    %v806 = vsel %vm548, 1, 0
    %vm807 = vcmp.eq.s32.totalorder %v791, 1
    %vm808 = vcmp.eq.s32.totalorder %v792, 1
    %vm809 = vcmp.eq.s32.totalorder %v793, 1
    %vm810 = vcmp.eq.s32.totalorder %v794, 1
    %vm811 = vcmp.eq.s32.totalorder %v795, 1
    %vm812 = vcmp.eq.s32.totalorder %v796, 1
    %vm813 = vcmp.eq.s32.totalorder %v797, 1
    %vm814 = vcmp.eq.s32.totalorder %v798, 1
    %vm815 = vcmp.eq.s32.totalorder %v799, 1
    %vm816 = vcmp.eq.s32.totalorder %v800, 1
    %vm817 = vcmp.eq.s32.totalorder %v801, 1
    %vm818 = vcmp.eq.s32.totalorder %v802, 1
    %vm819 = vcmp.eq.s32.totalorder %v803, 1
    %vm820 = vcmp.eq.s32.totalorder %v804, 1
    %vm821 = vcmp.eq.s32.totalorder %v805, 1
    %vm822 = vcmp.eq.s32.totalorder %v806, 1
    %v823 = vsel %vm807, %v614, %v615
    %v824 = vsel %vm808, %v615, %v616
    %v825 = vsel %vm809, %v616, %v617
    %v826 = vsel %vm810, %v617, %v618
    %v827 = vsel %vm811, %v618, %v619
    %v828 = vsel %vm812, %v619, %v620
    %v829 = vsel %vm813, %v620, %v621
    %v830 = vsel %vm814, %v621, %v622
    %v831 = vsel %vm815, %v622, %v623
    %v832 = vsel %vm816, %v623, %v624
    %v833 = vsel %vm817, %v624, %v625
    %v834 = vsel %vm818, %v625, %v626
    %v835 = vsel %vm819, %v626, %v627
    %v836 = vsel %vm820, %v627, %v628
    %v837 = vsel %vm821, %v628, %v629
    %v838 = vsel %vm822, %v629, %v614
    %v839 = vsel %vm807, %v68, %v69
    %v840 = vsel %vm808, %v69, %v70
    %v841 = vsel %vm809, %v70, %v71
    %v842 = vsel %vm810, %v71, %v72
    %v843 = vsel %vm811, %v72, %v73
    %v844 = vsel %vm812, %v73, %v74
    %v845 = vsel %vm813, %v74, %v75
    %v846 = vsel %vm814, %v75, %v76
    %v847 = vsel %vm815, %v76, %v77
    %v848 = vsel %vm816, %v77, %v78
    %v849 = vsel %vm817, %v78, %v79
    %v850 = vsel %vm818, %v79, %v80
    %v851 = vsel %vm819, %v80, %v81
    %v852 = vsel %vm820, %v81, %v82
    %v853 = vsel %vm821, %v82, %v83
    %v854 = vsel %vm822, %v83, %v68
    %v855 = vsel %vm807, %v695, %v696
    %v856 = vsel %vm808, %v696, %v697
    %v857 = vsel %vm809, %v697, %v698
    %v858 = vsel %vm810, %v698, %v699
    %v859 = vsel %vm811, %v699, %v700
    %v860 = vsel %vm812, %v700, %v701
    %v861 = vsel %vm813, %v701, %v702
    %v862 = vsel %vm814, %v702, %v703
    %v863 = vsel %vm815, %v703, %v704
    %v864 = vsel %vm816, %v704, %v705
    %v865 = vsel %vm817, %v705, %v706
    %v866 = vsel %vm818, %v706, %v707
    %v867 = vsel %vm819, %v707, %v708
    %v868 = vsel %vm820, %v708, %v709
    %v869 = vsel %vm821, %v709, %v710
    %v870 = vsel %vm822, %v710, %v695
    %v871 = vld [vmem:[#allocation5] sm:$0xff]
    %v872 = vld [vmem:[#allocation5 + $0x8] sm:$0xff]
    %v873 = vld [vmem:[#allocation5 + $0x10] sm:$0xff]
    %v874 = vld [vmem:[#allocation5 + $0x18] sm:$0xff]
    %v875 = vld [vmem:[#allocation5 + $0x20] sm:$0xff]
    %v876 = vld [vmem:[#allocation5 + $0x28] sm:$0xff]
    %v877 = vld [vmem:[#allocation5 + $0x30] sm:$0xff]
    %v878 = vld [vmem:[#allocation5 + $0x38] sm:$0xff]
    %v879 = vld [vmem:[#allocation5 + $0x40] sm:$0xff]
    %v880 = vld [vmem:[#allocation5 + $0x48] sm:$0xff]
    %v881 = vld [vmem:[#allocation5 + $0x50] sm:$0xff]
    %v882 = vld [vmem:[#allocation5 + $0x58] sm:$0xff]
    %v883 = vld [vmem:[#allocation5 + $0x60] sm:$0xff]
    %v884 = vld [vmem:[#allocation5 + $0x68] sm:$0xff]
    %v885 = vld [vmem:[#allocation5 + $0x70] sm:$0xff]
    %v886 = vld [vmem:[#allocation5 + $0x78] sm:$0xff]
    %v887 = vld [vmem:[#allocation5 + $0x80] sm:$0xff]
    %v888 = vld [vmem:[#allocation5 + $0x88] sm:$0xff]
    %v889 = vld [vmem:[#allocation5 + $0x90] sm:$0xff]
    %v890 = vld [vmem:[#allocation5 + $0x98] sm:$0xff]
    %v891 = vld [vmem:[#allocation5 + $0xa0] sm:$0xff]
    %v892 = vld [vmem:[#allocation5 + $0xa8] sm:$0xff]
    %v893 = vld [vmem:[#allocation5 + $0xb0] sm:$0xff]
    %v894 = vld [vmem:[#allocation5 + $0xb8] sm:$0xff]
    %v895 = vld [vmem:[#allocation5 + $0xc0] sm:$0xff]
    %v896 = vld [vmem:[#allocation5 + $0xc8] sm:$0xff]
    %v897 = vld [vmem:[#allocation5 + $0xd0] sm:$0xff]
    %v898 = vld [vmem:[#allocation5 + $0xd8] sm:$0xff]
    %v899 = vld [vmem:[#allocation5 + $0xe0] sm:$0xff]
    %v900 = vld [vmem:[#allocation5 + $0xe8] sm:$0xff]
    %v901 = vld [vmem:[#allocation5 + $0xf0] sm:$0xff]
    %v902 = vld [vmem:[#allocation5 + $0xf8] sm:$0xff]
    %v903 = vld [vmem:[#allocation5 + $0x100] sm:$0xff]
    %v904 = vld [vmem:[#allocation5 + $0x108] sm:$0xff]
    %v905 = vld [vmem:[#allocation5 + $0x110] sm:$0xff]
    %v906 = vld [vmem:[#allocation5 + $0x118] sm:$0xff]
    %v907 = vld [vmem:[#allocation5 + $0x120] sm:$0xff]
    %v908 = vld [vmem:[#allocation5 + $0x128] sm:$0xff]
    %v909 = vld [vmem:[#allocation5 + $0x130] sm:$0xff]
    %v910 = vld [vmem:[#allocation5 + $0x138] sm:$0xff]
    %v911 = vld [vmem:[#allocation5 + $0x140] sm:$0xff]
    %v912 = vld [vmem:[#allocation5 + $0x148] sm:$0xff]
    %v913 = vld [vmem:[#allocation5 + $0x150] sm:$0xff]
    %v914 = vld [vmem:[#allocation5 + $0x158] sm:$0xff]
    %v915 = vld [vmem:[#allocation5 + $0x160] sm:$0xff]
    %v916 = vld [vmem:[#allocation5 + $0x168] sm:$0xff]
    %v917 = vld [vmem:[#allocation5 + $0x170] sm:$0xff]
    %v918 = vld [vmem:[#allocation5 + $0x178] sm:$0xff]
    %v919 = vld [vmem:[#allocation5 + $0x180] sm:$0xff]
    %v920 = vld [vmem:[#allocation5 + $0x188] sm:$0xff]
    %v921 = vld [vmem:[#allocation5 + $0x190] sm:$0xff]
    %v922 = vld [vmem:[#allocation5 + $0x198] sm:$0xff]
    %v923 = vld [vmem:[#allocation5 + $0x1a0] sm:$0xff]
    %v924 = vld [vmem:[#allocation5 + $0x1a8] sm:$0xff]
    %v925 = vld [vmem:[#allocation5 + $0x1b0] sm:$0xff]
    %v926 = vld [vmem:[#allocation5 + $0x1b8] sm:$0xff]
    %v927 = vld [vmem:[#allocation5 + $0x1c0] sm:$0xff]
    %v928 = vld [vmem:[#allocation5 + $0x1c8] sm:$0xff]
    %v929 = vld [vmem:[#allocation5 + $0x1d0] sm:$0xff]
    %v930 = vld [vmem:[#allocation5 + $0x1d8] sm:$0xff]
    %v931 = vld [vmem:[#allocation5 + $0x1e0] sm:$0xff]
    %v932 = vld [vmem:[#allocation5 + $0x1e8] sm:$0xff]
    %v933 = vld [vmem:[#allocation5 + $0x1f0] sm:$0xff]
    %v934 = vld [vmem:[#allocation5 + $0x1f8] sm:$0xff]
    %v935 = vld [vmem:[#allocation5 + $0x200] sm:$0xff]
    %v936 = vld [vmem:[#allocation5 + $0x208] sm:$0xff]
    %v937 = vld [vmem:[#allocation5 + $0x210] sm:$0xff]
    %v938 = vld [vmem:[#allocation5 + $0x218] sm:$0xff]
    %v939 = vld [vmem:[#allocation5 + $0x220] sm:$0xff]
    %v940 = vld [vmem:[#allocation5 + $0x228] sm:$0xff]
    %v941 = vld [vmem:[#allocation5 + $0x230] sm:$0xff]
    %v942 = vld [vmem:[#allocation5 + $0x238] sm:$0xff]
    %v943 = vld [vmem:[#allocation5 + $0x240] sm:$0xff]
    %v944 = vld [vmem:[#allocation5 + $0x248] sm:$0xff]
    %v945 = vld [vmem:[#allocation5 + $0x250] sm:$0xff]
    %v946 = vld [vmem:[#allocation5 + $0x258] sm:$0xff]
    %v947 = vld [vmem:[#allocation5 + $0x260] sm:$0xff]
    %v948 = vld [vmem:[#allocation5 + $0x268] sm:$0xff]
    %v949 = vld [vmem:[#allocation5 + $0x270] sm:$0xff]
    %v950 = vld [vmem:[#allocation5 + $0x278] sm:$0xff]
    %v951 = vld [vmem:[#allocation5 + $0x280] sm:$0xff]
    %v952 = vld [vmem:[#allocation5 + $0x288] sm:$0xff]
    %v953 = vld [vmem:[#allocation5 + $0x290] sm:$0xff]
    %v954 = vld [vmem:[#allocation5 + $0x298] sm:$0xff]
    %v955 = vld [vmem:[#allocation5 + $0x2a0] sm:$0xff]
    %v956 = vld [vmem:[#allocation5 + $0x2a8] sm:$0xff]
    %v957 = vld [vmem:[#allocation5 + $0x2b0] sm:$0xff]
    %v958 = vld [vmem:[#allocation5 + $0x2b8] sm:$0xff]
    %v959 = vld [vmem:[#allocation5 + $0x2c0] sm:$0xff]
    %v960 = vld [vmem:[#allocation5 + $0x2c8] sm:$0xff]
    %v961 = vld [vmem:[#allocation5 + $0x2d0] sm:$0xff]
    %v962 = vld [vmem:[#allocation5 + $0x2d8] sm:$0xff]
    %v963 = vld [vmem:[#allocation5 + $0x2e0] sm:$0xff]
    %v964 = vld [vmem:[#allocation5 + $0x2e8] sm:$0xff]
    %v965 = vld [vmem:[#allocation5 + $0x2f0] sm:$0xff]
    %v966 = vld [vmem:[#allocation5 + $0x2f8] sm:$0xff]
    %v967 = vld [vmem:[#allocation5 + $0x300] sm:$0xff]
    %v968 = vld [vmem:[#allocation5 + $0x308] sm:$0xff]
    %v969 = vld [vmem:[#allocation5 + $0x310] sm:$0xff]
    %v970 = vld [vmem:[#allocation5 + $0x318] sm:$0xff]
    %v971 = vld [vmem:[#allocation5 + $0x320] sm:$0xff]
    %v972 = vld [vmem:[#allocation5 + $0x328] sm:$0xff]
    %v973 = vld [vmem:[#allocation5 + $0x330] sm:$0xff]
    %v974 = vld [vmem:[#allocation5 + $0x338] sm:$0xff]
    %v975 = vld [vmem:[#allocation5 + $0x340] sm:$0xff]
    %v976 = vld [vmem:[#allocation5 + $0x348] sm:$0xff]
    %v977 = vld [vmem:[#allocation5 + $0x350] sm:$0xff]
    %v978 = vld [vmem:[#allocation5 + $0x358] sm:$0xff]
    %v979 = vld [vmem:[#allocation5 + $0x360] sm:$0xff]
    %v980 = vld [vmem:[#allocation5 + $0x368] sm:$0xff]
    %v981 = vld [vmem:[#allocation5 + $0x370] sm:$0xff]
    %v982 = vld [vmem:[#allocation5 + $0x378] sm:$0xff]
    %v983 = vld [vmem:[#allocation5 + $0x380] sm:$0xff]
    %v984 = vld [vmem:[#allocation5 + $0x388] sm:$0xff]
    %v985 = vld [vmem:[#allocation5 + $0x390] sm:$0xff]
    %v986 = vld [vmem:[#allocation5 + $0x398] sm:$0xff]
    %v987 = vld [vmem:[#allocation5 + $0x3a0] sm:$0xff]
    %v988 = vld [vmem:[#allocation5 + $0x3a8] sm:$0xff]
    %v989 = vld [vmem:[#allocation5 + $0x3b0] sm:$0xff]
    %v990 = vld [vmem:[#allocation5 + $0x3b8] sm:$0xff]
    %v991 = vld [vmem:[#allocation5 + $0x3c0] sm:$0xff]
    %v992 = vld [vmem:[#allocation5 + $0x3c8] sm:$0xff]
    %v993 = vld [vmem:[#allocation5 + $0x3d0] sm:$0xff]
    %v994 = vld [vmem:[#allocation5 + $0x3d8] sm:$0xff]
    %v995 = vld [vmem:[#allocation5 + $0x3e0] sm:$0xff]
    %v996 = vld [vmem:[#allocation5 + $0x3e8] sm:$0xff]
    %v997 = vld [vmem:[#allocation5 + $0x3f0] sm:$0xff]
    %v998 = vld [vmem:[#allocation5 + $0x3f8] sm:$0xff]
    %v999 = vld [vmem:[#allocation5 + $0x400] sm:$0xff]
    %v1000 = vld [vmem:[#allocation5 + $0x408] sm:$0xff]
    %v1001 = vld [vmem:[#allocation5 + $0x410] sm:$0xff]
    %v1002 = vld [vmem:[#allocation5 + $0x418] sm:$0xff]
    %v1003 = vld [vmem:[#allocation5 + $0x420] sm:$0xff]
    %v1004 = vld [vmem:[#allocation5 + $0x428] sm:$0xff]
    %v1005 = vld [vmem:[#allocation5 + $0x430] sm:$0xff]
    %v1006 = vld [vmem:[#allocation5 + $0x438] sm:$0xff]
    %v1007 = vld [vmem:[#allocation5 + $0x440] sm:$0xff]
    %v1008 = vld [vmem:[#allocation5 + $0x448] sm:$0xff]
    %v1009 = vld [vmem:[#allocation5 + $0x450] sm:$0xff]
    %v1010 = vld [vmem:[#allocation5 + $0x458] sm:$0xff]
    %v1011 = vld [vmem:[#allocation5 + $0x460] sm:$0xff]
    %v1012 = vld [vmem:[#allocation5 + $0x468] sm:$0xff]
    %v1013 = vld [vmem:[#allocation5 + $0x470] sm:$0xff]
    %v1014 = vld [vmem:[#allocation5 + $0x478] sm:$0xff]
    %1015 = vmatprep.subr.mxu0 0.0
    %1016 = vmatpush1.msra.mxu0 %v871
    %1017 = vmatprep.subr.mxu0 0.0
    %1018 = vmatpush1.msra.mxu0 %v872
    %1019 = vmatprep.subr.mxu0 0.0
    %1020 = vmatpush1.msra.mxu0 %v873
    %1021 = vmatprep.subr.mxu0 0.0
    %1022 = vmatpush1.msra.mxu0 %v874
    %1023 = vmatprep.subr.mxu0 0.0
    %1024 = vmatpush1.msra.mxu0 %v875
    %1025 = vmatprep.subr.mxu0 0.0
    %1026 = vmatpush1.msra.mxu0 %v876
    %1027 = vmatprep.subr.mxu0 0.0
    %1028 = vmatpush1.msra.mxu0 %v877
    %1029 = vmatprep.subr.mxu0 0.0
    %1030 = vmatpush1.msra.mxu0 %v878
    %1031 = vmatprep.subr.mxu0 0.0
    %1032 = vmatpush1.msra.mxu0 %v879
    %1033 = vmatprep.subr.mxu0 0.0
    %1034 = vmatpush1.msra.mxu0 %v880
    %1035 = vmatprep.subr.mxu0 0.0
    %1036 = vmatpush1.msra.mxu0 %v881
    %1037 = vmatprep.subr.mxu0 0.0
    %1038 = vmatpush1.msra.mxu0 %v882
    %1039 = vmatprep.subr.mxu0 0.0
    %1040 = vmatpush1.msra.mxu0 %v883
    %1041 = vmatprep.subr.mxu0 0.0
    %1042 = vmatpush1.msra.mxu0 %v884
    %1043 = vmatprep.subr.mxu0 0.0
    %1044 = vmatpush1.msra.mxu0 %v885
    %1045 = vmatprep.subr.mxu0 0.0
    %1046 = vmatpush1.msra.mxu0 %v886
    %1047 = vmatprep.subr.mxu0 0.0
    %1048 = vmatpush1.msra.mxu0 %v887
    %1049 = vmatprep.subr.mxu0 0.0
    %1050 = vmatpush1.msra.mxu0 %v888
    %1051 = vmatprep.subr.mxu0 0.0
    %1052 = vmatpush1.msra.mxu0 %v889
    %1053 = vmatprep.subr.mxu0 0.0
    %1054 = vmatpush1.msra.mxu0 %v890
    %1055 = vmatprep.subr.mxu0 0.0
    %1056 = vmatpush1.msra.mxu0 %v891
    %1057 = vmatprep.subr.mxu0 0.0
    %1058 = vmatpush1.msra.mxu0 %v892
    %1059 = vmatprep.subr.mxu0 0.0
    %1060 = vmatpush1.msra.mxu0 %v893
    %1061 = vmatprep.subr.mxu0 0.0
    %1062 = vmatpush1.msra.mxu0 %v894
    %1063 = vmatprep.subr.mxu0 0.0
    %1064 = vmatpush1.msra.mxu0 %v895
    %1065 = vmatprep.subr.mxu0 0.0
    %1066 = vmatpush1.msra.mxu0 %v896
    %1067 = vmatprep.subr.mxu0 0.0
    %1068 = vmatpush1.msra.mxu0 %v897
    %1069 = vmatprep.subr.mxu0 0.0
    %1070 = vmatpush1.msra.mxu0 %v898
    %1071 = vmatprep.subr.mxu0 0.0
    %1072 = vmatpush1.msra.mxu0 %v899
    %1073 = vmatprep.subr.mxu0 0.0
    %1074 = vmatpush1.msra.mxu0 %v900
    %1075 = vmatprep.subr.mxu0 0.0
    %1076 = vmatpush1.msra.mxu0 %v901
    %1077 = vmatprep.subr.mxu0 0.0
    %1078 = vmatpush1.msra.mxu0 %v902
    %1079 = vmatprep.mubr.f32.mxu0 %v759
    %1080 = vmatmul.mubr.f32.gmra.mrb[0].mxu0 %v743
    %v1081 = vpop.f32.mrb[0].mxu0
    %v1082 = vadd.f32 0.0, %v1081
    %v1083 = vpop.f32.mrb[0].mxu0
    %1084 = vmatprep.mubr.f32.mxu0 %v760
    %1085 = vmatmul.mubr.f32.gmra.mrb[0].mxu0 %v744
    %v1086 = vpop.f32.mrb[0].mxu0
    %v1087 = vadd.f32 0.0, %v1086
    %v1088 = vpop.f32.mrb[0].mxu0
    %1089 = vmatprep.mubr.f32.mxu0 %v761
    %1090 = vmatmul.mubr.f32.gmra.mrb[0].mxu0 %v745
    %v1091 = vpop.f32.mrb[0].mxu0
    %v1092 = vadd.f32 0.0, %v1091
    %v1093 = vpop.f32.mrb[0].mxu0
    %1094 = vmatprep.mubr.f32.mxu0 %v762
    %1095 = vmatmul.mubr.f32.gmra.mrb[0].mxu0 %v746
    %v1096 = vpop.f32.mrb[0].mxu0
    %v1097 = vadd.f32 0.0, %v1096
    %v1098 = vpop.f32.mrb[0].mxu0
    %1099 = vmatprep.mubr.f32.mxu0 %v763
    %1100 = vmatmul.mubr.f32.gmra.mrb[0].mxu0 %v747
    %v1101 = vpop.f32.mrb[0].mxu0
    %v1102 = vadd.f32 0.0, %v1101
    %v1103 = vpop.f32.mrb[0].mxu0
    %1104 = vmatprep.mubr.f32.mxu0 %v764
    %1105 = vmatmul.mubr.f32.gmra.mrb[0].mxu0 %v748
    %v1106 = vpop.f32.mrb[0].mxu0
    %v1107 = vadd.f32 0.0, %v1106
    %v1108 = vpop.f32.mrb[0].mxu0
    %1109 = vmatprep.mubr.f32.mxu0 %v765
    %1110 = vmatmul.mubr.f32.gmra.mrb[0].mxu0 %v749
    %v1111 = vpop.f32.mrb[0].mxu0
    %v1112 = vadd.f32 0.0, %v1111
    %v1113 = vpop.f32.mrb[0].mxu0
    %1114 = vmatprep.mubr.f32.mxu0 %v766
    %1115 = vmatmul.mubr.f32.gmra.mrb[0].mxu0 %v750
    %v1116 = vpop.f32.mrb[0].mxu0
    %v1117 = vadd.f32 0.0, %v1116
    %v1118 = vpop.f32.mrb[0].mxu0
    %1119 = vmatprep.mubr.f32.mxu0 %v767
    %1120 = vmatmul.mubr.f32.gmra.mrb[0].mxu0 %v751
    %v1121 = vpop.f32.mrb[0].mxu0
    %v1122 = vadd.f32 0.0, %v1121
    %v1123 = vpop.f32.mrb[0].mxu0
    %1124 = vmatprep.mubr.f32.mxu0 %v768
    %1125 = vmatmul.mubr.f32.gmra.mrb[0].mxu0 %v752
    %v1126 = vpop.f32.mrb[0].mxu0
    %v1127 = vadd.f32 0.0, %v1126
    %v1128 = vpop.f32.mrb[0].mxu0
    %1129 = vmatprep.mubr.f32.mxu0 %v769
    %1130 = vmatmul.mubr.f32.gmra.mrb[0].mxu0 %v753
    %v1131 = vpop.f32.mrb[0].mxu0
    %v1132 = vadd.f32 0.0, %v1131
    %v1133 = vpop.f32.mrb[0].mxu0
    %1134 = vmatprep.mubr.f32.mxu0 %v770
    %1135 = vmatmul.mubr.f32.gmra.mrb[0].mxu0 %v754
    %v1136 = vpop.f32.mrb[0].mxu0
    %v1137 = vadd.f32 0.0, %v1136
    %v1138 = vpop.f32.mrb[0].mxu0
    %1139 = vmatprep.mubr.f32.mxu0 %v771
    %1140 = vmatmul.mubr.f32.gmra.mrb[0].mxu0 %v755
    %v1141 = vpop.f32.mrb[0].mxu0
    %v1142 = vadd.f32 0.0, %v1141
    %v1143 = vpop.f32.mrb[0].mxu0
    %1144 = vmatprep.mubr.f32.mxu0 %v772
    %1145 = vmatmul.mubr.f32.gmra.mrb[0].mxu0 %v756
    %v1146 = vpop.f32.mrb[0].mxu0
    %v1147 = vadd.f32 0.0, %v1146
    %v1148 = vpop.f32.mrb[0].mxu0
    %1149 = vmatprep.mubr.f32.mxu0 %v773
    %1150 = vmatmul.mubr.f32.gmra.mrb[0].mxu0 %v757
    %v1151 = vpop.f32.mrb[0].mxu0
    %v1152 = vadd.f32 0.0, %v1151
    %v1153 = vpop.f32.mrb[0].mxu0
    %1154 = vmatprep.mubr.f32.mxu0 %v774
    %1155 = vmatmul.mubr.f32.gmra.mrb[0].mxu0 %v758
    %v1156 = vpop.f32.mrb[0].mxu0
    %v1157 = vadd.f32 0.0, %v1156
    %v1158 = vpop.f32.mrb[0].mxu0
    %1159 = vdwg.mxu0
    %1160 = vmatprep.subr.mxu0 0.0
    %1161 = vmatpush1.msra.mxu0 %v903
    %1162 = vmatprep.subr.mxu0 0.0
    %1163 = vmatpush1.msra.mxu0 %v904
    %1164 = vmatprep.subr.mxu0 0.0
    %1165 = vmatpush1.msra.mxu0 %v905
    %1166 = vmatprep.subr.mxu0 0.0
    %1167 = vmatpush1.msra.mxu0 %v906
    %1168 = vmatprep.subr.mxu0 0.0
    %1169 = vmatpush1.msra.mxu0 %v907
    %1170 = vmatprep.subr.mxu0 0.0
    %1171 = vmatpush1.msra.mxu0 %v908
    %1172 = vmatprep.subr.mxu0 0.0
    %1173 = vmatpush1.msra.mxu0 %v909
    %1174 = vmatprep.subr.mxu0 0.0
    %1175 = vmatpush1.msra.mxu0 %v910
    %1176 = vmatprep.subr.mxu0 0.0
    %1177 = vmatpush1.msra.mxu0 %v911
    %1178 = vmatprep.subr.mxu0 0.0
    %1179 = vmatpush1.msra.mxu0 %v912
    %1180 = vmatprep.subr.mxu0 0.0
    %1181 = vmatpush1.msra.mxu0 %v913
    %1182 = vmatprep.subr.mxu0 0.0
    %1183 = vmatpush1.msra.mxu0 %v914
    %1184 = vmatprep.subr.mxu0 0.0
    %1185 = vmatpush1.msra.mxu0 %v915
    %1186 = vmatprep.subr.mxu0 0.0
    %1187 = vmatpush1.msra.mxu0 %v916
    %1188 = vmatprep.subr.mxu0 0.0
    %1189 = vmatpush1.msra.mxu0 %v917
    %1190 = vmatprep.subr.mxu0 0.0
    %1191 = vmatpush1.msra.mxu0 %v918
    %1192 = vmatprep.subr.mxu0 0.0
    %1193 = vmatpush1.msra.mxu0 %v919
    %1194 = vmatprep.subr.mxu0 0.0
    %1195 = vmatpush1.msra.mxu0 %v920
    %1196 = vmatprep.subr.mxu0 0.0
    %1197 = vmatpush1.msra.mxu0 %v921
    %1198 = vmatprep.subr.mxu0 0.0
    %1199 = vmatpush1.msra.mxu0 %v922
    %1200 = vmatprep.subr.mxu0 0.0
    %1201 = vmatpush1.msra.mxu0 %v923
    %1202 = vmatprep.subr.mxu0 0.0
    %1203 = vmatpush1.msra.mxu0 %v924
    %1204 = vmatprep.subr.mxu0 0.0
    %1205 = vmatpush1.msra.mxu0 %v925
    %1206 = vmatprep.subr.mxu0 0.0
    %1207 = vmatpush1.msra.mxu0 %v926
    %1208 = vmatprep.subr.mxu0 0.0
    %1209 = vmatpush1.msra.mxu0 %v927
    %1210 = vmatprep.subr.mxu0 0.0
    %1211 = vmatpush1.msra.mxu0 %v928
    %1212 = vmatprep.subr.mxu0 0.0
    %1213 = vmatpush1.msra.mxu0 %v929
    %1214 = vmatprep.subr.mxu0 0.0
    %1215 = vmatpush1.msra.mxu0 %v930
    %1216 = vmatprep.subr.mxu0 0.0
    %1217 = vmatpush1.msra.mxu0 %v931
    %1218 = vmatprep.subr.mxu0 0.0
    %1219 = vmatpush1.msra.mxu0 %v932
    %1220 = vmatprep.subr.mxu0 0.0
    %1221 = vmatpush1.msra.mxu0 %v933
    %1222 = vmatprep.subr.mxu0 0.0
    %1223 = vmatpush1.msra.mxu0 %v934
    %1224 = vmatprep.mubr.f32.mxu0 %v614
    %1225 = vmatmul.mubr.f32.gmra.mrb[0].mxu0 %v775
    %v1226 = vpop.f32.mrb[0].mxu0
    %v1227 = vadd.f32 %v1082, %v1226
    %v1228 = vpop.f32.mrb[0].mxu0
    %1229 = vmatprep.mubr.f32.mxu0 %v615
    %1230 = vmatmul.mubr.f32.gmra.mrb[0].mxu0 %v776
    %v1231 = vpop.f32.mrb[0].mxu0
    %v1232 = vadd.f32 %v1087, %v1231
    %v1233 = vpop.f32.mrb[0].mxu0
    %1234 = vmatprep.mubr.f32.mxu0 %v616
    %1235 = vmatmul.mubr.f32.gmra.mrb[0].mxu0 %v777
    %v1236 = vpop.f32.mrb[0].mxu0
    %v1237 = vadd.f32 %v1092, %v1236
    %v1238 = vpop.f32.mrb[0].mxu0
    %1239 = vmatprep.mubr.f32.mxu0 %v617
    %1240 = vmatmul.mubr.f32.gmra.mrb[0].mxu0 %v778
    %v1241 = vpop.f32.mrb[0].mxu0
    %v1242 = vadd.f32 %v1097, %v1241
    %v1243 = vpop.f32.mrb[0].mxu0
    %1244 = vmatprep.mubr.f32.mxu0 %v618
    %1245 = vmatmul.mubr.f32.gmra.mrb[0].mxu0 %v779
    %v1246 = vpop.f32.mrb[0].mxu0
    %v1247 = vadd.f32 %v1102, %v1246
    %v1248 = vpop.f32.mrb[0].mxu0
    %1249 = vmatprep.mubr.f32.mxu0 %v619
    %1250 = vmatmul.mubr.f32.gmra.mrb[0].mxu0 %v780
    %v1251 = vpop.f32.mrb[0].mxu0
    %v1252 = vadd.f32 %v1107, %v1251
    %v1253 = vpop.f32.mrb[0].mxu0
    %1254 = vmatprep.mubr.f32.mxu0 %v620
    %1255 = vmatmul.mubr.f32.gmra.mrb[0].mxu0 %v781
    %v1256 = vpop.f32.mrb[0].mxu0
    %v1257 = vadd.f32 %v1112, %v1256
    %v1258 = vpop.f32.mrb[0].mxu0
    %1259 = vmatprep.mubr.f32.mxu0 %v621
    %1260 = vmatmul.mubr.f32.gmra.mrb[0].mxu0 %v782
    %v1261 = vpop.f32.mrb[0].mxu0
    %v1262 = vadd.f32 %v1117, %v1261
    %v1263 = vpop.f32.mrb[0].mxu0
    %1264 = vmatprep.mubr.f32.mxu0 %v622
    %1265 = vmatmul.mubr.f32.gmra.mrb[0].mxu0 %v783
    %v1266 = vpop.f32.mrb[0].mxu0
    %v1267 = vadd.f32 %v1122, %v1266
    %v1268 = vpop.f32.mrb[0].mxu0
    %1269 = vmatprep.mubr.f32.mxu0 %v623
    %1270 = vmatmul.mubr.f32.gmra.mrb[0].mxu0 %v784
    %v1271 = vpop.f32.mrb[0].mxu0
    %v1272 = vadd.f32 %v1127, %v1271
    %v1273 = vpop.f32.mrb[0].mxu0
    %1274 = vmatprep.mubr.f32.mxu0 %v624
    %1275 = vmatmul.mubr.f32.gmra.mrb[0].mxu0 %v785
    %v1276 = vpop.f32.mrb[0].mxu0
    %v1277 = vadd.f32 %v1132, %v1276
    %v1278 = vpop.f32.mrb[0].mxu0
    %1279 = vmatprep.mubr.f32.mxu0 %v625
    %1280 = vmatmul.mubr.f32.gmra.mrb[0].mxu0 %v786
    %v1281 = vpop.f32.mrb[0].mxu0
    %v1282 = vadd.f32 %v1137, %v1281
    %v1283 = vpop.f32.mrb[0].mxu0
    %1284 = vmatprep.mubr.f32.mxu0 %v626
    %1285 = vmatmul.mubr.f32.gmra.mrb[0].mxu0 %v787
    %v1286 = vpop.f32.mrb[0].mxu0
    %v1287 = vadd.f32 %v1142, %v1286
    %v1288 = vpop.f32.mrb[0].mxu0
    %1289 = vmatprep.mubr.f32.mxu0 %v627
    %1290 = vmatmul.mubr.f32.gmra.mrb[0].mxu0 %v788
    %v1291 = vpop.f32.mrb[0].mxu0
    %v1292 = vadd.f32 %v1147, %v1291
    %v1293 = vpop.f32.mrb[0].mxu0
    %1294 = vmatprep.mubr.f32.mxu0 %v628
    %1295 = vmatmul.mubr.f32.gmra.mrb[0].mxu0 %v789
    %v1296 = vpop.f32.mrb[0].mxu0
    %v1297 = vadd.f32 %v1152, %v1296
    %v1298 = vpop.f32.mrb[0].mxu0
    %1299 = vmatprep.mubr.f32.mxu0 %v629
    %1300 = vmatmul.mubr.f32.gmra.mrb[0].mxu0 %v790
    %v1301 = vpop.f32.mrb[0].mxu0
    %v1302 = vadd.f32 %v1157, %v1301
    %v1303 = vpop.f32.mrb[0].mxu0
    %1304 = vdwg.mxu0
    %1305 = vmatprep.subr.mxu0 0.0
    %1306 = vmatpush1.msra.mxu0 %v935
    %1307 = vmatprep.subr.mxu0 0.0
    %1308 = vmatpush1.msra.mxu0 %v936
    %1309 = vmatprep.subr.mxu0 0.0
    %1310 = vmatpush1.msra.mxu0 %v937
    %1311 = vmatprep.subr.mxu0 0.0
    %1312 = vmatpush1.msra.mxu0 %v938
    %1313 = vmatprep.subr.mxu0 0.0
    %1314 = vmatpush1.msra.mxu0 %v939
    %1315 = vmatprep.subr.mxu0 0.0
    %1316 = vmatpush1.msra.mxu0 %v940
    %1317 = vmatprep.subr.mxu0 0.0
    %1318 = vmatpush1.msra.mxu0 %v941
    %1319 = vmatprep.subr.mxu0 0.0
    %1320 = vmatpush1.msra.mxu0 %v942
    %1321 = vmatprep.subr.mxu0 0.0
    %1322 = vmatpush1.msra.mxu0 %v943
    %1323 = vmatprep.subr.mxu0 0.0
    %1324 = vmatpush1.msra.mxu0 %v944
    %1325 = vmatprep.subr.mxu0 0.0
    %1326 = vmatpush1.msra.mxu0 %v945
    %1327 = vmatprep.subr.mxu0 0.0
    %1328 = vmatpush1.msra.mxu0 %v946
    %1329 = vmatprep.subr.mxu0 0.0
    %1330 = vmatpush1.msra.mxu0 %v947
    %1331 = vmatprep.subr.mxu0 0.0
    %1332 = vmatpush1.msra.mxu0 %v948
    %1333 = vmatprep.subr.mxu0 0.0
    %1334 = vmatpush1.msra.mxu0 %v949
    %1335 = vmatprep.subr.mxu0 0.0
    %1336 = vmatpush1.msra.mxu0 %v950
    %1337 = vmatprep.subr.mxu0 0.0
    %1338 = vmatpush1.msra.mxu0 %v951
    %1339 = vmatprep.subr.mxu0 0.0
    %1340 = vmatpush1.msra.mxu0 %v952
    %1341 = vmatprep.subr.mxu0 0.0
    %1342 = vmatpush1.msra.mxu0 %v953
    %1343 = vmatprep.subr.mxu0 0.0
    %1344 = vmatpush1.msra.mxu0 %v954
    %1345 = vmatprep.subr.mxu0 0.0
    %1346 = vmatpush1.msra.mxu0 %v955
    %1347 = vmatprep.subr.mxu0 0.0
    %1348 = vmatpush1.msra.mxu0 %v956
    %1349 = vmatprep.subr.mxu0 0.0
    %1350 = vmatpush1.msra.mxu0 %v957
    %1351 = vmatprep.subr.mxu0 0.0
    %1352 = vmatpush1.msra.mxu0 %v958
    %1353 = vmatprep.subr.mxu0 0.0
    %1354 = vmatpush1.msra.mxu0 %v959
    %1355 = vmatprep.subr.mxu0 0.0
    %1356 = vmatpush1.msra.mxu0 %v960
    %1357 = vmatprep.subr.mxu0 0.0
    %1358 = vmatpush1.msra.mxu0 %v961
    %1359 = vmatprep.subr.mxu0 0.0
    %1360 = vmatpush1.msra.mxu0 %v962
    %1361 = vmatprep.subr.mxu0 0.0
    %1362 = vmatpush1.msra.mxu0 %v963
    %1363 = vmatprep.subr.mxu0 0.0
    %1364 = vmatpush1.msra.mxu0 %v964
    %1365 = vmatprep.subr.mxu0 0.0
    %1366 = vmatpush1.msra.mxu0 %v965
    %1367 = vmatprep.subr.mxu0 0.0
    %1368 = vmatpush1.msra.mxu0 %v966
    %1369 = vmatprep.mubr.f32.mxu0 %v695
    %1370 = vmatmul.mubr.f32.gmra.mrb[0].mxu0 %v68
    %v1371 = vpop.f32.mrb[0].mxu0
    %v1372 = vadd.f32 %v1227, %v1371
    %v1373 = vpop.f32.mrb[0].mxu0
    %1374 = vmatprep.mubr.f32.mxu0 %v696
    %1375 = vmatmul.mubr.f32.gmra.mrb[0].mxu0 %v69
    %v1376 = vpop.f32.mrb[0].mxu0
    %v1377 = vadd.f32 %v1232, %v1376
    %v1378 = vpop.f32.mrb[0].mxu0
    %1379 = vmatprep.mubr.f32.mxu0 %v697
    %1380 = vmatmul.mubr.f32.gmra.mrb[0].mxu0 %v70
    %v1381 = vpop.f32.mrb[0].mxu0
    %v1382 = vadd.f32 %v1237, %v1381
    %v1383 = vpop.f32.mrb[0].mxu0
    %1384 = vmatprep.mubr.f32.mxu0 %v698
    %1385 = vmatmul.mubr.f32.gmra.mrb[0].mxu0 %v71
    %v1386 = vpop.f32.mrb[0].mxu0
    %v1387 = vadd.f32 %v1242, %v1386
    %v1388 = vpop.f32.mrb[0].mxu0
    %1389 = vmatprep.mubr.f32.mxu0 %v699
    %1390 = vmatmul.mubr.f32.gmra.mrb[0].mxu0 %v72
    %v1391 = vpop.f32.mrb[0].mxu0
    %v1392 = vadd.f32 %v1247, %v1391
    %v1393 = vpop.f32.mrb[0].mxu0
    %1394 = vmatprep.mubr.f32.mxu0 %v700
    %1395 = vmatmul.mubr.f32.gmra.mrb[0].mxu0 %v73
    %v1396 = vpop.f32.mrb[0].mxu0
    %v1397 = vadd.f32 %v1252, %v1396
    %v1398 = vpop.f32.mrb[0].mxu0
    %1399 = vmatprep.mubr.f32.mxu0 %v701
    %1400 = vmatmul.mubr.f32.gmra.mrb[0].mxu0 %v74
    %v1401 = vpop.f32.mrb[0].mxu0
    %v1402 = vadd.f32 %v1257, %v1401
    %v1403 = vpop.f32.mrb[0].mxu0
    %1404 = vmatprep.mubr.f32.mxu0 %v702
    %1405 = vmatmul.mubr.f32.gmra.mrb[0].mxu0 %v75
    %v1406 = vpop.f32.mrb[0].mxu0
    %v1407 = vadd.f32 %v1262, %v1406
    %v1408 = vpop.f32.mrb[0].mxu0
    %1409 = vmatprep.mubr.f32.mxu0 %v703
    %1410 = vmatmul.mubr.f32.gmra.mrb[0].mxu0 %v76
    %v1411 = vpop.f32.mrb[0].mxu0
    %v1412 = vadd.f32 %v1267, %v1411
    %v1413 = vpop.f32.mrb[0].mxu0
    %1414 = vmatprep.mubr.f32.mxu0 %v704
    %1415 = vmatmul.mubr.f32.gmra.mrb[0].mxu0 %v77
    %v1416 = vpop.f32.mrb[0].mxu0
    %v1417 = vadd.f32 %v1272, %v1416
    %v1418 = vpop.f32.mrb[0].mxu0
    %1419 = vmatprep.mubr.f32.mxu0 %v705
    %1420 = vmatmul.mubr.f32.gmra.mrb[0].mxu0 %v78
    %v1421 = vpop.f32.mrb[0].mxu0
    %v1422 = vadd.f32 %v1277, %v1421
    %v1423 = vpop.f32.mrb[0].mxu0
    %1424 = vmatprep.mubr.f32.mxu0 %v706
    %1425 = vmatmul.mubr.f32.gmra.mrb[0].mxu0 %v79
    %v1426 = vpop.f32.mrb[0].mxu0
    %v1427 = vadd.f32 %v1282, %v1426
    %v1428 = vpop.f32.mrb[0].mxu0
    %1429 = vmatprep.mubr.f32.mxu0 %v707
    %1430 = vmatmul.mubr.f32.gmra.mrb[0].mxu0 %v80
    %v1431 = vpop.f32.mrb[0].mxu0
    %v1432 = vadd.f32 %v1287, %v1431
    %v1433 = vpop.f32.mrb[0].mxu0
    %1434 = vmatprep.mubr.f32.mxu0 %v708
    %1435 = vmatmul.mubr.f32.gmra.mrb[0].mxu0 %v81
    %v1436 = vpop.f32.mrb[0].mxu0
    %v1437 = vadd.f32 %v1292, %v1436
    %v1438 = vpop.f32.mrb[0].mxu0
    %1439 = vmatprep.mubr.f32.mxu0 %v709
    %1440 = vmatmul.mubr.f32.gmra.mrb[0].mxu0 %v82
    %v1441 = vpop.f32.mrb[0].mxu0
    %v1442 = vadd.f32 %v1297, %v1441
    %v1443 = vpop.f32.mrb[0].mxu0
    %1444 = vmatprep.mubr.f32.mxu0 %v710
    %1445 = vmatmul.mubr.f32.gmra.mrb[0].mxu0 %v83
    %v1446 = vpop.f32.mrb[0].mxu0
    %v1447 = vadd.f32 %v1302, %v1446
    %v1448 = vpop.f32.mrb[0].mxu0
    %1449 = vdwg.mxu0
    %1450 = vmatprep.subr.mxu0 0.0
    %1451 = vmatpush1.msra.mxu0 %v967
    %1452 = vmatprep.subr.mxu0 0.0
    %1453 = vmatpush1.msra.mxu0 %v968
    %1454 = vmatprep.subr.mxu0 0.0
    %1455 = vmatpush1.msra.mxu0 %v969
    %1456 = vmatprep.subr.mxu0 0.0
    %1457 = vmatpush1.msra.mxu0 %v970
    %1458 = vmatprep.subr.mxu0 0.0
    %1459 = vmatpush1.msra.mxu0 %v971
    %1460 = vmatprep.subr.mxu0 0.0
    %1461 = vmatpush1.msra.mxu0 %v972
    %1462 = vmatprep.subr.mxu0 0.0
    %1463 = vmatpush1.msra.mxu0 %v973
    %1464 = vmatprep.subr.mxu0 0.0
    %1465 = vmatpush1.msra.mxu0 %v974
    %1466 = vmatprep.subr.mxu0 0.0
    %1467 = vmatpush1.msra.mxu0 %v975
    %1468 = vmatprep.subr.mxu0 0.0
    %1469 = vmatpush1.msra.mxu0 %v976
    %1470 = vmatprep.subr.mxu0 0.0
    %1471 = vmatpush1.msra.mxu0 %v977
    %1472 = vmatprep.subr.mxu0 0.0
    %1473 = vmatpush1.msra.mxu0 %v978
    %1474 = vmatprep.subr.mxu0 0.0
    %1475 = vmatpush1.msra.mxu0 %v979
    %1476 = vmatprep.subr.mxu0 0.0
    %1477 = vmatpush1.msra.mxu0 %v980
    %1478 = vmatprep.subr.mxu0 0.0
    %1479 = vmatpush1.msra.mxu0 %v981
    %1480 = vmatprep.subr.mxu0 0.0
    %1481 = vmatpush1.msra.mxu0 %v982
    %1482 = vmatprep.subr.mxu0 0.0
    %1483 = vmatpush1.msra.mxu0 %v983
    %1484 = vmatprep.subr.mxu0 0.0
    %1485 = vmatpush1.msra.mxu0 %v984
    %1486 = vmatprep.subr.mxu0 0.0
    %1487 = vmatpush1.msra.mxu0 %v985
    %1488 = vmatprep.subr.mxu0 0.0
    %1489 = vmatpush1.msra.mxu0 %v986
    %1490 = vmatprep.subr.mxu0 0.0
    %1491 = vmatpush1.msra.mxu0 %v987
    %1492 = vmatprep.subr.mxu0 0.0
    %1493 = vmatpush1.msra.mxu0 %v988
    %1494 = vmatprep.subr.mxu0 0.0
    %1495 = vmatpush1.msra.mxu0 %v989
    %1496 = vmatprep.subr.mxu0 0.0
    %1497 = vmatpush1.msra.mxu0 %v990
    %1498 = vmatprep.subr.mxu0 0.0
    %1499 = vmatpush1.msra.mxu0 %v991
    %1500 = vmatprep.subr.mxu0 0.0
    %1501 = vmatpush1.msra.mxu0 %v992
    %1502 = vmatprep.subr.mxu0 0.0
    %1503 = vmatpush1.msra.mxu0 %v993
    %1504 = vmatprep.subr.mxu0 0.0
    %1505 = vmatpush1.msra.mxu0 %v994
    %1506 = vmatprep.subr.mxu0 0.0
    %1507 = vmatpush1.msra.mxu0 %v995
    %1508 = vmatprep.subr.mxu0 0.0
    %1509 = vmatpush1.msra.mxu0 %v996
    %1510 = vmatprep.subr.mxu0 0.0
    %1511 = vmatpush1.msra.mxu0 %v997
    %1512 = vmatprep.subr.mxu0 0.0
    %1513 = vmatpush1.msra.mxu0 %v998
    %1514 = vmatprep.mubr.f32.mxu0 %v839
    %1515 = vmatmul.mubr.f32.gmra.mrb[0].mxu0 %v823
    %v1516 = vpop.f32.mrb[0].mxu0
    %v1517 = vadd.f32 %v1372, %v1516
    %v1518 = vpop.f32.mrb[0].mxu0
    %1519 = vmatprep.mubr.f32.mxu0 %v840
    %1520 = vmatmul.mubr.f32.gmra.mrb[0].mxu0 %v824
    %v1521 = vpop.f32.mrb[0].mxu0
    %v1522 = vadd.f32 %v1377, %v1521
    %v1523 = vpop.f32.mrb[0].mxu0
    %1524 = vmatprep.mubr.f32.mxu0 %v841
    %1525 = vmatmul.mubr.f32.gmra.mrb[0].mxu0 %v825
    %v1526 = vpop.f32.mrb[0].mxu0
    %v1527 = vadd.f32 %v1382, %v1526
    %v1528 = vpop.f32.mrb[0].mxu0
    %1529 = vmatprep.mubr.f32.mxu0 %v842
    %1530 = vmatmul.mubr.f32.gmra.mrb[0].mxu0 %v826
    %v1531 = vpop.f32.mrb[0].mxu0
    %v1532 = vadd.f32 %v1387, %v1531
    %v1533 = vpop.f32.mrb[0].mxu0
    %1534 = vmatprep.mubr.f32.mxu0 %v843
    %1535 = vmatmul.mubr.f32.gmra.mrb[0].mxu0 %v827
    %v1536 = vpop.f32.mrb[0].mxu0
    %v1537 = vadd.f32 %v1392, %v1536
    %v1538 = vpop.f32.mrb[0].mxu0
    %1539 = vmatprep.mubr.f32.mxu0 %v844
    %1540 = vmatmul.mubr.f32.gmra.mrb[0].mxu0 %v828
    %v1541 = vpop.f32.mrb[0].mxu0
    %v1542 = vadd.f32 %v1397, %v1541
    %v1543 = vpop.f32.mrb[0].mxu0
    %1544 = vmatprep.mubr.f32.mxu0 %v845
    %1545 = vmatmul.mubr.f32.gmra.mrb[0].mxu0 %v829
    %v1546 = vpop.f32.mrb[0].mxu0
    %v1547 = vadd.f32 %v1402, %v1546
    %v1548 = vpop.f32.mrb[0].mxu0
    %1549 = vmatprep.mubr.f32.mxu0 %v846
    %1550 = vmatmul.mubr.f32.gmra.mrb[0].mxu0 %v830
    %v1551 = vpop.f32.mrb[0].mxu0
    %v1552 = vadd.f32 %v1407, %v1551
    %v1553 = vpop.f32.mrb[0].mxu0
    %1554 = vmatprep.mubr.f32.mxu0 %v847
    %1555 = vmatmul.mubr.f32.gmra.mrb[0].mxu0 %v831
    %v1556 = vpop.f32.mrb[0].mxu0
    %v1557 = vadd.f32 %v1412, %v1556
    %v1558 = vpop.f32.mrb[0].mxu0
    %1559 = vmatprep.mubr.f32.mxu0 %v848
    %1560 = vmatmul.mubr.f32.gmra.mrb[0].mxu0 %v832
    %v1561 = vpop.f32.mrb[0].mxu0
    %v1562 = vadd.f32 %v1417, %v1561
    %v1563 = vpop.f32.mrb[0].mxu0
    %1564 = vmatprep.mubr.f32.mxu0 %v849
    %1565 = vmatmul.mubr.f32.gmra.mrb[0].mxu0 %v833
    %v1566 = vpop.f32.mrb[0].mxu0
    %v1567 = vadd.f32 %v1422, %v1566
    %v1568 = vpop.f32.mrb[0].mxu0
    %1569 = vmatprep.mubr.f32.mxu0 %v850
    %1570 = vmatmul.mubr.f32.gmra.mrb[0].mxu0 %v834
    %v1571 = vpop.f32.mrb[0].mxu0
    %v1572 = vadd.f32 %v1427, %v1571
    %v1573 = vpop.f32.mrb[0].mxu0
    %1574 = vmatprep.mubr.f32.mxu0 %v851
    %1575 = vmatmul.mubr.f32.gmra.mrb[0].mxu0 %v835
    %v1576 = vpop.f32.mrb[0].mxu0
    %v1577 = vadd.f32 %v1432, %v1576
    %v1578 = vpop.f32.mrb[0].mxu0
    %1579 = vmatprep.mubr.f32.mxu0 %v852
    %1580 = vmatmul.mubr.f32.gmra.mrb[0].mxu0 %v836
    %v1581 = vpop.f32.mrb[0].mxu0
    %v1582 = vadd.f32 %v1437, %v1581
    %v1583 = vpop.f32.mrb[0].mxu0
    %1584 = vmatprep.mubr.f32.mxu0 %v853
    %1585 = vmatmul.mubr.f32.gmra.mrb[0].mxu0 %v837
    %v1586 = vpop.f32.mrb[0].mxu0
    %v1587 = vadd.f32 %v1442, %v1586
    %v1588 = vpop.f32.mrb[0].mxu0
    %1589 = vmatprep.mubr.f32.mxu0 %v854
    %1590 = vmatmul.mubr.f32.gmra.mrb[0].mxu0 %v838
    %v1591 = vpop.f32.mrb[0].mxu0
    %v1592 = vadd.f32 %v1447, %v1591
    %v1593 = vpop.f32.mrb[0].mxu0
    %1594 = vdwg.mxu0
    %1595 = vmatprep.subr.mxu0 0.0
    %1596 = vmatpush1.msra.mxu0 %v999
    %1597 = vmatprep.subr.mxu0 0.0
    %1598 = vmatpush1.msra.mxu0 %v1000
    %1599 = vmatprep.subr.mxu0 0.0
    %1600 = vmatpush1.msra.mxu0 %v1001
    %1601 = vmatprep.subr.mxu0 0.0
    %1602 = vmatpush1.msra.mxu0 %v1002
    %1603 = vmatprep.subr.mxu0 0.0
    %1604 = vmatpush1.msra.mxu0 %v1003
    %1605 = vmatprep.subr.mxu0 0.0
    %1606 = vmatpush1.msra.mxu0 %v1004
    %1607 = vmatprep.subr.mxu0 0.0
    %1608 = vmatpush1.msra.mxu0 %v1005
    %1609 = vmatprep.subr.mxu0 0.0
    %1610 = vmatpush1.msra.mxu0 %v1006
    %1611 = vmatprep.subr.mxu0 0.0
    %1612 = vmatpush1.msra.mxu0 %v1007
    %1613 = vmatprep.subr.mxu0 0.0
    %1614 = vmatpush1.msra.mxu0 %v1008
    %1615 = vmatprep.subr.mxu0 0.0
    %1616 = vmatpush1.msra.mxu0 %v1009
    %1617 = vmatprep.subr.mxu0 0.0
    %1618 = vmatpush1.msra.mxu0 %v1010
    %1619 = vmatprep.subr.mxu0 0.0
    %1620 = vmatpush1.msra.mxu0 %v1011
    %1621 = vmatprep.subr.mxu0 0.0
    %1622 = vmatpush1.msra.mxu0 %v1012
    %1623 = vmatprep.subr.mxu0 0.0
    %1624 = vmatpush1.msra.mxu0 %v1013
    %1625 = vmatprep.subr.mxu0 0.0
    %1626 = vmatpush1.msra.mxu0 %v1014
    %1627 = vmatprep.subr.mxu0 0.0
    %1628 = vmatpush1.msra.mxu0 0.0
    %1629 = vmatprep.subr.mxu0 0.0
    %1630 = vmatpush1.msra.mxu0 0.0
    %1631 = vmatprep.subr.mxu0 0.0
    %1632 = vmatpush1.msra.mxu0 0.0
    %1633 = vmatprep.subr.mxu0 0.0
    %1634 = vmatpush1.msra.mxu0 0.0
    %1635 = vmatprep.subr.mxu0 0.0
    %1636 = vmatpush1.msra.mxu0 0.0
    %1637 = vmatprep.subr.mxu0 0.0
    %1638 = vmatpush1.msra.mxu0 0.0
    %1639 = vmatprep.subr.mxu0 0.0
    %1640 = vmatpush1.msra.mxu0 0.0
    %1641 = vmatprep.subr.mxu0 0.0
    %1642 = vmatpush1.msra.mxu0 0.0
    %1643 = vmatprep.subr.mxu0 0.0
    %1644 = vmatpush1.msra.mxu0 0.0
    %1645 = vmatprep.subr.mxu0 0.0
    %1646 = vmatpush1.msra.mxu0 0.0
    %1647 = vmatprep.subr.mxu0 0.0
    %1648 = vmatpush1.msra.mxu0 0.0
    %1649 = vmatprep.subr.mxu0 0.0
    %1650 = vmatpush1.msra.mxu0 0.0
    %1651 = vmatprep.subr.mxu0 0.0
    %1652 = vmatpush1.msra.mxu0 0.0
    %1653 = vmatprep.subr.mxu0 0.0
    %1654 = vmatpush1.msra.mxu0 0.0
    %1655 = vmatprep.subr.mxu0 0.0
    %1656 = vmatpush1.msra.mxu0 0.0
    %1657 = vmatprep.subr.mxu0 0.0
    %1658 = vmatpush1.msra.mxu0 0.0
    %1659 = vmatprep.mubr.f32.mxu0 0.0
    %1660 = vmatmul.mubr.f32.gmra.mrb[0].mxu0 %v855
    %v1661 = vpop.f32.mrb[0].mxu0
    %v1662 = vadd.f32 %v1517, %v1661
    %v1663 = vpop.f32.mrb[0].mxu0
    %1664 = vmatprep.mubr.f32.mxu0 0.0
    %1665 = vmatmul.mubr.f32.gmra.mrb[0].mxu0 %v856
    %v1666 = vpop.f32.mrb[0].mxu0
    %v1667 = vadd.f32 %v1522, %v1666
    %v1668 = vpop.f32.mrb[0].mxu0
    %1669 = vmatprep.mubr.f32.mxu0 0.0
    %1670 = vmatmul.mubr.f32.gmra.mrb[0].mxu0 %v857
    %v1671 = vpop.f32.mrb[0].mxu0
    %v1672 = vadd.f32 %v1527, %v1671
    %v1673 = vpop.f32.mrb[0].mxu0
    %1674 = vmatprep.mubr.f32.mxu0 0.0
    %1675 = vmatmul.mubr.f32.gmra.mrb[0].mxu0 %v858
    %v1676 = vpop.f32.mrb[0].mxu0
    %v1677 = vadd.f32 %v1532, %v1676
    %v1678 = vpop.f32.mrb[0].mxu0
    %1679 = vmatprep.mubr.f32.mxu0 0.0
    %1680 = vmatmul.mubr.f32.gmra.mrb[0].mxu0 %v859
    %v1681 = vpop.f32.mrb[0].mxu0
    %v1682 = vadd.f32 %v1537, %v1681
    %v1683 = vpop.f32.mrb[0].mxu0
    %1684 = vmatprep.mubr.f32.mxu0 0.0
    %1685 = vmatmul.mubr.f32.gmra.mrb[0].mxu0 %v860
    %v1686 = vpop.f32.mrb[0].mxu0
    %v1687 = vadd.f32 %v1542, %v1686
    %v1688 = vpop.f32.mrb[0].mxu0
    %1689 = vmatprep.mubr.f32.mxu0 0.0
    %1690 = vmatmul.mubr.f32.gmra.mrb[0].mxu0 %v861
    %v1691 = vpop.f32.mrb[0].mxu0
    %v1692 = vadd.f32 %v1547, %v1691
    %v1693 = vpop.f32.mrb[0].mxu0
    %1694 = vmatprep.mubr.f32.mxu0 0.0
    %1695 = vmatmul.mubr.f32.gmra.mrb[0].mxu0 %v862
    %v1696 = vpop.f32.mrb[0].mxu0
    %v1697 = vadd.f32 %v1552, %v1696
    %v1698 = vpop.f32.mrb[0].mxu0
    %1699 = vmatprep.mubr.f32.mxu0 0.0
    %1700 = vmatmul.mubr.f32.gmra.mrb[0].mxu0 %v863
    %v1701 = vpop.f32.mrb[0].mxu0
    %v1702 = vadd.f32 %v1557, %v1701
    %v1703 = vpop.f32.mrb[0].mxu0
    %1704 = vmatprep.mubr.f32.mxu0 0.0
    %1705 = vmatmul.mubr.f32.gmra.mrb[0].mxu0 %v864
    %v1706 = vpop.f32.mrb[0].mxu0
    %v1707 = vadd.f32 %v1562, %v1706
    %v1708 = vpop.f32.mrb[0].mxu0
    %1709 = vmatprep.mubr.f32.mxu0 0.0
    %1710 = vmatmul.mubr.f32.gmra.mrb[0].mxu0 %v865
    %v1711 = vpop.f32.mrb[0].mxu0
    %v1712 = vadd.f32 %v1567, %v1711
    %v1713 = vpop.f32.mrb[0].mxu0
    %1714 = vmatprep.mubr.f32.mxu0 0.0
    %1715 = vmatmul.mubr.f32.gmra.mrb[0].mxu0 %v866
    %v1716 = vpop.f32.mrb[0].mxu0
    %v1717 = vadd.f32 %v1572, %v1716
    %v1718 = vpop.f32.mrb[0].mxu0
    %1719 = vmatprep.mubr.f32.mxu0 0.0
    %1720 = vmatmul.mubr.f32.gmra.mrb[0].mxu0 %v867
    %v1721 = vpop.f32.mrb[0].mxu0
    %v1722 = vadd.f32 %v1577, %v1721
    %v1723 = vpop.f32.mrb[0].mxu0
    %1724 = vmatprep.mubr.f32.mxu0 0.0
    %1725 = vmatmul.mubr.f32.gmra.mrb[0].mxu0 %v868
    %v1726 = vpop.f32.mrb[0].mxu0
    %v1727 = vadd.f32 %v1582, %v1726
    %v1728 = vpop.f32.mrb[0].mxu0
    %1729 = vmatprep.mubr.f32.mxu0 0.0
    %1730 = vmatmul.mubr.f32.gmra.mrb[0].mxu0 %v869
    %v1731 = vpop.f32.mrb[0].mxu0
    %v1732 = vadd.f32 %v1587, %v1731
    %v1733 = vpop.f32.mrb[0].mxu0
    %1734 = vmatprep.mubr.f32.mxu0 0.0
    %1735 = vmatmul.mubr.f32.gmra.mrb[0].mxu0 %v870
    %v1736 = vpop.f32.mrb[0].mxu0
    %v1737 = vadd.f32 %v1592, %v1736
    %v1738 = vpop.f32.mrb[0].mxu0
    %1739 = vdwg.mxu0
    %v1740 = vld [vmem:[%s2] sm:$0x1]
    %v1741 = vld [vmem:[%s3] sm:$0x1]
    %v1742 = vadd.f32 %v1662, %v1667
    %v1743 = vadd.f32 %v1742, %v1672
    %v1744 = vadd.f32 %v1743, %v1677
    %v1745 = vadd.f32 %v1744, %v1682
    %v1746 = vadd.f32 %v1745, %v1687
    %v1747 = vadd.f32 %v1746, %v1692
    %v1748 = vadd.f32 %v1747, %v1697
    %v1749 = vadd.f32 %v1748, %v1702
    %v1750 = vadd.f32 %v1749, %v1707
    %v1751 = vadd.f32 %v1750, %v1712
    %v1752 = vadd.f32 %v1751, %v1717
    %v1753 = vadd.f32 %v1752, %v1722
    %v1754 = vadd.f32 %v1753, %v1727
    %v1755 = vadd.f32 %v1754, %v1732
    %v1756 = vadd.f32 %v1755, %v1737
    %v1757 = vrot.slane %v1756, 4
    %v1758 = vadd.f32 %v1756, %v1757
    %v1759 = vrot.slane %v1758, 2
    %v1760 = vadd.f32 %v1758, %v1759
    %v1761 = vrot.slane %v1760, 1
    %v1762 = vadd.f32 %v1760, %v1761
    %v1763 = vrcp.pop 128.0
    %v1764 = vmul.f32 %v1762, %v1763
    %v1765 = vsub.f32 %v1662, %v1764
    %v1766 = vsub.f32 %v1667, %v1764
    %v1767 = vsub.f32 %v1672, %v1764
    %v1768 = vsub.f32 %v1677, %v1764
    %v1769 = vsub.f32 %v1682, %v1764
    %v1770 = vsub.f32 %v1687, %v1764
    %v1771 = vsub.f32 %v1692, %v1764
    %v1772 = vsub.f32 %v1697, %v1764
    %v1773 = vsub.f32 %v1702, %v1764
    %v1774 = vsub.f32 %v1707, %v1764
    %v1775 = vsub.f32 %v1712, %v1764
    %v1776 = vsub.f32 %v1717, %v1764
    %v1777 = vsub.f32 %v1722, %v1764
    %v1778 = vsub.f32 %v1727, %v1764
    %v1779 = vsub.f32 %v1732, %v1764
    %v1780 = vsub.f32 %v1737, %v1764
    %v1781 = vmul.f32 %v1765, %v1765
    %v1782 = vmul.f32 %v1766, %v1766
    %v1783 = vmul.f32 %v1767, %v1767
    %v1784 = vmul.f32 %v1768, %v1768
    %v1785 = vmul.f32 %v1769, %v1769
    %v1786 = vmul.f32 %v1770, %v1770
    %v1787 = vmul.f32 %v1771, %v1771
    %v1788 = vmul.f32 %v1772, %v1772
    %v1789 = vmul.f32 %v1773, %v1773
    %v1790 = vmul.f32 %v1774, %v1774
    %v1791 = vmul.f32 %v1775, %v1775
    %v1792 = vmul.f32 %v1776, %v1776
    %v1793 = vmul.f32 %v1777, %v1777
    %v1794 = vmul.f32 %v1778, %v1778
    %v1795 = vmul.f32 %v1779, %v1779
    %v1796 = vmul.f32 %v1780, %v1780
    %v1797 = vadd.f32 %v1781, %v1782
    %v1798 = vadd.f32 %v1797, %v1783
    %v1799 = vadd.f32 %v1798, %v1784
    %v1800 = vadd.f32 %v1799, %v1785
    %v1801 = vadd.f32 %v1800, %v1786
    %v1802 = vadd.f32 %v1801, %v1787
    %v1803 = vadd.f32 %v1802, %v1788
    %v1804 = vadd.f32 %v1803, %v1789
    %v1805 = vadd.f32 %v1804, %v1790
    %v1806 = vadd.f32 %v1805, %v1791
    %v1807 = vadd.f32 %v1806, %v1792
    %v1808 = vadd.f32 %v1807, %v1793
    %v1809 = vadd.f32 %v1808, %v1794
    %v1810 = vadd.f32 %v1809, %v1795
    %v1811 = vadd.f32 %v1810, %v1796
    %v1812 = vrot.slane %v1811, 4
    %v1813 = vadd.f32 %v1811, %v1812
    %v1814 = vrot.slane %v1813, 2
    %v1815 = vadd.f32 %v1813, %v1814
    %v1816 = vrot.slane %v1815, 1
    %v1817 = vadd.f32 %v1815, %v1816
    %v1818 = vmul.f32 %v1817, %v1763
    %v1819 = vadd.f32 %v1818, 1e-05
    %v1820 = vrsqrt.pop %v1819
    %v1821 = vmul.f32 %v1740, %v1820
    %v1823 = vlaneseq
    %v1824 = vshrl.u32 %v1823, 7
    %v1825 = vsub.s32 0, %v1824
    %v1826 = vrot.slane %v1821, %v1825
    %v1828 = vmul.f32 %v1765, %v1826
    %v1829 = vmul.f32 %v1766, %v1826
    %v1830 = vmul.f32 %v1767, %v1826
    %v1831 = vmul.f32 %v1768, %v1826
    %v1832 = vmul.f32 %v1769, %v1826
    %v1833 = vmul.f32 %v1770, %v1826
    %v1834 = vmul.f32 %v1771, %v1826
    %v1835 = vmul.f32 %v1772, %v1826
    %v1836 = vmul.f32 %v1773, %v1826
    %v1837 = vmul.f32 %v1774, %v1826
    %v1838 = vmul.f32 %v1775, %v1826
    %v1839 = vmul.f32 %v1776, %v1826
    %v1840 = vmul.f32 %v1777, %v1826
    %v1841 = vmul.f32 %v1778, %v1826
    %v1842 = vmul.f32 %v1779, %v1826
    %v1843 = vmul.f32 %v1780, %v1826
    %v1845 = vlaneseq
    %v1846 = vshrl.u32 %v1845, 7
    %v1847 = vsub.s32 0, %v1846
    %v1848 = vrot.slane %v1741, %v1847
    %v1850 = vadd.f32 %v1828, %v1848
    %v1851 = vadd.f32 %v1829, %v1848
    %v1852 = vadd.f32 %v1830, %v1848
    %v1853 = vadd.f32 %v1831, %v1848
    %v1854 = vadd.f32 %v1832, %v1848
    %v1855 = vadd.f32 %v1833, %v1848
    %v1856 = vadd.f32 %v1834, %v1848
    %v1857 = vadd.f32 %v1835, %v1848
    %v1858 = vadd.f32 %v1836, %v1848
    %v1859 = vadd.f32 %v1837, %v1848
    %v1860 = vadd.f32 %v1838, %v1848
    %v1861 = vadd.f32 %v1839, %v1848
    %v1862 = vadd.f32 %v1840, %v1848
    %v1863 = vadd.f32 %v1841, %v1848
    %v1864 = vadd.f32 %v1842, %v1848
    %v1865 = vadd.f32 %v1843, %v1848
    %vm1866 = vcmp.ge.f32.partialorder %v1850, 0.0
    %vm1867 = vcmp.ge.f32.partialorder %v1851, 0.0
    %vm1868 = vcmp.ge.f32.partialorder %v1852, 0.0
    %vm1869 = vcmp.ge.f32.partialorder %v1853, 0.0
    %vm1870 = vcmp.ge.f32.partialorder %v1854, 0.0
    %vm1871 = vcmp.ge.f32.partialorder %v1855, 0.0
    %vm1872 = vcmp.ge.f32.partialorder %v1856, 0.0
    %vm1873 = vcmp.ge.f32.partialorder %v1857, 0.0
    %vm1874 = vcmp.ge.f32.partialorder %v1858, 0.0
    %vm1875 = vcmp.ge.f32.partialorder %v1859, 0.0
    %vm1876 = vcmp.ge.f32.partialorder %v1860, 0.0
    %vm1877 = vcmp.ge.f32.partialorder %v1861, 0.0
    %vm1878 = vcmp.ge.f32.partialorder %v1862, 0.0
    %vm1879 = vcmp.ge.f32.partialorder %v1863, 0.0
    %vm1880 = vcmp.ge.f32.partialorder %v1864, 0.0
    %vm1881 = vcmp.ge.f32.partialorder %v1865, 0.0
    %v1882 = vmul.f32 %v1850, 0.2
    %v1883 = vmul.f32 %v1851, 0.2
    %v1884 = vmul.f32 %v1852, 0.2
    %v1885 = vmul.f32 %v1853, 0.2
    %v1886 = vmul.f32 %v1854, 0.2
    %v1887 = vmul.f32 %v1855, 0.2
    %v1888 = vmul.f32 %v1856, 0.2
    %v1889 = vmul.f32 %v1857, 0.2
    %v1890 = vmul.f32 %v1858, 0.2
    %v1891 = vmul.f32 %v1859, 0.2
    %v1892 = vmul.f32 %v1860, 0.2
    %v1893 = vmul.f32 %v1861, 0.2
    %v1894 = vmul.f32 %v1862, 0.2
    %v1895 = vmul.f32 %v1863, 0.2
    %v1896 = vmul.f32 %v1864, 0.2
    %v1897 = vmul.f32 %v1865, 0.2
    %v1898 = vsel %vm1866, %v1850, %v1882
    %v1899 = vsel %vm1867, %v1851, %v1883
    %v1900 = vsel %vm1868, %v1852, %v1884
    %v1901 = vsel %vm1869, %v1853, %v1885
    %v1902 = vsel %vm1870, %v1854, %v1886
    %v1903 = vsel %vm1871, %v1855, %v1887
    %v1904 = vsel %vm1872, %v1856, %v1888
    %v1905 = vsel %vm1873, %v1857, %v1889
    %v1906 = vsel %vm1874, %v1858, %v1890
    %v1907 = vsel %vm1875, %v1859, %v1891
    %v1908 = vsel %vm1876, %v1860, %v1892
    %v1909 = vsel %vm1877, %v1861, %v1893
    %v1910 = vsel %vm1878, %v1862, %v1894
    %v1911 = vsel %vm1879, %v1863, %v1895
    %v1912 = vsel %vm1880, %v1864, %v1896
    %v1913 = vsel %vm1881, %v1865, %v1897
    %v1914 = vrot.slane %v1898, 7
    %v1915 = vrot.slane %v1899, 7
    %v1916 = vrot.slane %v1900, 7
    %v1917 = vrot.slane %v1901, 7
    %v1918 = vrot.slane %v1902, 7
    %v1919 = vrot.slane %v1903, 7
    %v1920 = vrot.slane %v1904, 7
    %v1921 = vrot.slane %v1905, 7
    %v1922 = vrot.slane %v1906, 7
    %v1923 = vrot.slane %v1907, 7
    %v1924 = vrot.slane %v1908, 7
    %v1925 = vrot.slane %v1909, 7
    %v1926 = vrot.slane %v1910, 7
    %v1927 = vrot.slane %v1911, 7
    %v1928 = vrot.slane %v1912, 7
    %v1929 = vrot.slane %v1913, 7
    %v1930 = vsel %vm565, %v1928, %v1929
    %v1931 = vsel %vm565, %v1927, %v1928
    %v1932 = vsel %vm565, %v1926, %v1927
    %v1933 = vsel %vm565, %v1925, %v1926
    %v1934 = vsel %vm565, %v1924, %v1925
    %v1935 = vsel %vm565, %v1923, %v1924
    %v1936 = vsel %vm565, %v1922, %v1923
    %v1937 = vsel %vm565, %v1921, %v1922
    %v1938 = vsel %vm565, %v1920, %v1921
    %v1939 = vsel %vm565, %v1919, %v1920
    %v1940 = vsel %vm565, %v1918, %v1919
    %v1941 = vsel %vm565, %v1917, %v1918
    %v1942 = vsel %vm565, %v1916, %v1917
    %v1943 = vsel %vm565, %v1915, %v1916
    %v1944 = vsel %vm565, %v1914, %v1915
    %v1945 = vsel %vm565, %v1929, %v1914
    %v1946 = vsel %vm598, %v1898, %v1945
    %v1947 = vsel %vm599, %v1899, %v1944
    %v1948 = vsel %vm600, %v1900, %v1943
    %v1949 = vsel %vm601, %v1901, %v1942
    %v1950 = vsel %vm602, %v1902, %v1941
    %v1951 = vsel %vm603, %v1903, %v1940
    %v1952 = vsel %vm604, %v1904, %v1939
    %v1953 = vsel %vm605, %v1905, %v1938
    %v1954 = vsel %vm606, %v1906, %v1937
    %v1955 = vsel %vm607, %v1907, %v1936
    %v1956 = vsel %vm608, %v1908, %v1935
    %v1957 = vsel %vm609, %v1909, %v1934
    %v1958 = vsel %vm610, %v1910, %v1933
    %v1959 = vsel %vm611, %v1911, %v1932
    %v1960 = vsel %vm612, %v1912, %v1931
    %v1961 = vsel %vm613, %v1913, %v1930
    %v1962 = vrot.slane %v1898, 1
    %v1963 = vrot.slane %v1899, 1
    %v1964 = vrot.slane %v1900, 1
    %v1965 = vrot.slane %v1901, 1
    %v1966 = vrot.slane %v1902, 1
    %v1967 = vrot.slane %v1903, 1
    %v1968 = vrot.slane %v1904, 1
    %v1969 = vrot.slane %v1905, 1
    %v1970 = vrot.slane %v1906, 1
    %v1971 = vrot.slane %v1907, 1
    %v1972 = vrot.slane %v1908, 1
    %v1973 = vrot.slane %v1909, 1
    %v1974 = vrot.slane %v1910, 1
    %v1975 = vrot.slane %v1911, 1
    %v1976 = vrot.slane %v1912, 1
    %v1977 = vrot.slane %v1913, 1
    %v1978 = vsel %vm646, %v1976, %v1977
    %v1979 = vsel %vm646, %v1975, %v1976
    %v1980 = vsel %vm646, %v1974, %v1975
    %v1981 = vsel %vm646, %v1973, %v1974
    %v1982 = vsel %vm646, %v1972, %v1973
    %v1983 = vsel %vm646, %v1971, %v1972
    %v1984 = vsel %vm646, %v1970, %v1971
    %v1985 = vsel %vm646, %v1969, %v1970
    %v1986 = vsel %vm646, %v1968, %v1969
    %v1987 = vsel %vm646, %v1967, %v1968
    %v1988 = vsel %vm646, %v1966, %v1967
    %v1989 = vsel %vm646, %v1965, %v1966
    %v1990 = vsel %vm646, %v1964, %v1965
    %v1991 = vsel %vm646, %v1963, %v1964
    %v1992 = vsel %vm646, %v1962, %v1963
    %v1993 = vsel %vm646, %v1977, %v1962
    %v1994 = vsel %vm679, %v1898, %v1992
    %v1995 = vsel %vm680, %v1899, %v1991
    %v1996 = vsel %vm681, %v1900, %v1990
    %v1997 = vsel %vm682, %v1901, %v1989
    %v1998 = vsel %vm683, %v1902, %v1988
    %v1999 = vsel %vm684, %v1903, %v1987
    %v2000 = vsel %vm685, %v1904, %v1986
    %v2001 = vsel %vm686, %v1905, %v1985
    %v2002 = vsel %vm687, %v1906, %v1984
    %v2003 = vsel %vm688, %v1907, %v1983
    %v2004 = vsel %vm689, %v1908, %v1982
    %v2005 = vsel %vm690, %v1909, %v1981
    %v2006 = vsel %vm691, %v1910, %v1980
    %v2007 = vsel %vm692, %v1911, %v1979
    %v2008 = vsel %vm693, %v1912, %v1978
    %v2009 = vsel %vm694, %v1913, %v1993
    %v2010 = vsel %vm727, %v1946, %v1961
    %v2011 = vsel %vm728, %v1947, %v1946
    %v2012 = vsel %vm729, %v1948, %v1947
    %v2013 = vsel %vm730, %v1949, %v1948
    %v2014 = vsel %vm731, %v1950, %v1949
    %v2015 = vsel %vm732, %v1951, %v1950
    %v2016 = vsel %vm733, %v1952, %v1951
    %v2017 = vsel %vm734, %v1953, %v1952
    %v2018 = vsel %vm735, %v1954, %v1953
    %v2019 = vsel %vm736, %v1955, %v1954
    %v2020 = vsel %vm737, %v1956, %v1955
    %v2021 = vsel %vm738, %v1957, %v1956
    %v2022 = vsel %vm739, %v1958, %v1957
    %v2023 = vsel %vm740, %v1959, %v1958
    %v2024 = vsel %vm741, %v1960, %v1959
    %v2025 = vsel %vm742, %v1961, %v1960
    %v2026 = vsel %vm727, %v1898, %v1913
    %v2027 = vsel %vm728, %v1899, %v1898
    %v2028 = vsel %vm729, %v1900, %v1899
    %v2029 = vsel %vm730, %v1901, %v1900
    %v2030 = vsel %vm731, %v1902, %v1901
    %v2031 = vsel %vm732, %v1903, %v1902
    %v2032 = vsel %vm733, %v1904, %v1903
    %v2033 = vsel %vm734, %v1905, %v1904
    %v2034 = vsel %vm735, %v1906, %v1905
    %v2035 = vsel %vm736, %v1907, %v1906
    %v2036 = vsel %vm737, %v1908, %v1907
    %v2037 = vsel %vm738, %v1909, %v1908
    %v2038 = vsel %vm739, %v1910, %v1909
    %v2039 = vsel %vm740, %v1911, %v1910
    %v2040 = vsel %vm741, %v1912, %v1911
    %v2041 = vsel %vm742, %v1913, %v1912
    %v2042 = vsel %vm727, %v1994, %v2009
    %v2043 = vsel %vm728, %v1995, %v1994
    %v2044 = vsel %vm729, %v1996, %v1995
    %v2045 = vsel %vm730, %v1997, %v1996
    %v2046 = vsel %vm731, %v1998, %v1997
    %v2047 = vsel %vm732, %v1999, %v1998
    %v2048 = vsel %vm733, %v2000, %v1999
    %v2049 = vsel %vm734, %v2001, %v2000
    %v2050 = vsel %vm735, %v2002, %v2001
    %v2051 = vsel %vm736, %v2003, %v2002
    %v2052 = vsel %vm737, %v2004, %v2003
    %v2053 = vsel %vm738, %v2005, %v2004
    %v2054 = vsel %vm739, %v2006, %v2005
    %v2055 = vsel %vm740, %v2007, %v2006
    %v2056 = vsel %vm741, %v2008, %v2007
    %v2057 = vsel %vm742, %v2009, %v2008
    %v2058 = vsel %vm807, %v1946, %v1947
    %v2059 = vsel %vm808, %v1947, %v1948
    %v2060 = vsel %vm809, %v1948, %v1949
    %v2061 = vsel %vm810, %v1949, %v1950
    %v2062 = vsel %vm811, %v1950, %v1951
    %v2063 = vsel %vm812, %v1951, %v1952
    %v2064 = vsel %vm813, %v1952, %v1953
    %v2065 = vsel %vm814, %v1953, %v1954
    %v2066 = vsel %vm815, %v1954, %v1955
    %v2067 = vsel %vm816, %v1955, %v1956
    %v2068 = vsel %vm817, %v1956, %v1957
    %v2069 = vsel %vm818, %v1957, %v1958
    %v2070 = vsel %vm819, %v1958, %v1959
    %v2071 = vsel %vm820, %v1959, %v1960
    %v2072 = vsel %vm821, %v1960, %v1961
    %v2073 = vsel %vm822, %v1961, %v1946
    %v2074 = vsel %vm807, %v1898, %v1899
    %v2075 = vsel %vm808, %v1899, %v1900
    %v2076 = vsel %vm809, %v1900, %v1901
    %v2077 = vsel %vm810, %v1901, %v1902
    %v2078 = vsel %vm811, %v1902, %v1903
    %v2079 = vsel %vm812, %v1903, %v1904
    %v2080 = vsel %vm813, %v1904, %v1905
    %v2081 = vsel %vm814, %v1905, %v1906
    %v2082 = vsel %vm815, %v1906, %v1907
    %v2083 = vsel %vm816, %v1907, %v1908
    %v2084 = vsel %vm817, %v1908, %v1909
    %v2085 = vsel %vm818, %v1909, %v1910
    %v2086 = vsel %vm819, %v1910, %v1911
    %v2087 = vsel %vm820, %v1911, %v1912
    %v2088 = vsel %vm821, %v1912, %v1913
    %v2089 = vsel %vm822, %v1913, %v1898
    %v2090 = vsel %vm807, %v1994, %v1995
    %v2091 = vsel %vm808, %v1995, %v1996
    %v2092 = vsel %vm809, %v1996, %v1997
    %v2093 = vsel %vm810, %v1997, %v1998
    %v2094 = vsel %vm811, %v1998, %v1999
    %v2095 = vsel %vm812, %v1999, %v2000
    %v2096 = vsel %vm813, %v2000, %v2001
    %v2097 = vsel %vm814, %v2001, %v2002
    %v2098 = vsel %vm815, %v2002, %v2003
    %v2099 = vsel %vm816, %v2003, %v2004
    %v2100 = vsel %vm817, %v2004, %v2005
    %v2101 = vsel %vm818, %v2005, %v2006
    %v2102 = vsel %vm819, %v2006, %v2007
    %v2103 = vsel %vm820, %v2007, %v2008
    %v2104 = vsel %vm821, %v2008, %v2009
    %v2105 = vsel %vm822, %v2009, %v1994
    %v2106 = vld [vmem:[#allocation7] sm:$0xff]
    %v2107 = vld [vmem:[#allocation7 + $0x8] sm:$0xff]
    %v2108 = vld [vmem:[#allocation7 + $0x10] sm:$0xff]
    %v2109 = vld [vmem:[#allocation7 + $0x18] sm:$0xff]
    %v2110 = vld [vmem:[#allocation7 + $0x20] sm:$0xff]
    %v2111 = vld [vmem:[#allocation7 + $0x28] sm:$0xff]
    %v2112 = vld [vmem:[#allocation7 + $0x30] sm:$0xff]
    %v2113 = vld [vmem:[#allocation7 + $0x38] sm:$0xff]
    %v2114 = vld [vmem:[#allocation7 + $0x40] sm:$0xff]
    %v2115 = vld [vmem:[#allocation7 + $0x48] sm:$0xff]
    %v2116 = vld [vmem:[#allocation7 + $0x50] sm:$0xff]
    %v2117 = vld [vmem:[#allocation7 + $0x58] sm:$0xff]
    %v2118 = vld [vmem:[#allocation7 + $0x60] sm:$0xff]
    %v2119 = vld [vmem:[#allocation7 + $0x68] sm:$0xff]
    %v2120 = vld [vmem:[#allocation7 + $0x70] sm:$0xff]
    %v2121 = vld [vmem:[#allocation7 + $0x78] sm:$0xff]
    %v2122 = vld [vmem:[#allocation7 + $0x80] sm:$0xff]
    %v2123 = vld [vmem:[#allocation7 + $0x88] sm:$0xff]
    %v2124 = vld [vmem:[#allocation7 + $0x90] sm:$0xff]
    %v2125 = vld [vmem:[#allocation7 + $0x98] sm:$0xff]
    %v2126 = vld [vmem:[#allocation7 + $0xa0] sm:$0xff]
    %v2127 = vld [vmem:[#allocation7 + $0xa8] sm:$0xff]
    %v2128 = vld [vmem:[#allocation7 + $0xb0] sm:$0xff]
    %v2129 = vld [vmem:[#allocation7 + $0xb8] sm:$0xff]
    %v2130 = vld [vmem:[#allocation7 + $0xc0] sm:$0xff]
    %v2131 = vld [vmem:[#allocation7 + $0xc8] sm:$0xff]
    %v2132 = vld [vmem:[#allocation7 + $0xd0] sm:$0xff]
    %v2133 = vld [vmem:[#allocation7 + $0xd8] sm:$0xff]
    %v2134 = vld [vmem:[#allocation7 + $0xe0] sm:$0xff]
    %v2135 = vld [vmem:[#allocation7 + $0xe8] sm:$0xff]
    %v2136 = vld [vmem:[#allocation7 + $0xf0] sm:$0xff]
    %v2137 = vld [vmem:[#allocation7 + $0xf8] sm:$0xff]
    %v2138 = vld [vmem:[#allocation7 + $0x100] sm:$0xff]
    %v2139 = vld [vmem:[#allocation7 + $0x108] sm:$0xff]
    %v2140 = vld [vmem:[#allocation7 + $0x110] sm:$0xff]
    %v2141 = vld [vmem:[#allocation7 + $0x118] sm:$0xff]
    %v2142 = vld [vmem:[#allocation7 + $0x120] sm:$0xff]
    %v2143 = vld [vmem:[#allocation7 + $0x128] sm:$0xff]
    %v2144 = vld [vmem:[#allocation7 + $0x130] sm:$0xff]
    %v2145 = vld [vmem:[#allocation7 + $0x138] sm:$0xff]
    %v2146 = vld [vmem:[#allocation7 + $0x140] sm:$0xff]
    %v2147 = vld [vmem:[#allocation7 + $0x148] sm:$0xff]
    %v2148 = vld [vmem:[#allocation7 + $0x150] sm:$0xff]
    %v2149 = vld [vmem:[#allocation7 + $0x158] sm:$0xff]
    %v2150 = vld [vmem:[#allocation7 + $0x160] sm:$0xff]
    %v2151 = vld [vmem:[#allocation7 + $0x168] sm:$0xff]
    %v2152 = vld [vmem:[#allocation7 + $0x170] sm:$0xff]
    %v2153 = vld [vmem:[#allocation7 + $0x178] sm:$0xff]
    %v2154 = vld [vmem:[#allocation7 + $0x180] sm:$0xff]
    %v2155 = vld [vmem:[#allocation7 + $0x188] sm:$0xff]
    %v2156 = vld [vmem:[#allocation7 + $0x190] sm:$0xff]
    %v2157 = vld [vmem:[#allocation7 + $0x198] sm:$0xff]
    %v2158 = vld [vmem:[#allocation7 + $0x1a0] sm:$0xff]
    %v2159 = vld [vmem:[#allocation7 + $0x1a8] sm:$0xff]
    %v2160 = vld [vmem:[#allocation7 + $0x1b0] sm:$0xff]
    %v2161 = vld [vmem:[#allocation7 + $0x1b8] sm:$0xff]
    %v2162 = vld [vmem:[#allocation7 + $0x1c0] sm:$0xff]
    %v2163 = vld [vmem:[#allocation7 + $0x1c8] sm:$0xff]
    %v2164 = vld [vmem:[#allocation7 + $0x1d0] sm:$0xff]
    %v2165 = vld [vmem:[#allocation7 + $0x1d8] sm:$0xff]
    %v2166 = vld [vmem:[#allocation7 + $0x1e0] sm:$0xff]
    %v2167 = vld [vmem:[#allocation7 + $0x1e8] sm:$0xff]
    %v2168 = vld [vmem:[#allocation7 + $0x1f0] sm:$0xff]
    %v2169 = vld [vmem:[#allocation7 + $0x1f8] sm:$0xff]
    %v2170 = vld [vmem:[#allocation7 + $0x200] sm:$0xff]
    %v2171 = vld [vmem:[#allocation7 + $0x208] sm:$0xff]
    %v2172 = vld [vmem:[#allocation7 + $0x210] sm:$0xff]
    %v2173 = vld [vmem:[#allocation7 + $0x218] sm:$0xff]
    %v2174 = vld [vmem:[#allocation7 + $0x220] sm:$0xff]
    %v2175 = vld [vmem:[#allocation7 + $0x228] sm:$0xff]
    %v2176 = vld [vmem:[#allocation7 + $0x230] sm:$0xff]
    %v2177 = vld [vmem:[#allocation7 + $0x238] sm:$0xff]
    %v2178 = vld [vmem:[#allocation7 + $0x240] sm:$0xff]
    %v2179 = vld [vmem:[#allocation7 + $0x248] sm:$0xff]
    %v2180 = vld [vmem:[#allocation7 + $0x250] sm:$0xff]
    %v2181 = vld [vmem:[#allocation7 + $0x258] sm:$0xff]
    %v2182 = vld [vmem:[#allocation7 + $0x260] sm:$0xff]
    %v2183 = vld [vmem:[#allocation7 + $0x268] sm:$0xff]
    %v2184 = vld [vmem:[#allocation7 + $0x270] sm:$0xff]
    %v2185 = vld [vmem:[#allocation7 + $0x278] sm:$0xff]
    %v2186 = vld [vmem:[#allocation7 + $0x280] sm:$0xff]
    %v2187 = vld [vmem:[#allocation7 + $0x288] sm:$0xff]
    %v2188 = vld [vmem:[#allocation7 + $0x290] sm:$0xff]
    %v2189 = vld [vmem:[#allocation7 + $0x298] sm:$0xff]
    %v2190 = vld [vmem:[#allocation7 + $0x2a0] sm:$0xff]
    %v2191 = vld [vmem:[#allocation7 + $0x2a8] sm:$0xff]
    %v2192 = vld [vmem:[#allocation7 + $0x2b0] sm:$0xff]
    %v2193 = vld [vmem:[#allocation7 + $0x2b8] sm:$0xff]
    %v2194 = vld [vmem:[#allocation7 + $0x2c0] sm:$0xff]
    %v2195 = vld [vmem:[#allocation7 + $0x2c8] sm:$0xff]
    %v2196 = vld [vmem:[#allocation7 + $0x2d0] sm:$0xff]
    %v2197 = vld [vmem:[#allocation7 + $0x2d8] sm:$0xff]
    %v2198 = vld [vmem:[#allocation7 + $0x2e0] sm:$0xff]
    %v2199 = vld [vmem:[#allocation7 + $0x2e8] sm:$0xff]
    %v2200 = vld [vmem:[#allocation7 + $0x2f0] sm:$0xff]
    %v2201 = vld [vmem:[#allocation7 + $0x2f8] sm:$0xff]
    %v2202 = vld [vmem:[#allocation7 + $0x300] sm:$0xff]
    %v2203 = vld [vmem:[#allocation7 + $0x308] sm:$0xff]
    %v2204 = vld [vmem:[#allocation7 + $0x310] sm:$0xff]
    %v2205 = vld [vmem:[#allocation7 + $0x318] sm:$0xff]
    %v2206 = vld [vmem:[#allocation7 + $0x320] sm:$0xff]
    %v2207 = vld [vmem:[#allocation7 + $0x328] sm:$0xff]
    %v2208 = vld [vmem:[#allocation7 + $0x330] sm:$0xff]
    %v2209 = vld [vmem:[#allocation7 + $0x338] sm:$0xff]
    %v2210 = vld [vmem:[#allocation7 + $0x340] sm:$0xff]
    %v2211 = vld [vmem:[#allocation7 + $0x348] sm:$0xff]
    %v2212 = vld [vmem:[#allocation7 + $0x350] sm:$0xff]
    %v2213 = vld [vmem:[#allocation7 + $0x358] sm:$0xff]
    %v2214 = vld [vmem:[#allocation7 + $0x360] sm:$0xff]
    %v2215 = vld [vmem:[#allocation7 + $0x368] sm:$0xff]
    %v2216 = vld [vmem:[#allocation7 + $0x370] sm:$0xff]
    %v2217 = vld [vmem:[#allocation7 + $0x378] sm:$0xff]
    %v2218 = vld [vmem:[#allocation7 + $0x380] sm:$0xff]
    %v2219 = vld [vmem:[#allocation7 + $0x388] sm:$0xff]
    %v2220 = vld [vmem:[#allocation7 + $0x390] sm:$0xff]
    %v2221 = vld [vmem:[#allocation7 + $0x398] sm:$0xff]
    %v2222 = vld [vmem:[#allocation7 + $0x3a0] sm:$0xff]
    %v2223 = vld [vmem:[#allocation7 + $0x3a8] sm:$0xff]
    %v2224 = vld [vmem:[#allocation7 + $0x3b0] sm:$0xff]
    %v2225 = vld [vmem:[#allocation7 + $0x3b8] sm:$0xff]
    %v2226 = vld [vmem:[#allocation7 + $0x3c0] sm:$0xff]
    %v2227 = vld [vmem:[#allocation7 + $0x3c8] sm:$0xff]
    %v2228 = vld [vmem:[#allocation7 + $0x3d0] sm:$0xff]
    %v2229 = vld [vmem:[#allocation7 + $0x3d8] sm:$0xff]
    %v2230 = vld [vmem:[#allocation7 + $0x3e0] sm:$0xff]
    %v2231 = vld [vmem:[#allocation7 + $0x3e8] sm:$0xff]
    %v2232 = vld [vmem:[#allocation7 + $0x3f0] sm:$0xff]
    %v2233 = vld [vmem:[#allocation7 + $0x3f8] sm:$0xff]
    %v2234 = vld [vmem:[#allocation7 + $0x400] sm:$0xff]
    %v2235 = vld [vmem:[#allocation7 + $0x408] sm:$0xff]
    %v2236 = vld [vmem:[#allocation7 + $0x410] sm:$0xff]
    %v2237 = vld [vmem:[#allocation7 + $0x418] sm:$0xff]
    %v2238 = vld [vmem:[#allocation7 + $0x420] sm:$0xff]
    %v2239 = vld [vmem:[#allocation7 + $0x428] sm:$0xff]
    %v2240 = vld [vmem:[#allocation7 + $0x430] sm:$0xff]
    %v2241 = vld [vmem:[#allocation7 + $0x438] sm:$0xff]
    %v2242 = vld [vmem:[#allocation7 + $0x440] sm:$0xff]
    %v2243 = vld [vmem:[#allocation7 + $0x448] sm:$0xff]
    %v2244 = vld [vmem:[#allocation7 + $0x450] sm:$0xff]
    %v2245 = vld [vmem:[#allocation7 + $0x458] sm:$0xff]
    %v2246 = vld [vmem:[#allocation7 + $0x460] sm:$0xff]
    %v2247 = vld [vmem:[#allocation7 + $0x468] sm:$0xff]
    %v2248 = vld [vmem:[#allocation7 + $0x470] sm:$0xff]
    %v2249 = vld [vmem:[#allocation7 + $0x478] sm:$0xff]
    %2250 = vmatprep.subr.mxu0 0.0
    %2251 = vmatpush1.msra.mxu0 %v2106
    %2252 = vmatprep.subr.mxu0 0.0
    %2253 = vmatpush1.msra.mxu0 %v2107
    %2254 = vmatprep.subr.mxu0 0.0
    %2255 = vmatpush1.msra.mxu0 %v2108
    %2256 = vmatprep.subr.mxu0 0.0
    %2257 = vmatpush1.msra.mxu0 %v2109
    %2258 = vmatprep.subr.mxu0 0.0
    %2259 = vmatpush1.msra.mxu0 %v2110
    %2260 = vmatprep.subr.mxu0 0.0
    %2261 = vmatpush1.msra.mxu0 %v2111
    %2262 = vmatprep.subr.mxu0 0.0
    %2263 = vmatpush1.msra.mxu0 %v2112
    %2264 = vmatprep.subr.mxu0 0.0
    %2265 = vmatpush1.msra.mxu0 %v2113
    %2266 = vmatprep.subr.mxu0 0.0
    %2267 = vmatpush1.msra.mxu0 %v2114
    %2268 = vmatprep.subr.mxu0 0.0
    %2269 = vmatpush1.msra.mxu0 %v2115
    %2270 = vmatprep.subr.mxu0 0.0
    %2271 = vmatpush1.msra.mxu0 %v2116
    %2272 = vmatprep.subr.mxu0 0.0
    %2273 = vmatpush1.msra.mxu0 %v2117
    %2274 = vmatprep.subr.mxu0 0.0
    %2275 = vmatpush1.msra.mxu0 %v2118
    %2276 = vmatprep.subr.mxu0 0.0
    %2277 = vmatpush1.msra.mxu0 %v2119
    %2278 = vmatprep.subr.mxu0 0.0
    %2279 = vmatpush1.msra.mxu0 %v2120
    %2280 = vmatprep.subr.mxu0 0.0
    %2281 = vmatpush1.msra.mxu0 %v2121
    %2282 = vmatprep.subr.mxu0 0.0
    %2283 = vmatpush1.msra.mxu0 %v2122
    %2284 = vmatprep.subr.mxu0 0.0
    %2285 = vmatpush1.msra.mxu0 %v2123
    %2286 = vmatprep.subr.mxu0 0.0
    %2287 = vmatpush1.msra.mxu0 %v2124
    %2288 = vmatprep.subr.mxu0 0.0
    %2289 = vmatpush1.msra.mxu0 %v2125
    %2290 = vmatprep.subr.mxu0 0.0
    %2291 = vmatpush1.msra.mxu0 %v2126
    %2292 = vmatprep.subr.mxu0 0.0
    %2293 = vmatpush1.msra.mxu0 %v2127
    %2294 = vmatprep.subr.mxu0 0.0
    %2295 = vmatpush1.msra.mxu0 %v2128
    %2296 = vmatprep.subr.mxu0 0.0
    %2297 = vmatpush1.msra.mxu0 %v2129
    %2298 = vmatprep.subr.mxu0 0.0
    %2299 = vmatpush1.msra.mxu0 %v2130
    %2300 = vmatprep.subr.mxu0 0.0
    %2301 = vmatpush1.msra.mxu0 %v2131
    %2302 = vmatprep.subr.mxu0 0.0
    %2303 = vmatpush1.msra.mxu0 %v2132
    %2304 = vmatprep.subr.mxu0 0.0
    %2305 = vmatpush1.msra.mxu0 %v2133
    %2306 = vmatprep.subr.mxu0 0.0
    %2307 = vmatpush1.msra.mxu0 %v2134
    %2308 = vmatprep.subr.mxu0 0.0
    %2309 = vmatpush1.msra.mxu0 %v2135
    %2310 = vmatprep.subr.mxu0 0.0
    %2311 = vmatpush1.msra.mxu0 %v2136
    %2312 = vmatprep.subr.mxu0 0.0
    %2313 = vmatpush1.msra.mxu0 %v2137
    %2314 = vmatprep.mubr.f32.mxu0 %v2026
    %2315 = vmatmul.mubr.f32.gmra.mrb[0].mxu0 %v2010
    %v2316 = vpop.f32.mrb[0].mxu0
    %v2317 = vadd.f32 0.0, %v2316
    %v2318 = vpop.f32.mrb[0].mxu0
    %2319 = vmatprep.mubr.f32.mxu0 %v2027
    %2320 = vmatmul.mubr.f32.gmra.mrb[0].mxu0 %v2011
    %v2321 = vpop.f32.mrb[0].mxu0
    %v2322 = vadd.f32 0.0, %v2321
    %v2323 = vpop.f32.mrb[0].mxu0
    %2324 = vmatprep.mubr.f32.mxu0 %v2028
    %2325 = vmatmul.mubr.f32.gmra.mrb[0].mxu0 %v2012
    %v2326 = vpop.f32.mrb[0].mxu0
    %v2327 = vadd.f32 0.0, %v2326
    %v2328 = vpop.f32.mrb[0].mxu0
    %2329 = vmatprep.mubr.f32.mxu0 %v2029
    %2330 = vmatmul.mubr.f32.gmra.mrb[0].mxu0 %v2013
    %v2331 = vpop.f32.mrb[0].mxu0
    %v2332 = vadd.f32 0.0, %v2331
    %v2333 = vpop.f32.mrb[0].mxu0
    %2334 = vmatprep.mubr.f32.mxu0 %v2030
    %2335 = vmatmul.mubr.f32.gmra.mrb[0].mxu0 %v2014
    %v2336 = vpop.f32.mrb[0].mxu0
    %v2337 = vadd.f32 0.0, %v2336
    %v2338 = vpop.f32.mrb[0].mxu0
    %2339 = vmatprep.mubr.f32.mxu0 %v2031
    %2340 = vmatmul.mubr.f32.gmra.mrb[0].mxu0 %v2015
    %v2341 = vpop.f32.mrb[0].mxu0
    %v2342 = vadd.f32 0.0, %v2341
    %v2343 = vpop.f32.mrb[0].mxu0
    %2344 = vmatprep.mubr.f32.mxu0 %v2032
    %2345 = vmatmul.mubr.f32.gmra.mrb[0].mxu0 %v2016
    %v2346 = vpop.f32.mrb[0].mxu0
    %v2347 = vadd.f32 0.0, %v2346
    %v2348 = vpop.f32.mrb[0].mxu0
    %2349 = vmatprep.mubr.f32.mxu0 %v2033
    %2350 = vmatmul.mubr.f32.gmra.mrb[0].mxu0 %v2017
    %v2351 = vpop.f32.mrb[0].mxu0
    %v2352 = vadd.f32 0.0, %v2351
    %v2353 = vpop.f32.mrb[0].mxu0
    %2354 = vmatprep.mubr.f32.mxu0 %v2034
    %2355 = vmatmul.mubr.f32.gmra.mrb[0].mxu0 %v2018
    %v2356 = vpop.f32.mrb[0].mxu0
    %v2357 = vadd.f32 0.0, %v2356
    %v2358 = vpop.f32.mrb[0].mxu0
    %2359 = vmatprep.mubr.f32.mxu0 %v2035
    %2360 = vmatmul.mubr.f32.gmra.mrb[0].mxu0 %v2019
    %v2361 = vpop.f32.mrb[0].mxu0
    %v2362 = vadd.f32 0.0, %v2361
    %v2363 = vpop.f32.mrb[0].mxu0
    %2364 = vmatprep.mubr.f32.mxu0 %v2036
    %2365 = vmatmul.mubr.f32.gmra.mrb[0].mxu0 %v2020
    %v2366 = vpop.f32.mrb[0].mxu0
    %v2367 = vadd.f32 0.0, %v2366
    %v2368 = vpop.f32.mrb[0].mxu0
    %2369 = vmatprep.mubr.f32.mxu0 %v2037
    %2370 = vmatmul.mubr.f32.gmra.mrb[0].mxu0 %v2021
    %v2371 = vpop.f32.mrb[0].mxu0
    %v2372 = vadd.f32 0.0, %v2371
    %v2373 = vpop.f32.mrb[0].mxu0
    %2374 = vmatprep.mubr.f32.mxu0 %v2038
    %2375 = vmatmul.mubr.f32.gmra.mrb[0].mxu0 %v2022
    %v2376 = vpop.f32.mrb[0].mxu0
    %v2377 = vadd.f32 0.0, %v2376
    %v2378 = vpop.f32.mrb[0].mxu0
    %2379 = vmatprep.mubr.f32.mxu0 %v2039
    %2380 = vmatmul.mubr.f32.gmra.mrb[0].mxu0 %v2023
    %v2381 = vpop.f32.mrb[0].mxu0
    %v2382 = vadd.f32 0.0, %v2381
    %v2383 = vpop.f32.mrb[0].mxu0
    %2384 = vmatprep.mubr.f32.mxu0 %v2040
    %2385 = vmatmul.mubr.f32.gmra.mrb[0].mxu0 %v2024
    %v2386 = vpop.f32.mrb[0].mxu0
    %v2387 = vadd.f32 0.0, %v2386
    %v2388 = vpop.f32.mrb[0].mxu0
    %2389 = vmatprep.mubr.f32.mxu0 %v2041
    %2390 = vmatmul.mubr.f32.gmra.mrb[0].mxu0 %v2025
    %v2391 = vpop.f32.mrb[0].mxu0
    %v2392 = vadd.f32 0.0, %v2391
    %v2393 = vpop.f32.mrb[0].mxu0
    %2394 = vdwg.mxu0
    %2395 = vmatprep.subr.mxu0 0.0
    %2396 = vmatpush1.msra.mxu0 %v2138
    %2397 = vmatprep.subr.mxu0 0.0
    %2398 = vmatpush1.msra.mxu0 %v2139
    %2399 = vmatprep.subr.mxu0 0.0
    %2400 = vmatpush1.msra.mxu0 %v2140
    %2401 = vmatprep.subr.mxu0 0.0
    %2402 = vmatpush1.msra.mxu0 %v2141
    %2403 = vmatprep.subr.mxu0 0.0
    %2404 = vmatpush1.msra.mxu0 %v2142
    %2405 = vmatprep.subr.mxu0 0.0
    %2406 = vmatpush1.msra.mxu0 %v2143
    %2407 = vmatprep.subr.mxu0 0.0
    %2408 = vmatpush1.msra.mxu0 %v2144
    %2409 = vmatprep.subr.mxu0 0.0
    %2410 = vmatpush1.msra.mxu0 %v2145
    %2411 = vmatprep.subr.mxu0 0.0
    %2412 = vmatpush1.msra.mxu0 %v2146
    %2413 = vmatprep.subr.mxu0 0.0
    %2414 = vmatpush1.msra.mxu0 %v2147
    %2415 = vmatprep.subr.mxu0 0.0
    %2416 = vmatpush1.msra.mxu0 %v2148
    %2417 = vmatprep.subr.mxu0 0.0
    %2418 = vmatpush1.msra.mxu0 %v2149
    %2419 = vmatprep.subr.mxu0 0.0
    %2420 = vmatpush1.msra.mxu0 %v2150
    %2421 = vmatprep.subr.mxu0 0.0
    %2422 = vmatpush1.msra.mxu0 %v2151
    %2423 = vmatprep.subr.mxu0 0.0
    %2424 = vmatpush1.msra.mxu0 %v2152
    %2425 = vmatprep.subr.mxu0 0.0
    %2426 = vmatpush1.msra.mxu0 %v2153
    %2427 = vmatprep.subr.mxu0 0.0
    %2428 = vmatpush1.msra.mxu0 %v2154
    %2429 = vmatprep.subr.mxu0 0.0
    %2430 = vmatpush1.msra.mxu0 %v2155
    %2431 = vmatprep.subr.mxu0 0.0
    %2432 = vmatpush1.msra.mxu0 %v2156
    %2433 = vmatprep.subr.mxu0 0.0
    %2434 = vmatpush1.msra.mxu0 %v2157
    %2435 = vmatprep.subr.mxu0 0.0
    %2436 = vmatpush1.msra.mxu0 %v2158
    %2437 = vmatprep.subr.mxu0 0.0
    %2438 = vmatpush1.msra.mxu0 %v2159
    %2439 = vmatprep.subr.mxu0 0.0
    %2440 = vmatpush1.msra.mxu0 %v2160
    %2441 = vmatprep.subr.mxu0 0.0
    %2442 = vmatpush1.msra.mxu0 %v2161
    %2443 = vmatprep.subr.mxu0 0.0
    %2444 = vmatpush1.msra.mxu0 %v2162
    %2445 = vmatprep.subr.mxu0 0.0
    %2446 = vmatpush1.msra.mxu0 %v2163
    %2447 = vmatprep.subr.mxu0 0.0
    %2448 = vmatpush1.msra.mxu0 %v2164
    %2449 = vmatprep.subr.mxu0 0.0
    %2450 = vmatpush1.msra.mxu0 %v2165
    %2451 = vmatprep.subr.mxu0 0.0
    %2452 = vmatpush1.msra.mxu0 %v2166
    %2453 = vmatprep.subr.mxu0 0.0
    %2454 = vmatpush1.msra.mxu0 %v2167
    %2455 = vmatprep.subr.mxu0 0.0
    %2456 = vmatpush1.msra.mxu0 %v2168
    %2457 = vmatprep.subr.mxu0 0.0
    %2458 = vmatpush1.msra.mxu0 %v2169
    %2459 = vmatprep.mubr.f32.mxu0 %v1946
    %2460 = vmatmul.mubr.f32.gmra.mrb[0].mxu0 %v2042
    %v2461 = vpop.f32.mrb[0].mxu0
    %v2462 = vadd.f32 %v2317, %v2461
    %v2463 = vpop.f32.mrb[0].mxu0
    %2464 = vmatprep.mubr.f32.mxu0 %v1947
    %2465 = vmatmul.mubr.f32.gmra.mrb[0].mxu0 %v2043
    %v2466 = vpop.f32.mrb[0].mxu0
    %v2467 = vadd.f32 %v2322, %v2466
    %v2468 = vpop.f32.mrb[0].mxu0
    %2469 = vmatprep.mubr.f32.mxu0 %v1948
    %2470 = vmatmul.mubr.f32.gmra.mrb[0].mxu0 %v2044
    %v2471 = vpop.f32.mrb[0].mxu0
    %v2472 = vadd.f32 %v2327, %v2471
    %v2473 = vpop.f32.mrb[0].mxu0
    %2474 = vmatprep.mubr.f32.mxu0 %v1949
    %2475 = vmatmul.mubr.f32.gmra.mrb[0].mxu0 %v2045
    %v2476 = vpop.f32.mrb[0].mxu0
    %v2477 = vadd.f32 %v2332, %v2476
    %v2478 = vpop.f32.mrb[0].mxu0
    %2479 = vmatprep.mubr.f32.mxu0 %v1950
    %2480 = vmatmul.mubr.f32.gmra.mrb[0].mxu0 %v2046
    %v2481 = vpop.f32.mrb[0].mxu0
    %v2482 = vadd.f32 %v2337, %v2481
    %v2483 = vpop.f32.mrb[0].mxu0
    %2484 = vmatprep.mubr.f32.mxu0 %v1951
    %2485 = vmatmul.mubr.f32.gmra.mrb[0].mxu0 %v2047
    %v2486 = vpop.f32.mrb[0].mxu0
    %v2487 = vadd.f32 %v2342, %v2486
    %v2488 = vpop.f32.mrb[0].mxu0
    %2489 = vmatprep.mubr.f32.mxu0 %v1952
    %2490 = vmatmul.mubr.f32.gmra.mrb[0].mxu0 %v2048
    %v2491 = vpop.f32.mrb[0].mxu0
    %v2492 = vadd.f32 %v2347, %v2491
    %v2493 = vpop.f32.mrb[0].mxu0
    %2494 = vmatprep.mubr.f32.mxu0 %v1953
    %2495 = vmatmul.mubr.f32.gmra.mrb[0].mxu0 %v2049
    %v2496 = vpop.f32.mrb[0].mxu0
    %v2497 = vadd.f32 %v2352, %v2496
    %v2498 = vpop.f32.mrb[0].mxu0
    %2499 = vmatprep.mubr.f32.mxu0 %v1954
    %2500 = vmatmul.mubr.f32.gmra.mrb[0].mxu0 %v2050
    %v2501 = vpop.f32.mrb[0].mxu0
    %v2502 = vadd.f32 %v2357, %v2501
    %v2503 = vpop.f32.mrb[0].mxu0
    %2504 = vmatprep.mubr.f32.mxu0 %v1955
    %2505 = vmatmul.mubr.f32.gmra.mrb[0].mxu0 %v2051
    %v2506 = vpop.f32.mrb[0].mxu0
    %v2507 = vadd.f32 %v2362, %v2506
    %v2508 = vpop.f32.mrb[0].mxu0
    %2509 = vmatprep.mubr.f32.mxu0 %v1956
    %2510 = vmatmul.mubr.f32.gmra.mrb[0].mxu0 %v2052
    %v2511 = vpop.f32.mrb[0].mxu0
    %v2512 = vadd.f32 %v2367, %v2511
    %v2513 = vpop.f32.mrb[0].mxu0
    %2514 = vmatprep.mubr.f32.mxu0 %v1957
    %2515 = vmatmul.mubr.f32.gmra.mrb[0].mxu0 %v2053
    %v2516 = vpop.f32.mrb[0].mxu0
    %v2517 = vadd.f32 %v2372, %v2516
    %v2518 = vpop.f32.mrb[0].mxu0
    %2519 = vmatprep.mubr.f32.mxu0 %v1958
    %2520 = vmatmul.mubr.f32.gmra.mrb[0].mxu0 %v2054
    %v2521 = vpop.f32.mrb[0].mxu0
    %v2522 = vadd.f32 %v2377, %v2521
    %v2523 = vpop.f32.mrb[0].mxu0
    %2524 = vmatprep.mubr.f32.mxu0 %v1959
    %2525 = vmatmul.mubr.f32.gmra.mrb[0].mxu0 %v2055
    %v2526 = vpop.f32.mrb[0].mxu0
    %v2527 = vadd.f32 %v2382, %v2526
    %v2528 = vpop.f32.mrb[0].mxu0
    %2529 = vmatprep.mubr.f32.mxu0 %v1960
    %2530 = vmatmul.mubr.f32.gmra.mrb[0].mxu0 %v2056
    %v2531 = vpop.f32.mrb[0].mxu0
    %v2532 = vadd.f32 %v2387, %v2531
    %v2533 = vpop.f32.mrb[0].mxu0
    %2534 = vmatprep.mubr.f32.mxu0 %v1961
    %2535 = vmatmul.mubr.f32.gmra.mrb[0].mxu0 %v2057
    %v2536 = vpop.f32.mrb[0].mxu0
    %v2537 = vadd.f32 %v2392, %v2536
    %v2538 = vpop.f32.mrb[0].mxu0
    %2539 = vdwg.mxu0
    %2540 = vmatprep.subr.mxu0 0.0
    %2541 = vmatpush1.msra.mxu0 %v2170
    %2542 = vmatprep.subr.mxu0 0.0
    %2543 = vmatpush1.msra.mxu0 %v2171
    %2544 = vmatprep.subr.mxu0 0.0
    %2545 = vmatpush1.msra.mxu0 %v2172
    %2546 = vmatprep.subr.mxu0 0.0
    %2547 = vmatpush1.msra.mxu0 %v2173
    %2548 = vmatprep.subr.mxu0 0.0
    %2549 = vmatpush1.msra.mxu0 %v2174
    %2550 = vmatprep.subr.mxu0 0.0
    %2551 = vmatpush1.msra.mxu0 %v2175
    %2552 = vmatprep.subr.mxu0 0.0
    %2553 = vmatpush1.msra.mxu0 %v2176
    %2554 = vmatprep.subr.mxu0 0.0
    %2555 = vmatpush1.msra.mxu0 %v2177
    %2556 = vmatprep.subr.mxu0 0.0
    %2557 = vmatpush1.msra.mxu0 %v2178
    %2558 = vmatprep.subr.mxu0 0.0
    %2559 = vmatpush1.msra.mxu0 %v2179
    %2560 = vmatprep.subr.mxu0 0.0
    %2561 = vmatpush1.msra.mxu0 %v2180
    %2562 = vmatprep.subr.mxu0 0.0
    %2563 = vmatpush1.msra.mxu0 %v2181
    %2564 = vmatprep.subr.mxu0 0.0
    %2565 = vmatpush1.msra.mxu0 %v2182
    %2566 = vmatprep.subr.mxu0 0.0
    %2567 = vmatpush1.msra.mxu0 %v2183
    %2568 = vmatprep.subr.mxu0 0.0
    %2569 = vmatpush1.msra.mxu0 %v2184
    %2570 = vmatprep.subr.mxu0 0.0
    %2571 = vmatpush1.msra.mxu0 %v2185
    %2572 = vmatprep.subr.mxu0 0.0
    %2573 = vmatpush1.msra.mxu0 %v2186
    %2574 = vmatprep.subr.mxu0 0.0
    %2575 = vmatpush1.msra.mxu0 %v2187
    %2576 = vmatprep.subr.mxu0 0.0
    %2577 = vmatpush1.msra.mxu0 %v2188
    %2578 = vmatprep.subr.mxu0 0.0
    %2579 = vmatpush1.msra.mxu0 %v2189
    %2580 = vmatprep.subr.mxu0 0.0
    %2581 = vmatpush1.msra.mxu0 %v2190
    %2582 = vmatprep.subr.mxu0 0.0
    %2583 = vmatpush1.msra.mxu0 %v2191
    %2584 = vmatprep.subr.mxu0 0.0
    %2585 = vmatpush1.msra.mxu0 %v2192
    %2586 = vmatprep.subr.mxu0 0.0
    %2587 = vmatpush1.msra.mxu0 %v2193
    %2588 = vmatprep.subr.mxu0 0.0
    %2589 = vmatpush1.msra.mxu0 %v2194
    %2590 = vmatprep.subr.mxu0 0.0
    %2591 = vmatpush1.msra.mxu0 %v2195
    %2592 = vmatprep.subr.mxu0 0.0
    %2593 = vmatpush1.msra.mxu0 %v2196
    %2594 = vmatprep.subr.mxu0 0.0
    %2595 = vmatpush1.msra.mxu0 %v2197
    %2596 = vmatprep.subr.mxu0 0.0
    %2597 = vmatpush1.msra.mxu0 %v2198
    %2598 = vmatprep.subr.mxu0 0.0
    %2599 = vmatpush1.msra.mxu0 %v2199
    %2600 = vmatprep.subr.mxu0 0.0
    %2601 = vmatpush1.msra.mxu0 %v2200
    %2602 = vmatprep.subr.mxu0 0.0
    %2603 = vmatpush1.msra.mxu0 %v2201
    %2604 = vmatprep.mubr.f32.mxu0 %v1994
    %2605 = vmatmul.mubr.f32.gmra.mrb[0].mxu0 %v1898
    %v2606 = vpop.f32.mrb[0].mxu0
    %v2607 = vadd.f32 %v2462, %v2606
    %v2608 = vpop.f32.mrb[0].mxu0
    %2609 = vmatprep.mubr.f32.mxu0 %v1995
    %2610 = vmatmul.mubr.f32.gmra.mrb[0].mxu0 %v1899
    %v2611 = vpop.f32.mrb[0].mxu0
    %v2612 = vadd.f32 %v2467, %v2611
    %v2613 = vpop.f32.mrb[0].mxu0
    %2614 = vmatprep.mubr.f32.mxu0 %v1996
    %2615 = vmatmul.mubr.f32.gmra.mrb[0].mxu0 %v1900
    %v2616 = vpop.f32.mrb[0].mxu0
    %v2617 = vadd.f32 %v2472, %v2616
    %v2618 = vpop.f32.mrb[0].mxu0
    %2619 = vmatprep.mubr.f32.mxu0 %v1997
    %2620 = vmatmul.mubr.f32.gmra.mrb[0].mxu0 %v1901
    %v2621 = vpop.f32.mrb[0].mxu0
    %v2622 = vadd.f32 %v2477, %v2621
    %v2623 = vpop.f32.mrb[0].mxu0
    %2624 = vmatprep.mubr.f32.mxu0 %v1998
    %2625 = vmatmul.mubr.f32.gmra.mrb[0].mxu0 %v1902
    %v2626 = vpop.f32.mrb[0].mxu0
    %v2627 = vadd.f32 %v2482, %v2626
    %v2628 = vpop.f32.mrb[0].mxu0
    %2629 = vmatprep.mubr.f32.mxu0 %v1999
    %2630 = vmatmul.mubr.f32.gmra.mrb[0].mxu0 %v1903
    %v2631 = vpop.f32.mrb[0].mxu0
    %v2632 = vadd.f32 %v2487, %v2631
    %v2633 = vpop.f32.mrb[0].mxu0
    %2634 = vmatprep.mubr.f32.mxu0 %v2000
    %2635 = vmatmul.mubr.f32.gmra.mrb[0].mxu0 %v1904
    %v2636 = vpop.f32.mrb[0].mxu0
    %v2637 = vadd.f32 %v2492, %v2636
    %v2638 = vpop.f32.mrb[0].mxu0
    %2639 = vmatprep.mubr.f32.mxu0 %v2001
    %2640 = vmatmul.mubr.f32.gmra.mrb[0].mxu0 %v1905
    %v2641 = vpop.f32.mrb[0].mxu0
    %v2642 = vadd.f32 %v2497, %v2641
    %v2643 = vpop.f32.mrb[0].mxu0
    %2644 = vmatprep.mubr.f32.mxu0 %v2002
    %2645 = vmatmul.mubr.f32.gmra.mrb[0].mxu0 %v1906
    %v2646 = vpop.f32.mrb[0].mxu0
    %v2647 = vadd.f32 %v2502, %v2646
    %v2648 = vpop.f32.mrb[0].mxu0
    %2649 = vmatprep.mubr.f32.mxu0 %v2003
    %2650 = vmatmul.mubr.f32.gmra.mrb[0].mxu0 %v1907
    %v2651 = vpop.f32.mrb[0].mxu0
    %v2652 = vadd.f32 %v2507, %v2651
    %v2653 = vpop.f32.mrb[0].mxu0
    %2654 = vmatprep.mubr.f32.mxu0 %v2004
    %2655 = vmatmul.mubr.f32.gmra.mrb[0].mxu0 %v1908
    %v2656 = vpop.f32.mrb[0].mxu0
    %v2657 = vadd.f32 %v2512, %v2656
    %v2658 = vpop.f32.mrb[0].mxu0
    %2659 = vmatprep.mubr.f32.mxu0 %v2005
    %2660 = vmatmul.mubr.f32.gmra.mrb[0].mxu0 %v1909
    %v2661 = vpop.f32.mrb[0].mxu0
    %v2662 = vadd.f32 %v2517, %v2661
    %v2663 = vpop.f32.mrb[0].mxu0
    %2664 = vmatprep.mubr.f32.mxu0 %v2006
    %2665 = vmatmul.mubr.f32.gmra.mrb[0].mxu0 %v1910
    %v2666 = vpop.f32.mrb[0].mxu0
    %v2667 = vadd.f32 %v2522, %v2666
    %v2668 = vpop.f32.mrb[0].mxu0
    %2669 = vmatprep.mubr.f32.mxu0 %v2007
    %2670 = vmatmul.mubr.f32.gmra.mrb[0].mxu0 %v1911
    %v2671 = vpop.f32.mrb[0].mxu0
    %v2672 = vadd.f32 %v2527, %v2671
    %v2673 = vpop.f32.mrb[0].mxu0
    %2674 = vmatprep.mubr.f32.mxu0 %v2008
    %2675 = vmatmul.mubr.f32.gmra.mrb[0].mxu0 %v1912
    %v2676 = vpop.f32.mrb[0].mxu0
    %v2677 = vadd.f32 %v2532, %v2676
    %v2678 = vpop.f32.mrb[0].mxu0
    %2679 = vmatprep.mubr.f32.mxu0 %v2009
    %2680 = vmatmul.mubr.f32.gmra.mrb[0].mxu0 %v1913
    %v2681 = vpop.f32.mrb[0].mxu0
    %v2682 = vadd.f32 %v2537, %v2681
    %v2683 = vpop.f32.mrb[0].mxu0
    %2684 = vdwg.mxu0
    %2685 = vmatprep.subr.mxu0 0.0
    %2686 = vmatpush1.msra.mxu0 %v2202
    %2687 = vmatprep.subr.mxu0 0.0
    %2688 = vmatpush1.msra.mxu0 %v2203
    %2689 = vmatprep.subr.mxu0 0.0
    %2690 = vmatpush1.msra.mxu0 %v2204
    %2691 = vmatprep.subr.mxu0 0.0
    %2692 = vmatpush1.msra.mxu0 %v2205
    %2693 = vmatprep.subr.mxu0 0.0
    %2694 = vmatpush1.msra.mxu0 %v2206
    %2695 = vmatprep.subr.mxu0 0.0
    %2696 = vmatpush1.msra.mxu0 %v2207
    %2697 = vmatprep.subr.mxu0 0.0
    %2698 = vmatpush1.msra.mxu0 %v2208
    %2699 = vmatprep.subr.mxu0 0.0
    %2700 = vmatpush1.msra.mxu0 %v2209
    %2701 = vmatprep.subr.mxu0 0.0
    %2702 = vmatpush1.msra.mxu0 %v2210
    %2703 = vmatprep.subr.mxu0 0.0
    %2704 = vmatpush1.msra.mxu0 %v2211
    %2705 = vmatprep.subr.mxu0 0.0
    %2706 = vmatpush1.msra.mxu0 %v2212
    %2707 = vmatprep.subr.mxu0 0.0
    %2708 = vmatpush1.msra.mxu0 %v2213
    %2709 = vmatprep.subr.mxu0 0.0
    %2710 = vmatpush1.msra.mxu0 %v2214
    %2711 = vmatprep.subr.mxu0 0.0
    %2712 = vmatpush1.msra.mxu0 %v2215
    %2713 = vmatprep.subr.mxu0 0.0
    %2714 = vmatpush1.msra.mxu0 %v2216
    %2715 = vmatprep.subr.mxu0 0.0
    %2716 = vmatpush1.msra.mxu0 %v2217
    %2717 = vmatprep.subr.mxu0 0.0
    %2718 = vmatpush1.msra.mxu0 %v2218
    %2719 = vmatprep.subr.mxu0 0.0
    %2720 = vmatpush1.msra.mxu0 %v2219
    %2721 = vmatprep.subr.mxu0 0.0
    %2722 = vmatpush1.msra.mxu0 %v2220
    %2723 = vmatprep.subr.mxu0 0.0
    %2724 = vmatpush1.msra.mxu0 %v2221
    %2725 = vmatprep.subr.mxu0 0.0
    %2726 = vmatpush1.msra.mxu0 %v2222
    %2727 = vmatprep.subr.mxu0 0.0
    %2728 = vmatpush1.msra.mxu0 %v2223
    %2729 = vmatprep.subr.mxu0 0.0
    %2730 = vmatpush1.msra.mxu0 %v2224
    %2731 = vmatprep.subr.mxu0 0.0
    %2732 = vmatpush1.msra.mxu0 %v2225
    %2733 = vmatprep.subr.mxu0 0.0
    %2734 = vmatpush1.msra.mxu0 %v2226
    %2735 = vmatprep.subr.mxu0 0.0
    %2736 = vmatpush1.msra.mxu0 %v2227
    %2737 = vmatprep.subr.mxu0 0.0
    %2738 = vmatpush1.msra.mxu0 %v2228
    %2739 = vmatprep.subr.mxu0 0.0
    %2740 = vmatpush1.msra.mxu0 %v2229
    %2741 = vmatprep.subr.mxu0 0.0
    %2742 = vmatpush1.msra.mxu0 %v2230
    %2743 = vmatprep.subr.mxu0 0.0
    %2744 = vmatpush1.msra.mxu0 %v2231
    %2745 = vmatprep.subr.mxu0 0.0
    %2746 = vmatpush1.msra.mxu0 %v2232
    %2747 = vmatprep.subr.mxu0 0.0
    %2748 = vmatpush1.msra.mxu0 %v2233
    %2749 = vmatprep.mubr.f32.mxu0 %v2074
    %2750 = vmatmul.mubr.f32.gmra.mrb[0].mxu0 %v2058
    %v2751 = vpop.f32.mrb[0].mxu0
    %v2752 = vadd.f32 %v2607, %v2751
    %v2753 = vpop.f32.mrb[0].mxu0
    %2754 = vmatprep.mubr.f32.mxu0 %v2075
    %2755 = vmatmul.mubr.f32.gmra.mrb[0].mxu0 %v2059
    %v2756 = vpop.f32.mrb[0].mxu0
    %v2757 = vadd.f32 %v2612, %v2756
    %v2758 = vpop.f32.mrb[0].mxu0
    %2759 = vmatprep.mubr.f32.mxu0 %v2076
    %2760 = vmatmul.mubr.f32.gmra.mrb[0].mxu0 %v2060
    %v2761 = vpop.f32.mrb[0].mxu0
    %v2762 = vadd.f32 %v2617, %v2761
    %v2763 = vpop.f32.mrb[0].mxu0
    %2764 = vmatprep.mubr.f32.mxu0 %v2077
    %2765 = vmatmul.mubr.f32.gmra.mrb[0].mxu0 %v2061
    %v2766 = vpop.f32.mrb[0].mxu0
    %v2767 = vadd.f32 %v2622, %v2766
    %v2768 = vpop.f32.mrb[0].mxu0
    %2769 = vmatprep.mubr.f32.mxu0 %v2078
    %2770 = vmatmul.mubr.f32.gmra.mrb[0].mxu0 %v2062
    %v2771 = vpop.f32.mrb[0].mxu0
    %v2772 = vadd.f32 %v2627, %v2771
    %v2773 = vpop.f32.mrb[0].mxu0
    %2774 = vmatprep.mubr.f32.mxu0 %v2079
    %2775 = vmatmul.mubr.f32.gmra.mrb[0].mxu0 %v2063
    %v2776 = vpop.f32.mrb[0].mxu0
    %v2777 = vadd.f32 %v2632, %v2776
    %v2778 = vpop.f32.mrb[0].mxu0
    %2779 = vmatprep.mubr.f32.mxu0 %v2080
    %2780 = vmatmul.mubr.f32.gmra.mrb[0].mxu0 %v2064
    %v2781 = vpop.f32.mrb[0].mxu0
    %v2782 = vadd.f32 %v2637, %v2781
    %v2783 = vpop.f32.mrb[0].mxu0
    %2784 = vmatprep.mubr.f32.mxu0 %v2081
    %2785 = vmatmul.mubr.f32.gmra.mrb[0].mxu0 %v2065
    %v2786 = vpop.f32.mrb[0].mxu0
    %v2787 = vadd.f32 %v2642, %v2786
    %v2788 = vpop.f32.mrb[0].mxu0
    %2789 = vmatprep.mubr.f32.mxu0 %v2082
    %2790 = vmatmul.mubr.f32.gmra.mrb[0].mxu0 %v2066
    %v2791 = vpop.f32.mrb[0].mxu0
    %v2792 = vadd.f32 %v2647, %v2791
    %v2793 = vpop.f32.mrb[0].mxu0
    %2794 = vmatprep.mubr.f32.mxu0 %v2083
    %2795 = vmatmul.mubr.f32.gmra.mrb[0].mxu0 %v2067
    %v2796 = vpop.f32.mrb[0].mxu0
    %v2797 = vadd.f32 %v2652, %v2796
    %v2798 = vpop.f32.mrb[0].mxu0
    %2799 = vmatprep.mubr.f32.mxu0 %v2084
    %2800 = vmatmul.mubr.f32.gmra.mrb[0].mxu0 %v2068
    %v2801 = vpop.f32.mrb[0].mxu0
    %v2802 = vadd.f32 %v2657, %v2801
    %v2803 = vpop.f32.mrb[0].mxu0
    %2804 = vmatprep.mubr.f32.mxu0 %v2085
    %2805 = vmatmul.mubr.f32.gmra.mrb[0].mxu0 %v2069
    %v2806 = vpop.f32.mrb[0].mxu0
    %v2807 = vadd.f32 %v2662, %v2806
    %v2808 = vpop.f32.mrb[0].mxu0
    %2809 = vmatprep.mubr.f32.mxu0 %v2086
    %2810 = vmatmul.mubr.f32.gmra.mrb[0].mxu0 %v2070
    %v2811 = vpop.f32.mrb[0].mxu0
    %v2812 = vadd.f32 %v2667, %v2811
    %v2813 = vpop.f32.mrb[0].mxu0
    %2814 = vmatprep.mubr.f32.mxu0 %v2087
    %2815 = vmatmul.mubr.f32.gmra.mrb[0].mxu0 %v2071
    %v2816 = vpop.f32.mrb[0].mxu0
    %v2817 = vadd.f32 %v2672, %v2816
    %v2818 = vpop.f32.mrb[0].mxu0
    %2819 = vmatprep.mubr.f32.mxu0 %v2088
    %2820 = vmatmul.mubr.f32.gmra.mrb[0].mxu0 %v2072
    %v2821 = vpop.f32.mrb[0].mxu0
    %v2822 = vadd.f32 %v2677, %v2821
    %v2823 = vpop.f32.mrb[0].mxu0
    %2824 = vmatprep.mubr.f32.mxu0 %v2089
    %2825 = vmatmul.mubr.f32.gmra.mrb[0].mxu0 %v2073
    %v2826 = vpop.f32.mrb[0].mxu0
    %v2827 = vadd.f32 %v2682, %v2826
    %v2828 = vpop.f32.mrb[0].mxu0
    %2829 = vdwg.mxu0
    %2830 = vmatprep.subr.mxu0 0.0
    %2831 = vmatpush1.msra.mxu0 %v2234
    %2832 = vmatprep.subr.mxu0 0.0
    %2833 = vmatpush1.msra.mxu0 %v2235
    %2834 = vmatprep.subr.mxu0 0.0
    %2835 = vmatpush1.msra.mxu0 %v2236
    %2836 = vmatprep.subr.mxu0 0.0
    %2837 = vmatpush1.msra.mxu0 %v2237
    %2838 = vmatprep.subr.mxu0 0.0
    %2839 = vmatpush1.msra.mxu0 %v2238
    %2840 = vmatprep.subr.mxu0 0.0
    %2841 = vmatpush1.msra.mxu0 %v2239
    %2842 = vmatprep.subr.mxu0 0.0
    %2843 = vmatpush1.msra.mxu0 %v2240
    %2844 = vmatprep.subr.mxu0 0.0
    %2845 = vmatpush1.msra.mxu0 %v2241
    %2846 = vmatprep.subr.mxu0 0.0
    %2847 = vmatpush1.msra.mxu0 %v2242
    %2848 = vmatprep.subr.mxu0 0.0
    %2849 = vmatpush1.msra.mxu0 %v2243
    %2850 = vmatprep.subr.mxu0 0.0
    %2851 = vmatpush1.msra.mxu0 %v2244
    %2852 = vmatprep.subr.mxu0 0.0
    %2853 = vmatpush1.msra.mxu0 %v2245
    %2854 = vmatprep.subr.mxu0 0.0
    %2855 = vmatpush1.msra.mxu0 %v2246
    %2856 = vmatprep.subr.mxu0 0.0
    %2857 = vmatpush1.msra.mxu0 %v2247
    %2858 = vmatprep.subr.mxu0 0.0
    %2859 = vmatpush1.msra.mxu0 %v2248
    %2860 = vmatprep.subr.mxu0 0.0
    %2861 = vmatpush1.msra.mxu0 %v2249
    %2862 = vmatprep.subr.mxu0 0.0
    %2863 = vmatpush1.msra.mxu0 0.0
    %2864 = vmatprep.subr.mxu0 0.0
    %2865 = vmatpush1.msra.mxu0 0.0
    %2866 = vmatprep.subr.mxu0 0.0
    %2867 = vmatpush1.msra.mxu0 0.0
    %2868 = vmatprep.subr.mxu0 0.0
    %2869 = vmatpush1.msra.mxu0 0.0
    %2870 = vmatprep.subr.mxu0 0.0
    %2871 = vmatpush1.msra.mxu0 0.0
    %2872 = vmatprep.subr.mxu0 0.0
    %2873 = vmatpush1.msra.mxu0 0.0
    %2874 = vmatprep.subr.mxu0 0.0
    %2875 = vmatpush1.msra.mxu0 0.0
    %2876 = vmatprep.subr.mxu0 0.0
    %2877 = vmatpush1.msra.mxu0 0.0
    %2878 = vmatprep.subr.mxu0 0.0
    %2879 = vmatpush1.msra.mxu0 0.0
    %2880 = vmatprep.subr.mxu0 0.0
    %2881 = vmatpush1.msra.mxu0 0.0
    %2882 = vmatprep.subr.mxu0 0.0
    %2883 = vmatpush1.msra.mxu0 0.0
    %2884 = vmatprep.subr.mxu0 0.0
    %2885 = vmatpush1.msra.mxu0 0.0
    %2886 = vmatprep.subr.mxu0 0.0
    %2887 = vmatpush1.msra.mxu0 0.0
    %2888 = vmatprep.subr.mxu0 0.0
    %2889 = vmatpush1.msra.mxu0 0.0
    %2890 = vmatprep.subr.mxu0 0.0
    %2891 = vmatpush1.msra.mxu0 0.0
    %2892 = vmatprep.subr.mxu0 0.0
    %2893 = vmatpush1.msra.mxu0 0.0
    %2894 = vmatprep.mubr.f32.mxu0 0.0
    %2895 = vmatmul.mubr.f32.gmra.mrb[0].mxu0 %v2090
    %v2896 = vpop.f32.mrb[0].mxu0
    %v2897 = vadd.f32 %v2752, %v2896
    %v2898 = vpop.f32.mrb[0].mxu0
    %2899 = vmatprep.mubr.f32.mxu0 0.0
    %2900 = vmatmul.mubr.f32.gmra.mrb[0].mxu0 %v2091
    %v2901 = vpop.f32.mrb[0].mxu0
    %v2902 = vadd.f32 %v2757, %v2901
    %v2903 = vpop.f32.mrb[0].mxu0
    %2904 = vmatprep.mubr.f32.mxu0 0.0
    %2905 = vmatmul.mubr.f32.gmra.mrb[0].mxu0 %v2092
    %v2906 = vpop.f32.mrb[0].mxu0
    %v2907 = vadd.f32 %v2762, %v2906
    %v2908 = vpop.f32.mrb[0].mxu0
    %2909 = vmatprep.mubr.f32.mxu0 0.0
    %2910 = vmatmul.mubr.f32.gmra.mrb[0].mxu0 %v2093
    %v2911 = vpop.f32.mrb[0].mxu0
    %v2912 = vadd.f32 %v2767, %v2911
    %v2913 = vpop.f32.mrb[0].mxu0
    %2914 = vmatprep.mubr.f32.mxu0 0.0
    %2915 = vmatmul.mubr.f32.gmra.mrb[0].mxu0 %v2094
    %v2916 = vpop.f32.mrb[0].mxu0
    %v2917 = vadd.f32 %v2772, %v2916
    %v2918 = vpop.f32.mrb[0].mxu0
    %2919 = vmatprep.mubr.f32.mxu0 0.0
    %2920 = vmatmul.mubr.f32.gmra.mrb[0].mxu0 %v2095
    %v2921 = vpop.f32.mrb[0].mxu0
    %v2922 = vadd.f32 %v2777, %v2921
    %v2923 = vpop.f32.mrb[0].mxu0
    %2924 = vmatprep.mubr.f32.mxu0 0.0
    %2925 = vmatmul.mubr.f32.gmra.mrb[0].mxu0 %v2096
    %v2926 = vpop.f32.mrb[0].mxu0
    %v2927 = vadd.f32 %v2782, %v2926
    %v2928 = vpop.f32.mrb[0].mxu0
    %2929 = vmatprep.mubr.f32.mxu0 0.0
    %2930 = vmatmul.mubr.f32.gmra.mrb[0].mxu0 %v2097
    %v2931 = vpop.f32.mrb[0].mxu0
    %v2932 = vadd.f32 %v2787, %v2931
    %v2933 = vpop.f32.mrb[0].mxu0
    %2934 = vmatprep.mubr.f32.mxu0 0.0
    %2935 = vmatmul.mubr.f32.gmra.mrb[0].mxu0 %v2098
    %v2936 = vpop.f32.mrb[0].mxu0
    %v2937 = vadd.f32 %v2792, %v2936
    %v2938 = vpop.f32.mrb[0].mxu0
    %2939 = vmatprep.mubr.f32.mxu0 0.0
    %2940 = vmatmul.mubr.f32.gmra.mrb[0].mxu0 %v2099
    %v2941 = vpop.f32.mrb[0].mxu0
    %v2942 = vadd.f32 %v2797, %v2941
    %v2943 = vpop.f32.mrb[0].mxu0
    %2944 = vmatprep.mubr.f32.mxu0 0.0
    %2945 = vmatmul.mubr.f32.gmra.mrb[0].mxu0 %v2100
    %v2946 = vpop.f32.mrb[0].mxu0
    %v2947 = vadd.f32 %v2802, %v2946
    %v2948 = vpop.f32.mrb[0].mxu0
    %2949 = vmatprep.mubr.f32.mxu0 0.0
    %2950 = vmatmul.mubr.f32.gmra.mrb[0].mxu0 %v2101
    %v2951 = vpop.f32.mrb[0].mxu0
    %v2952 = vadd.f32 %v2807, %v2951
    %v2953 = vpop.f32.mrb[0].mxu0
    %2954 = vmatprep.mubr.f32.mxu0 0.0
    %2955 = vmatmul.mubr.f32.gmra.mrb[0].mxu0 %v2102
    %v2956 = vpop.f32.mrb[0].mxu0
    %v2957 = vadd.f32 %v2812, %v2956
    %v2958 = vpop.f32.mrb[0].mxu0
    %2959 = vmatprep.mubr.f32.mxu0 0.0
    %2960 = vmatmul.mubr.f32.gmra.mrb[0].mxu0 %v2103
    %v2961 = vpop.f32.mrb[0].mxu0
    %v2962 = vadd.f32 %v2817, %v2961
    %v2963 = vpop.f32.mrb[0].mxu0
    %2964 = vmatprep.mubr.f32.mxu0 0.0
    %2965 = vmatmul.mubr.f32.gmra.mrb[0].mxu0 %v2104
    %v2966 = vpop.f32.mrb[0].mxu0
    %v2967 = vadd.f32 %v2822, %v2966
    %v2968 = vpop.f32.mrb[0].mxu0
    %2969 = vmatprep.mubr.f32.mxu0 0.0
    %2970 = vmatmul.mubr.f32.gmra.mrb[0].mxu0 %v2105
    %v2971 = vpop.f32.mrb[0].mxu0
    %v2972 = vadd.f32 %v2827, %v2971
    %v2973 = vpop.f32.mrb[0].mxu0
    %2974 = vdwg.mxu0
    %v2975 = vld [vmem:[%s5] sm:$0x1]
    %v2976 = vld [vmem:[%s6] sm:$0x1]
    %v2977 = vadd.f32 %v2897, %v2902
    %v2978 = vadd.f32 %v2977, %v2907
    %v2979 = vadd.f32 %v2978, %v2912
    %v2980 = vadd.f32 %v2979, %v2917
    %v2981 = vadd.f32 %v2980, %v2922
    %v2982 = vadd.f32 %v2981, %v2927
    %v2983 = vadd.f32 %v2982, %v2932
    %v2984 = vadd.f32 %v2983, %v2937
    %v2985 = vadd.f32 %v2984, %v2942
    %v2986 = vadd.f32 %v2985, %v2947
    %v2987 = vadd.f32 %v2986, %v2952
    %v2988 = vadd.f32 %v2987, %v2957
    %v2989 = vadd.f32 %v2988, %v2962
    %v2990 = vadd.f32 %v2989, %v2967
    %v2991 = vadd.f32 %v2990, %v2972
    %v2992 = vrot.slane %v2991, 4
    %v2993 = vadd.f32 %v2991, %v2992
    %v2994 = vrot.slane %v2993, 2
    %v2995 = vadd.f32 %v2993, %v2994
    %v2996 = vrot.slane %v2995, 1
    %v2997 = vadd.f32 %v2995, %v2996
    %v2998 = vmul.f32 %v2997, %v1763
    %v2999 = vsub.f32 %v2897, %v2998
    %v3000 = vsub.f32 %v2902, %v2998
    %v3001 = vsub.f32 %v2907, %v2998
    %v3002 = vsub.f32 %v2912, %v2998
    %v3003 = vsub.f32 %v2917, %v2998
    %v3004 = vsub.f32 %v2922, %v2998
    %v3005 = vsub.f32 %v2927, %v2998
    %v3006 = vsub.f32 %v2932, %v2998
    %v3007 = vsub.f32 %v2937, %v2998
    %v3008 = vsub.f32 %v2942, %v2998
    %v3009 = vsub.f32 %v2947, %v2998
    %v3010 = vsub.f32 %v2952, %v2998
    %v3011 = vsub.f32 %v2957, %v2998
    %v3012 = vsub.f32 %v2962, %v2998
    %v3013 = vsub.f32 %v2967, %v2998
    %v3014 = vsub.f32 %v2972, %v2998
    %v3015 = vmul.f32 %v2999, %v2999
    %v3016 = vmul.f32 %v3000, %v3000
    %v3017 = vmul.f32 %v3001, %v3001
    %v3018 = vmul.f32 %v3002, %v3002
    %v3019 = vmul.f32 %v3003, %v3003
    %v3020 = vmul.f32 %v3004, %v3004
    %v3021 = vmul.f32 %v3005, %v3005
    %v3022 = vmul.f32 %v3006, %v3006
    %v3023 = vmul.f32 %v3007, %v3007
    %v3024 = vmul.f32 %v3008, %v3008
    %v3025 = vmul.f32 %v3009, %v3009
    %v3026 = vmul.f32 %v3010, %v3010
    %v3027 = vmul.f32 %v3011, %v3011
    %v3028 = vmul.f32 %v3012, %v3012
    %v3029 = vmul.f32 %v3013, %v3013
    %v3030 = vmul.f32 %v3014, %v3014
    %v3031 = vadd.f32 %v3015, %v3016
    %v3032 = vadd.f32 %v3031, %v3017
    %v3033 = vadd.f32 %v3032, %v3018
    %v3034 = vadd.f32 %v3033, %v3019
    %v3035 = vadd.f32 %v3034, %v3020
    %v3036 = vadd.f32 %v3035, %v3021
    %v3037 = vadd.f32 %v3036, %v3022
    %v3038 = vadd.f32 %v3037, %v3023
    %v3039 = vadd.f32 %v3038, %v3024
    %v3040 = vadd.f32 %v3039, %v3025
    %v3041 = vadd.f32 %v3040, %v3026
    %v3042 = vadd.f32 %v3041, %v3027
    %v3043 = vadd.f32 %v3042, %v3028
    %v3044 = vadd.f32 %v3043, %v3029
    %v3045 = vadd.f32 %v3044, %v3030
    %v3046 = vrot.slane %v3045, 4
    %v3047 = vadd.f32 %v3045, %v3046
    %v3048 = vrot.slane %v3047, 2
    %v3049 = vadd.f32 %v3047, %v3048
    %v3050 = vrot.slane %v3049, 1
    %v3051 = vadd.f32 %v3049, %v3050
    %v3052 = vmul.f32 %v3051, %v1763
    %v3053 = vadd.f32 %v3052, 1e-05
    %v3054 = vrsqrt.pop %v3053
    %v3055 = vmul.f32 %v2975, %v3054
    %v3057 = vlaneseq
    %v3058 = vshrl.u32 %v3057, 7
    %v3059 = vsub.s32 0, %v3058
    %v3060 = vrot.slane %v3055, %v3059
    %v3062 = vmul.f32 %v2999, %v3060
    %v3063 = vmul.f32 %v3000, %v3060
    %v3064 = vmul.f32 %v3001, %v3060
    %v3065 = vmul.f32 %v3002, %v3060
    %v3066 = vmul.f32 %v3003, %v3060
    %v3067 = vmul.f32 %v3004, %v3060
    %v3068 = vmul.f32 %v3005, %v3060
    %v3069 = vmul.f32 %v3006, %v3060
    %v3070 = vmul.f32 %v3007, %v3060
    %v3071 = vmul.f32 %v3008, %v3060
    %v3072 = vmul.f32 %v3009, %v3060
    %v3073 = vmul.f32 %v3010, %v3060
    %v3074 = vmul.f32 %v3011, %v3060
    %v3075 = vmul.f32 %v3012, %v3060
    %v3076 = vmul.f32 %v3013, %v3060
    %v3077 = vmul.f32 %v3014, %v3060
    %v3079 = vlaneseq
    %v3080 = vshrl.u32 %v3079, 7
    %v3081 = vsub.s32 0, %v3080
    %v3082 = vrot.slane %v2976, %v3081
    %v3084 = vadd.f32 %v3062, %v3082
    %v3085 = vadd.f32 %v3063, %v3082
    %v3086 = vadd.f32 %v3064, %v3082
    %v3087 = vadd.f32 %v3065, %v3082
    %v3088 = vadd.f32 %v3066, %v3082
    %v3089 = vadd.f32 %v3067, %v3082
    %v3090 = vadd.f32 %v3068, %v3082
    %v3091 = vadd.f32 %v3069, %v3082
    %v3092 = vadd.f32 %v3070, %v3082
    %v3093 = vadd.f32 %v3071, %v3082
    %v3094 = vadd.f32 %v3072, %v3082
    %v3095 = vadd.f32 %v3073, %v3082
    %v3096 = vadd.f32 %v3074, %v3082
    %v3097 = vadd.f32 %v3075, %v3082
    %v3098 = vadd.f32 %v3076, %v3082
    %v3099 = vadd.f32 %v3077, %v3082
    %v3100 = vadd.f32 %v68, %v3084
    %v3101 = vadd.f32 %v69, %v3085
    %v3102 = vadd.f32 %v70, %v3086
    %v3103 = vadd.f32 %v71, %v3087
    %v3104 = vadd.f32 %v72, %v3088
    %v3105 = vadd.f32 %v73, %v3089
    %v3106 = vadd.f32 %v74, %v3090
    %v3107 = vadd.f32 %v75, %v3091
    %v3108 = vadd.f32 %v76, %v3092
    %v3109 = vadd.f32 %v77, %v3093
    %v3110 = vadd.f32 %v78, %v3094
    %v3111 = vadd.f32 %v79, %v3095
    %v3112 = vadd.f32 %v80, %v3096
    %v3113 = vadd.f32 %v81, %v3097
    %v3114 = vadd.f32 %v82, %v3098
    %v3115 = vadd.f32 %v83, %v3099
    %3116 = vst [vmem:[#allocation8] sm:$0xff] %v3100
    %3117 = vst [vmem:[#allocation8 + $0x8] sm:$0xff] %v3101
    %3118 = vst [vmem:[#allocation8 + $0x10] sm:$0xff] %v3102
    %3119 = vst [vmem:[#allocation8 + $0x18] sm:$0xff] %v3103
    %3120 = vst [vmem:[#allocation8 + $0x20] sm:$0xff] %v3104
    %3121 = vst [vmem:[#allocation8 + $0x28] sm:$0xff] %v3105
    %3122 = vst [vmem:[#allocation8 + $0x30] sm:$0xff] %v3106
    %3123 = vst [vmem:[#allocation8 + $0x38] sm:$0xff] %v3107
    %3124 = vst [vmem:[#allocation8 + $0x40] sm:$0xff] %v3108
    %3125 = vst [vmem:[#allocation8 + $0x48] sm:$0xff] %v3109
    %3126 = vst [vmem:[#allocation8 + $0x50] sm:$0xff] %v3110
    %3127 = vst [vmem:[#allocation8 + $0x58] sm:$0xff] %v3111
    %3128 = vst [vmem:[#allocation8 + $0x60] sm:$0xff] %v3112
    %3129 = vst [vmem:[#allocation8 + $0x68] sm:$0xff] %v3113
    %3130 = vst [vmem:[#allocation8 + $0x70] sm:$0xff] %v3114
    %3131 = vst [vmem:[#allocation8 + $0x78] sm:$0xff] %v3115
    // Predicated region
    $region42: #{mygblock_forward.1} parent=1 // pred_check
      _
    $region43: #{mygblock_forward.1} parent=1 // pred_check_branch
      %3133 = sbr.rel (0) target = $region45
    $region44: #{mygblock_forward.1} parent=1 // pred_region
      %s3135 = ssub.s32 2048, 2048
      %3136 = vsyncadd [#allocation4], %s3135
      %s3137 = sshll.u32 [#allocation8], 4
      %s3138 = int_to_ptr.vmem [resolvable:$true] %s3137
      %3143 = dma.vmem_to_hbm [thread:$0]  %s3138, 2048, %s7, [#allocation4], 128, 128, 8
    $region45: #{mygblock_forward.1} parent=1 // pred_fallthru
      _
    // Predicated region
    $region46: #{mygblock_forward.1} parent=1 // pred_check
      _
    $region47: #{mygblock_forward.1} parent=1 // pred_check_branch
      %3145 = sbr.rel (0) target = $region49
    $region48: #{mygblock_forward.1} parent=1 // pred_region
      %3146 = dma.done [#allocation4], 2048
    $region49: #{mygblock_forward.1} parent=1 // pred_fallthru
      _
    %3147 = vsyncpa [#allocation3], 1
    %3148 = vsyncpa [#allocation6], 1
    %3149 = vsyncpa [#allocation4], 1

</llo_original>
